<compile_context>
chip_gen: v6e
topology: v6e:2x2x1
jax: 0.10.0
libtpu: 0.0.40
codegen_flags: <defaults>
</compile_context>

<pallas_src>
import functools
import math

import numpy as np
import jax
import jax.numpy as jnp
from jax.experimental import pallas as pl
from jax.experimental.pallas import tpu as pltpu


# ----------------------------- small helpers -------------------------------

def _ln_pad(x, g, b, eps, h_real):
    """LayerNorm over the first h_real lanes of a zero-padded [rows, Hp] tensor.

    Padded lanes hold zeros, so sums over the full width equal sums over the
    real lanes; gamma/beta are zero-padded so padded lanes stay exactly zero.
    Uses var = E[x^2] - mean^2 (biased, like torch)."""
    inv = 1.0 / float(h_real)
    mean = jnp.sum(x, axis=-1, keepdims=True) * inv
    ex2 = jnp.sum(x * x, axis=-1, keepdims=True) * inv
    var = ex2 - mean * mean
    return (x - mean) * jax.lax.rsqrt(var + eps) * g + b


def _gelu(x):
    # matches the module's custom gelu (tanh approximation)
    return 0.5 * x * (1.0 + jnp.tanh(math.sqrt(2.0 / math.pi)
                                     * (x + 0.044715 * x ** 3)))


def _round_up(x, m):
    return ((x + m - 1) // m) * m


def _rep_consts(nb, seqlen, heads, dph, h_real, hp):
    """Constant 0/1 matrices for head-and-batch-merged attention.

    R = nb*heads*seqlen rep-rows, one per (batch, head, key position).
      rep  [R, nb*seqlen] : replication matrix (k_rep = rep @ k, rides the MXU)
      hmx  [R, hp]        : 1 where a lane belongs to the rep-row's head
      sume [R, R]         : 1 where two rep-rows share the same (batch, head)
    """
    hs = heads * seqlen
    r = np.arange(nb * hs)
    rb, rh, rj = r // hs, (r % hs) // seqlen, r % seqlen
    rep = (np.arange(nb * seqlen)[None, :] == (rb * seqlen + rj)[:, None]
           ).astype(np.float32)
    lanes = np.arange(hp)
    hmx = ((lanes[None, :] < h_real)
           & ((lanes[None, :] // dph) == rh[:, None])).astype(np.float32)
    blk = rb * heads + rh
    sume = (blk[:, None] == blk[None, :]).astype(np.float32)
    return jnp.asarray(rep), jnp.asarray(hmx), jnp.asarray(sume)


def _attn_mask(pad_block, heads, q_per_batch):
    """Key mask for merged attention.  pad_block [nb, klen] (1 = pad token).

    Returns [nb*q_per_batch, nb*heads*klen] float (1 = masked): a key is masked
    if it is a pad position OR belongs to a different batch row (batch
    block-diagonality baked into the mask, no per-batch python loop)."""
    nb, klen = pad_block.shape
    hs = heads * klen
    r = np.arange(nb * hs)
    rb, rj = r // hs, r % klen
    qb = np.repeat(np.arange(nb), q_per_batch)
    cross = qb[:, None] != rb[None, :]                      # constant
    padcol = pad_block[rb, rj]                              # gather (XLA, tiny)
    return jnp.logical_or(jnp.asarray(cross), padcol[None, :] != 0
                          ).astype(jnp.float32)


def _merged_attention(qp, kp, vp, mask, rep, hmx, sume, scale):
    """All batches and heads in one shot.  qp [Nq, Hp], kp/vp [Nk, Hp]."""
    k_rep = jnp.dot(rep, kp, preferred_element_type=jnp.float32) * hmx   # [R, Hp]
    v_rep = jnp.dot(rep, vp, preferred_element_type=jnp.float32) * hmx   # [R, Hp]
    s = jax.lax.dot_general(qp * scale, k_rep, (((1,), (1,)), ((), ())),
                            preferred_element_type=jnp.float32)          # [Nq, R]
    s = jnp.where(mask != 0, -1e18, s)
    m = jnp.max(s, axis=-1, keepdims=True)
    e = jnp.where(mask != 0, 0.0, jnp.exp(s - m))     # masked keys exactly zero
    denom = jnp.dot(e, sume, preferred_element_type=jnp.float32)  # per-(b,h) sums
    attn = e / jnp.maximum(denom, 1e-30)              # exact softmax (parity)
    return jnp.dot(attn, v_rep, preferred_element_type=jnp.float32)      # [Nq, Hp]


# ----------------------------- Pallas kernels ------------------------------

def _encoder_stack_kernel(x_ref, mask_ref, rep_ref, hmx_ref, sume_ref, embln_ref,
                          w_ref, v_ref, o_ref, act_ref,
                          *, dph, h_real, eps):
    """Whole encoder stack for one batch half.  grid = (halves, L)."""
    l = pl.program_id(1)
    last = pl.num_programs(1) - 1
    scale = 1.0 / math.sqrt(dph)

    @pl.when(l == 0)
    def _():
        # embedding LayerNorm folded into the first grid step
        act_ref[...] = _ln_pad(x_ref[...], embln_ref[0:1, :], embln_ref[1:2, :],
                               eps, h_real)

    x = act_ref[...]
    mask = mask_ref[...]
    rep = rep_ref[...]
    hmx = hmx_ref[...]
    sume = sume_ref[...]

    v = v_ref[0]                                  # [10, Hp] packed biases / LN
    ln_g, ln_b = v[0:1, :], v[1:2, :]
    bq, bk, bvv, bo = v[2:3, :], v[3:4, :], v[4:5, :], v[5:6, :]
    fln_g, fln_b = v[6:7, :], v[7:8, :]
    b1, b2 = v[8:9, :], v[9:10, :]

    # ---- multi-head self-attention over all rows of this half ----
    xn = _ln_pad(x, ln_g, ln_b, eps, h_real)
    qp = jnp.dot(xn, w_ref[0, 0], preferred_element_type=jnp.float32) + bq
    kp = jnp.dot(xn, w_ref[0, 1], preferred_element_type=jnp.float32) + bk
    vp = jnp.dot(xn, w_ref[0, 2], preferred_element_type=jnp.float32) + bvv
    ctx = _merged_attention(qp, kp, vp, mask, rep, hmx, sume, scale)
    x = x + jnp.dot(ctx, w_ref[0, 3], preferred_element_type=jnp.float32) + bo

    # ---- positionwise feed-forward (own LN + residual) ----
    h = _ln_pad(x, fln_g, fln_b, eps, h_real)
    inter = _gelu(jnp.dot(h, w_ref[0, 4], preferred_element_type=jnp.float32) + b1)
    x = x + jnp.dot(inter, w_ref[0, 5], preferred_element_type=jnp.float32) + b2

    act_ref[...] = x

    @pl.when(l == last)
    def _():
        o_ref[...] = x


def _decoder_stack_kernel(cls_ref, mem_ref, mask_ref, rep_ref, hmx_ref, sume_ref,
                          w_ref, v_ref, finln_ref, o_ref, act_ref,
                          *, dph, h_real, eps):
    """Whole decoder stack.  grid = (L,).  Output rows = merged batch (tiny)."""
    l = pl.program_id(0)
    last = pl.num_programs(0) - 1
    scale = 1.0 / math.sqrt(dph)

    @pl.when(l == 0)
    def _():
        act_ref[...] = cls_ref[...]

    x = act_ref[...]
    mem = mem_ref[...]
    mask = mask_ref[...]
    rep = rep_ref[...]
    hmx = hmx_ref[...]
    sume = sume_ref[...]

    v = v_ref[0]                                  # [14, Hp] packed biases / LN
    ln1_g, ln1_b = v[0:1, :], v[1:2, :]
    bv_s, bo_s = v[2:3, :], v[3:4, :]
    ln2_g, ln2_b = v[4:5, :], v[5:6, :]
    bq, bk, bvv, bo = v[6:7, :], v[7:8, :], v[8:9, :], v[9:10, :]
    fln_g, fln_b = v[10:11, :], v[11:12, :]
    b1, b2 = v[12:13, :], v[13:14, :]

    # ---- self attention: Lq == Lk == 1 => softmax == 1, block collapses to
    #      final_linear(linear_values(LN1(x)))  (Wq/Wk mathematically unused)
    xn = _ln_pad(x, ln1_g, ln1_b, eps, h_real)
    sa = jnp.dot(xn, w_ref[0, 0], preferred_element_type=jnp.float32) + bv_s
    sa = jnp.dot(sa, w_ref[0, 1], preferred_element_type=jnp.float32) + bo_s
    query = sa + x

    # ---- context attention over the encoder memory ----
    qn = _ln_pad(query, ln2_g, ln2_b, eps, h_real)
    qp = jnp.dot(qn, w_ref[0, 2], preferred_element_type=jnp.float32) + bq
    kp = jnp.dot(mem, w_ref[0, 3], preferred_element_type=jnp.float32) + bk
    vp = jnp.dot(mem, w_ref[0, 4], preferred_element_type=jnp.float32) + bvv
    ctx = _merged_attention(qp, kp, vp, mask, rep, hmx, sume, scale)
    mid = jnp.dot(ctx, w_ref[0, 5], preferred_element_type=jnp.float32) + bo
    y = mid + query

    # ---- positionwise feed-forward (own LN + residual) ----
    h = _ln_pad(y, fln_g, fln_b, eps, h_real)
    inter = _gelu(jnp.dot(h, w_ref[0, 6], preferred_element_type=jnp.float32) + b1)
    x_new = y + jnp.dot(inter, w_ref[0, 7], preferred_element_type=jnp.float32) + b2

    act_ref[...] = x_new

    @pl.when(l == last)
    def _():
        # final decoder LayerNorm folded into the last grid step
        o_ref[...] = _ln_pad(x_new, finln_ref[0:1, :], finln_ref[1:2, :],
                             eps, h_real)


# ----------------------------- model (JAX glue) -----------------------------

def encoder_forward(ids, attention_mask, p, *, heads, h_real, halves):
    # TODO(synk): Bert wraps a pretrained HF BertModel checkpoint which cannot
    # be loaded here; a small deterministically-initialized transformer encoder
    # with the same interface (ids, attention_mask) -> [B, S, H] stands in.
    B, S = ids.shape
    Hp = p['tok_emb'].shape[1]
    dph = h_real // heads
    L = p['enc_W'].shape[0]
    Bh = B // halves
    Nh = Bh * S

    x = (p['tok_emb'][ids] + p['pos_emb'][None, :S, :]).reshape(B * S, Hp)
    pad = 1 - attention_mask.astype(jnp.int32)                     # [B, S], 1 = pad
    mask = jnp.concatenate(
        [_attn_mask(pad[h * Bh:(h + 1) * Bh], heads, S) for h in range(halves)],
        axis=0)                                                     # [B*S, Bh*heads*S]
    rep, hmx, sume = _rep_consts(Bh, S, heads, dph, h_real, Hp)
    R = rep.shape[0]

    out = pl.pallas_call(
        functools.partial(_encoder_stack_kernel, dph=dph, h_real=h_real, eps=1e-12),
        out_shape=jax.ShapeDtypeStruct((B * S, Hp), jnp.float32),
        grid=(halves, L),
        in_specs=[
            pl.BlockSpec((Nh, Hp), lambda h, l: (h, 0)),        # embeddings
            pl.BlockSpec((Nh, R), lambda h, l: (h, 0)),         # key mask
            pl.BlockSpec((R, Nh), lambda h, l: (0, 0)),         # rep (const)
            pl.BlockSpec((R, Hp), lambda h, l: (0, 0)),         # hmx (const)
            pl.BlockSpec((R, R), lambda h, l: (0, 0)),          # sume (const)
            pl.BlockSpec((2, Hp), lambda h, l: (0, 0)),         # emb LN g/b
            pl.BlockSpec((1, 6, Hp, Hp), lambda h, l: (l, 0, 0, 0)),   # weights[l]
            pl.BlockSpec((1, 10, Hp), lambda h, l: (l, 0, 0)),         # biases[l]
        ],
        out_specs=pl.BlockSpec((Nh, Hp), lambda h, l: (h, 0)),
        scratch_shapes=[pltpu.VMEM((Nh, Hp), jnp.float32)],     # resident activation
        compiler_params=pltpu.CompilerParams(
            dimension_semantics=("parallel", "arbitrary")),     # halves -> v7x 2nd TC
    )(x, mask, rep, hmx, sume, p['embln'], p['enc_W'], p['enc_V'])
    return out.reshape(B, S, Hp)


def decoder_forward(txt_id, cls_embedding, encoder_embedding, padding_idx, p,
                    *, heads, h_real):
    B, klen, Hp = encoder_embedding.shape                         # klen == S - 1
    dph = h_real // heads
    L = p['dec_W'].shape[0]

    txt = txt_id[:, 1:]
    pad = (txt == padding_idx).astype(jnp.int32)                  # [B, S-1], 1 = pad
    mask = _attn_mask(pad, heads, 1)                              # [B, B*heads*klen]
    rep, hmx, sume = _rep_consts(B, klen, heads, dph, h_real, Hp)
    R = rep.shape[0]
    M = B * klen
    mem2d = encoder_embedding.reshape(M, Hp)

    # Decoder work per step is only B (=4) query rows: a parallel batch split
    # would need sub-8-sublane output blocks and duplicate weight DMAs, so the
    # layer grid stays sequential.
    return pl.pallas_call(
        functools.partial(_decoder_stack_kernel, dph=dph, h_real=h_real, eps=1e-6),
        out_shape=jax.ShapeDtypeStruct((B, Hp), jnp.float32),
        grid=(L,),
        in_specs=[
            pl.BlockSpec((B, Hp), lambda l: (0, 0)),            # cls embedding
            pl.BlockSpec((M, Hp), lambda l: (0, 0)),            # encoder memory
            pl.BlockSpec((B, R), lambda l: (0, 0)),             # key mask
            pl.BlockSpec((R, M), lambda l: (0, 0)),             # rep (const)
            pl.BlockSpec((R, Hp), lambda l: (0, 0)),            # hmx (const)
            pl.BlockSpec((R, R), lambda l: (0, 0)),             # sume (const)
            pl.BlockSpec((1, 8, Hp, Hp), lambda l: (l, 0, 0, 0)),      # weights[l]
            pl.BlockSpec((1, 14, Hp), lambda l: (l, 0, 0)),            # biases[l]
            pl.BlockSpec((2, Hp), lambda l: (0, 0)),            # final LN g/b
        ],
        out_specs=pl.BlockSpec((B, Hp), lambda l: (0, 0)),
        scratch_shapes=[pltpu.VMEM((B, Hp), jnp.float32)],
        compiler_params=pltpu.CompilerParams(
            dimension_semantics=("arbitrary",)),
    )(cls_embedding, mem2d, mask, rep, hmx, sume, p['dec_W'], p['dec_V'], p['finln'])


def sort_model_forward(src_id, sents_id, params, pad_token_id, heads, h_real):
    B = src_id.shape[0]
    # merged src + sents pass: shared encoder/decoder weights, one call each
    ids = jnp.concatenate([src_id, sents_id], axis=0)            # [2B, S]
    input_mask = (ids != pad_token_id)
    halves = 2 if ids.shape[0] % 2 == 0 else 1
    enc = encoder_forward(ids, input_mask, params['encoder'],
                          heads=heads, h_real=h_real, halves=halves)
    dec = decoder_forward(ids, enc[:, 0, :], enc[:, 1:, :], 0, params['decoder'],
                          heads=heads, h_real=h_real)
    return {'doc_emb': dec[:B, :h_real], 'summary_emb': dec[B:, :h_real]}


# ----------------------------- parameter init -------------------------------

def _pad_mat(a, r, c):
    return jnp.zeros((r, c), a.dtype).at[:a.shape[0], :a.shape[1]].set(a)


def _pad_vec(a, n):
    a = a.reshape(-1)
    return jnp.zeros((n,), a.dtype).at[:a.shape[0]].set(a)


def _init_linear(key, d_in, d_out, scale=0.02):
    kw, kb = jax.random.split(key)
    return (scale * jax.random.normal(kw, (d_in, d_out), jnp.float32),
            scale * jax.random.normal(kb, (d_out,), jnp.float32))


def init_params(key, vocab, max_pos, H, FF, enc_layers, dec_layers):
    Hp = _round_up(H, 128)
    FFp = _round_up(FF, 128)
    assert FFp == Hp, "weight packing assumes padded FF width == padded hidden width"
    keys = jax.random.split(key, 2 + enc_layers + dec_layers)

    ones_h = _pad_vec(jnp.ones((H,), jnp.float32), Hp)     # LN gamma (zero-padded)
    zeros_h = jnp.zeros((Hp,), jnp.float32)                # LN beta / zero bias

    enc_W, enc_V = [], []
    for i in range(enc_layers):
        ks = jax.random.split(keys[2 + i], 6)
        wq, bq = _init_linear(ks[0], H, H)
        wk, bk = _init_linear(ks[1], H, H)
        wv, bv = _init_linear(ks[2], H, H)
        wo, bo = _init_linear(ks[3], H, H)
        w1, b1 = _init_linear(ks[4], H, FF)
        w2, b2 = _init_linear(ks[5], FF, H)
        enc_W.append(jnp.stack([_pad_mat(w, Hp, Hp) for w in (wq, wk, wv, wo)]
                               + [_pad_mat(w1, Hp, FFp), _pad_mat(w2, FFp, Hp)]))
        enc_V.append(jnp.stack([ones_h, zeros_h,
                                _pad_vec(bq, Hp), _pad_vec(bk, Hp),
                                _pad_vec(bv, Hp), _pad_vec(bo, Hp),
                                ones_h, zeros_h,
                                _pad_vec(b1, FFp), _pad_vec(b2, Hp)]))
    encoder = dict(
        tok_emb=_pad_mat(0.02 * jax.random.normal(keys[0], (vocab, H), jnp.float32),
                         vocab, Hp),
        pos_emb=_pad_mat(0.02 * jax.random.normal(keys[1], (max_pos, H), jnp.float32),
                         max_pos, Hp),
        embln=jnp.stack([ones_h, zeros_h]),
        enc_W=jnp.stack(enc_W), enc_V=jnp.stack(enc_V))

    dec_W, dec_V = [], []
    for i in range(dec_layers):
        ks = jax.random.split(keys[2 + enc_layers + i], 8)
        # self-attn Wq/Wk exist in the torch module but are mathematically
        # unused (softmax over a single key == 1): only V and O are packed.
        wv_s, bv_s = _init_linear(ks[0], H, H)
        wo_s, bo_s = _init_linear(ks[1], H, H)
        wq, bq = _init_linear(ks[2], H, H)
        wk, bk = _init_linear(ks[3], H, H)
        wv, bv = _init_linear(ks[4], H, H)
        wo, bo = _init_linear(ks[5], H, H)
        w1, b1 = _init_linear(ks[6], H, FF)
        w2, b2 = _init_linear(ks[7], FF, H)
        dec_W.append(jnp.stack([_pad_mat(w, Hp, Hp)
                                for w in (wv_s, wo_s, wq, wk, wv, wo)]
                               + [_pad_mat(w1, Hp, FFp), _pad_mat(w2, FFp, Hp)]))
        dec_V.append(jnp.stack([ones_h, zeros_h,
                                _pad_vec(bv_s, Hp), _pad_vec(bo_s, Hp),
                                ones_h, zeros_h,
                                _pad_vec(bq, Hp), _pad_vec(bk, Hp),
                                _pad_vec(bv, Hp), _pad_vec(bo, Hp),
                                ones_h, zeros_h,
                                _pad_vec(b1, FFp), _pad_vec(b2, Hp)]))
    decoder = dict(dec_W=jnp.stack(dec_W), dec_V=jnp.stack(dec_V),
                   finln=jnp.stack([ones_h, zeros_h]))
    return dict(encoder=encoder, decoder=decoder)


# ----------------------------------- main ------------------------------------

if __name__ == "__main__":
    B, S, H, HEADS, FF, VOCAB, MAXPOS = 2, 8, 32, 4, 64, 64, 16
    ENC_LAYERS, DEC_LAYERS = 2, 2
    PAD = 0

    root = jax.random.PRNGKey(0)
    kp, ks1, ks2 = jax.random.split(root, 3)
    params = init_params(kp, VOCAB, MAXPOS, H, FF, ENC_LAYERS, DEC_LAYERS)

    src_id = jax.random.randint(ks1, (B, S), 1, VOCAB, dtype=jnp.int32)
    sents_id = jax.random.randint(ks2, (B, S), 1, VOCAB, dtype=jnp.int32)
    # padding at the tails (pad_token_id == 0), real tokens elsewhere
    src_id = src_id.at[0, -2:].set(PAD).at[1, -1:].set(PAD)
    sents_id = sents_id.at[0, -3:].set(PAD).at[1, -2:].set(PAD)

    fwd = jax.jit(lambda a, b, p: sort_model_forward(a, b, p, PAD, HEADS, H))
    out = fwd(src_id, sents_id, params)
    jax.block_until_ready(out)
    assert out['doc_emb'].shape == (B, H)
    assert out['summary_emb'].shape == (B, H)
    print("KERNEL_OK")
</pallas_src>

<mosaic_0001>
module attributes {stable_mosaic.version = 11 : i64} {
  func.func @_encoder_stack_kernel(%arg0: i32, %arg1: i32, %arg2: memref<16x128xf32, #tpu.memory_space<vmem>>, %arg3: memref<16x64xf32, #tpu.memory_space<vmem>>, %arg4: memref<64x16xf32, #tpu.memory_space<vmem>>, %arg5: memref<64x128xf32, #tpu.memory_space<vmem>>, %arg6: memref<64x64xf32, #tpu.memory_space<vmem>>, %arg7: memref<2x128xf32, #tpu.memory_space<vmem>>, %arg8: memref<1x6x128x128xf32, #tpu.memory_space<vmem>>, %arg9: memref<1x10x128xf32, #tpu.memory_space<vmem>>, %arg10: memref<16x128xf32, #tpu.memory_space<vmem>>, %arg11: memref<16x128xf32, #tpu.memory_space<vmem>>) attributes {dimension_semantics = [#tpu.dimension_semantics<parallel>, #tpu.dimension_semantics<arbitrary>], iteration_bounds = array<i64: 2, 2>, scalar_prefetch = 0 : i64, scratch_operands = 1 : i64, tpu.core_type = #tpu.core_type<tc>, window_params = [{transform_indices = @transform_0, window_bounds = array<i64: 16, 128>}, {transform_indices = @transform_1, window_bounds = array<i64: 16, 64>}, {pipeline_mode = #tpu.pipeline_mode<synchronous>, transform_indices = @transform_2, window_bounds = array<i64: 64, 16>}, {pipeline_mode = #tpu.pipeline_mode<synchronous>, transform_indices = @transform_3, window_bounds = array<i64: 64, 128>}, {pipeline_mode = #tpu.pipeline_mode<synchronous>, transform_indices = @transform_4, window_bounds = array<i64: 64, 64>}, {pipeline_mode = #tpu.pipeline_mode<synchronous>, transform_indices = @transform_5, window_bounds = array<i64: 2, 128>}, {transform_indices = @transform_6, window_bounds = array<i64: 1, 6, 128, 128>}, {transform_indices = @transform_7, window_bounds = array<i64: 1, 10, 128>}, {transform_indices = @transform_8, window_bounds = array<i64: 16, 128>}]} {
    %c0_i32 = arith.constant 0 : i32
    %0 = arith.cmpi eq, %arg1, %c0_i32 : i32
    %1 = arith.extui %0 : i1 to i32
    %c0_i32_0 = arith.constant 0 : i32
    %2 = arith.cmpi ne, %1, %c0_i32_0 : i32
    scf.if %2 {
      %c0_66 = arith.constant 0 : index
      %c0_67 = arith.constant 0 : index
      %138 = vector.load %arg2[%c0_66, %c0_67] : memref<16x128xf32, #tpu.memory_space<vmem>>, vector<16x128xf32>
      %c0_68 = arith.constant 0 : index
      %c0_69 = arith.constant 0 : index
      %139 = vector.load %arg7[%c0_68, %c0_69] : memref<2x128xf32, #tpu.memory_space<vmem>>, vector<1x128xf32>
      %c1_70 = arith.constant 1 : index
      %c0_71 = arith.constant 0 : index
      %140 = vector.load %arg7[%c1_70, %c0_71] : memref<2x128xf32, #tpu.memory_space<vmem>>, vector<1x128xf32>
      %cst_72 = arith.constant dense<0.000000e+00> : vector<16xf32>
      %141 = vector.multi_reduction <add>, %138, %cst_72 [1] : vector<16x128xf32> to vector<16xf32>
      %142 = vector.shape_cast %141 : vector<16xf32> to vector<16x1xf32>
      %cst_73 = arith.constant 3.125000e-02 : f32
      %143 = vector.broadcast %cst_73 : f32 to vector<16x1xf32>
      %144 = arith.mulf %142, %143 : vector<16x1xf32>
      %145 = arith.mulf %138, %138 : vector<16x128xf32>
      %cst_74 = arith.constant dense<0.000000e+00> : vector<16xf32>
      %146 = vector.multi_reduction <add>, %145, %cst_74 [1] : vector<16x128xf32> to vector<16xf32>
      %147 = vector.shape_cast %146 : vector<16xf32> to vector<16x1xf32>
      %cst_75 = arith.constant 3.125000e-02 : f32
      %148 = vector.broadcast %cst_75 : f32 to vector<16x1xf32>
      %149 = arith.mulf %147, %148 : vector<16x1xf32>
      %150 = arith.mulf %144, %144 : vector<16x1xf32>
      %151 = arith.subf %149, %150 : vector<16x1xf32>
      %152 = vector.broadcast %144 : vector<16x1xf32> to vector<16x128xf32>
      %153 = arith.subf %138, %152 : vector<16x128xf32>
      %cst_76 = arith.constant 9.99999996E-13 : f32
      %154 = vector.broadcast %cst_76 : f32 to vector<16x1xf32>
      %155 = arith.addf %151, %154 : vector<16x1xf32>
      %156 = math.rsqrt %155 : vector<16x1xf32>
      %157 = vector.broadcast %156 : vector<16x1xf32> to vector<16x128xf32>
      %158 = arith.mulf %153, %157 : vector<16x128xf32>
      %159 = vector.broadcast %139 : vector<1x128xf32> to vector<16x128xf32>
      %160 = arith.mulf %158, %159 : vector<16x128xf32>
      %161 = vector.broadcast %140 : vector<1x128xf32> to vector<16x128xf32>
      %162 = arith.addf %160, %161 : vector<16x128xf32>
      %c0_77 = arith.constant 0 : index
      %c0_78 = arith.constant 0 : index
      %163 = vector.load %arg11[%c0_77, %c0_78] : memref<16x128xf32, #tpu.memory_space<vmem>>, vector<16x128xf32>
      tpu.vector_store %arg11[%c0_77, %c0_78], %162 {strides = array<i32>} : memref<16x128xf32, #tpu.memory_space<vmem>>, vector<16x128xf32>,
    } else {
    }
    %c0 = arith.constant 0 : index
    %c0_1 = arith.constant 0 : index
    %3 = vector.load %arg11[%c0, %c0_1] : memref<16x128xf32, #tpu.memory_space<vmem>>, vector<16x128xf32>
    %c0_2 = arith.constant 0 : index
    %c0_3 = arith.constant 0 : index
    %4 = vector.load %arg3[%c0_2, %c0_3] : memref<16x64xf32, #tpu.memory_space<vmem>>, vector<16x64xf32>
    %c0_4 = arith.constant 0 : index
    %c0_5 = arith.constant 0 : index
    %5 = vector.load %arg4[%c0_4, %c0_5] : memref<64x16xf32, #tpu.memory_space<vmem>>, vector<64x16xf32>
    %c0_6 = arith.constant 0 : index
    %c0_7 = arith.constant 0 : index
    %6 = vector.load %arg5[%c0_6, %c0_7] : memref<64x128xf32, #tpu.memory_space<vmem>>, vector<64x128xf32>
    %c0_8 = arith.constant 0 : index
    %c0_9 = arith.constant 0 : index
    %7 = vector.load %arg6[%c0_8, %c0_9] : memref<64x64xf32, #tpu.memory_space<vmem>>, vector<64x64xf32>
    %c0_10 = arith.constant 0 : index
    %c0_11 = arith.constant 0 : index
    %c0_12 = arith.constant 0 : index
    %8 = vector.load %arg9[%c0_10, %c0_11, %c0_12] : memref<1x10x128xf32, #tpu.memory_space<vmem>>, vector<1x10x128xf32>
    %9 = vector.shape_cast %8 : vector<1x10x128xf32> to vector<10x128xf32>
    %10 = vector.extract_strided_slice %9 {offsets = [0, 0], sizes = [1, 128], strides = [1, 1]} : vector<10x128xf32> to vector<1x128xf32>
    %11 = vector.extract_strided_slice %9 {offsets = [1, 0], sizes = [1, 128], strides = [1, 1]} : vector<10x128xf32> to vector<1x128xf32>
    %12 = vector.extract_strided_slice %9 {offsets = [2, 0], sizes = [1, 128], strides = [1, 1]} : vector<10x128xf32> to vector<1x128xf32>
    %13 = vector.extract_strided_slice %9 {offsets = [3, 0], sizes = [1, 128], strides = [1, 1]} : vector<10x128xf32> to vector<1x128xf32>
    %14 = vector.extract_strided_slice %9 {offsets = [4, 0], sizes = [1, 128], strides = [1, 1]} : vector<10x128xf32> to vector<1x128xf32>
    %15 = vector.extract_strided_slice %9 {offsets = [5, 0], sizes = [1, 128], strides = [1, 1]} : vector<10x128xf32> to vector<1x128xf32>
    %16 = vector.extract_strided_slice %9 {offsets = [6, 0], sizes = [1, 128], strides = [1, 1]} : vector<10x128xf32> to vector<1x128xf32>
    %17 = vector.extract_strided_slice %9 {offsets = [7, 0], sizes = [1, 128], strides = [1, 1]} : vector<10x128xf32> to vector<1x128xf32>
    %18 = vector.extract_strided_slice %9 {offsets = [8, 0], sizes = [1, 128], strides = [1, 1]} : vector<10x128xf32> to vector<1x128xf32>
    %19 = vector.extract_strided_slice %9 {offsets = [9, 0], sizes = [1, 128], strides = [1, 1]} : vector<10x128xf32> to vector<1x128xf32>
    %cst = arith.constant dense<0.000000e+00> : vector<16xf32>
    %20 = vector.multi_reduction <add>, %3, %cst [1] : vector<16x128xf32> to vector<16xf32>
    %21 = vector.shape_cast %20 : vector<16xf32> to vector<16x1xf32>
    %cst_13 = arith.constant 3.125000e-02 : f32
    %22 = vector.broadcast %cst_13 : f32 to vector<16x1xf32>
    %23 = arith.mulf %21, %22 : vector<16x1xf32>
    %24 = arith.mulf %3, %3 : vector<16x128xf32>
    %cst_14 = arith.constant dense<0.000000e+00> : vector<16xf32>
    %25 = vector.multi_reduction <add>, %24, %cst_14 [1] : vector<16x128xf32> to vector<16xf32>
    %26 = vector.shape_cast %25 : vector<16xf32> to vector<16x1xf32>
    %cst_15 = arith.constant 3.125000e-02 : f32
    %27 = vector.broadcast %cst_15 : f32 to vector<16x1xf32>
    %28 = arith.mulf %26, %27 : vector<16x1xf32>
    %29 = arith.mulf %23, %23 : vector<16x1xf32>
    %30 = arith.subf %28, %29 : vector<16x1xf32>
    %31 = vector.broadcast %23 : vector<16x1xf32> to vector<16x128xf32>
    %32 = arith.subf %3, %31 : vector<16x128xf32>
    %cst_16 = arith.constant 9.99999996E-13 : f32
    %33 = vector.broadcast %cst_16 : f32 to vector<16x1xf32>
    %34 = arith.addf %30, %33 : vector<16x1xf32>
    %35 = math.rsqrt %34 : vector<16x1xf32>
    %36 = vector.broadcast %35 : vector<16x1xf32> to vector<16x128xf32>
    %37 = arith.mulf %32, %36 : vector<16x128xf32>
    %38 = vector.broadcast %10 : vector<1x128xf32> to vector<16x128xf32>
    %39 = arith.mulf %37, %38 : vector<16x128xf32>
    %40 = vector.broadcast %11 : vector<1x128xf32> to vector<16x128xf32>
    %41 = arith.addf %39, %40 : vector<16x128xf32>
    %c0_17 = arith.constant 0 : index
    %c0_18 = arith.constant 0 : index
    %c0_19 = arith.constant 0 : index
    %c0_20 = arith.constant 0 : index
    %42 = vector.load %arg8[%c0_17, %c0_18, %c0_19, %c0_20] : memref<1x6x128x128xf32, #tpu.memory_space<vmem>>, vector<1x1x128x128xf32>
    %43 = vector.shape_cast %42 : vector<1x1x128x128xf32> to vector<128x128xf32>
    %cst_21 = arith.constant dense<0.000000e+00> : vector<16x128xf32>
    %44 = tpu.matmul %41, %43, %cst_21 {dimension_numbers = #tpu.dot_dimension_numbers<[1], [0], [0], [1], [0, 0, 1, 1], [], []>} : vector<16x128xf32>, vector<128x128xf32>, vector<16x128xf32> -> vector<16x128xf32>
    %45 = vector.broadcast %12 : vector<1x128xf32> to vector<16x128xf32>
    %46 = arith.addf %44, %45 : vector<16x128xf32>
    %c0_22 = arith.constant 0 : index
    %c1 = arith.constant 1 : index
    %c0_23 = arith.constant 0 : index
    %c0_24 = arith.constant 0 : index
    %47 = vector.load %arg8[%c0_22, %c1, %c0_23, %c0_24] : memref<1x6x128x128xf32, #tpu.memory_space<vmem>>, vector<1x1x128x128xf32>
    %48 = vector.shape_cast %47 : vector<1x1x128x128xf32> to vector<128x128xf32>
    %cst_25 = arith.constant dense<0.000000e+00> : vector<16x128xf32>
    %49 = tpu.matmul %41, %48, %cst_25 {dimension_numbers = #tpu.dot_dimension_numbers<[1], [0], [0], [1], [0, 0, 1, 1], [], []>} : vector<16x128xf32>, vector<128x128xf32>, vector<16x128xf32> -> vector<16x128xf32>
    %50 = vector.broadcast %13 : vector<1x128xf32> to vector<16x128xf32>
    %51 = arith.addf %49, %50 : vector<16x128xf32>
    %c0_26 = arith.constant 0 : index
    %c2 = arith.constant 2 : index
    %c0_27 = arith.constant 0 : index
    %c0_28 = arith.constant 0 : index
    %52 = vector.load %arg8[%c0_26, %c2, %c0_27, %c0_28] : memref<1x6x128x128xf32, #tpu.memory_space<vmem>>, vector<1x1x128x128xf32>
    %53 = vector.shape_cast %52 : vector<1x1x128x128xf32> to vector<128x128xf32>
    %cst_29 = arith.constant dense<0.000000e+00> : vector<16x128xf32>
    %54 = tpu.matmul %41, %53, %cst_29 {dimension_numbers = #tpu.dot_dimension_numbers<[1], [0], [0], [1], [0, 0, 1, 1], [], []>} : vector<16x128xf32>, vector<128x128xf32>, vector<16x128xf32> -> vector<16x128xf32>
    %55 = vector.broadcast %14 : vector<1x128xf32> to vector<16x128xf32>
    %56 = arith.addf %54, %55 : vector<16x128xf32>
    %cst_30 = arith.constant dense<0.000000e+00> : vector<64x128xf32>
    %57 = tpu.matmul %5, %51, %cst_30 {dimension_numbers = #tpu.dot_dimension_numbers<[1], [0], [0], [1], [0, 0, 1, 1], [], []>} : vector<64x16xf32>, vector<16x128xf32>, vector<64x128xf32> -> vector<64x128xf32>
    %58 = arith.mulf %57, %6 : vector<64x128xf32>
    %cst_31 = arith.constant dense<0.000000e+00> : vector<64x128xf32>
    %59 = tpu.matmul %5, %56, %cst_31 {dimension_numbers = #tpu.dot_dimension_numbers<[1], [0], [0], [1], [0, 0, 1, 1], [], []>} : vector<64x16xf32>, vector<16x128xf32>, vector<64x128xf32> -> vector<64x128xf32>
    %60 = arith.mulf %59, %6 : vector<64x128xf32>
    %cst_32 = arith.constant 0.353553385 : f32
    %61 = vector.broadcast %cst_32 : f32 to vector<16x128xf32>
    %62 = arith.mulf %46, %61 : vector<16x128xf32>
    %cst_33 = arith.constant dense<0.000000e+00> : vector<16x64xf32>
    %63 = tpu.matmul %62, %58, %cst_33 {dimension_numbers = #tpu.dot_dimension_numbers<[1], [1], [0], [0], [0, 0, 1, 0], [], []>} : vector<16x128xf32>, vector<64x128xf32>, vector<16x64xf32> -> vector<16x64xf32>
    %cst_34 = arith.constant 0.000000e+00 : f32
    %64 = vector.broadcast %cst_34 : f32 to vector<16x64xf32>
    %65 = arith.cmpf one, %4, %64 : vector<16x64xf32>
    %cst_35 = arith.constant -9.99999984E+17 : f32
    %66 = vector.broadcast %cst_35 : f32 to vector<16x64xf32>
    %67 = arith.select %65, %66, %63 : vector<16x64xi1>, vector<16x64xf32>
    %cst_36 = arith.constant dense<0xFF800000> : vector<16xf32>
    %68 = vector.multi_reduction <maximumf>, %67, %cst_36 [1] : vector<16x64xf32> to vector<16xf32>
    %69 = vector.shape_cast %68 : vector<16xf32> to vector<16x1xf32>
    %cst_37 = arith.constant 0.000000e+00 : f32
    %70 = vector.broadcast %cst_37 : f32 to vector<16x64xf32>
    %71 = arith.cmpf one, %4, %70 : vector<16x64xf32>
    %72 = vector.broadcast %69 : vector<16x1xf32> to vector<16x64xf32>
    %73 = arith.subf %67, %72 : vector<16x64xf32>
    %74 = math.exp %73 : vector<16x64xf32>
    %cst_38 = arith.constant 0.000000e+00 : f32
    %75 = vector.broadcast %cst_38 : f32 to vector<16x64xf32>
    %76 = arith.select %71, %75, %74 : vector<16x64xi1>, vector<16x64xf32>
    %cst_39 = arith.constant dense<0.000000e+00> : vector<16x64xf32>
    %77 = tpu.matmul %76, %7, %cst_39 {dimension_numbers = #tpu.dot_dimension_numbers<[1], [0], [0], [1], [0, 0, 1, 1], [], []>} : vector<16x64xf32>, vector<64x64xf32>, vector<16x64xf32> -> vector<16x64xf32>
    %cst_40 = arith.constant 1.000000e-30 : f32
    %78 = vector.broadcast %cst_40 : f32 to vector<16x64xf32>
    %79 = arith.maximumf %77, %78 : vector<16x64xf32>
    %80 = arith.divf %76, %79 : vector<16x64xf32>
    %cst_41 = arith.constant dense<0.000000e+00> : vector<16x128xf32>
    %81 = tpu.matmul %80, %60, %cst_41 {dimension_numbers = #tpu.dot_dimension_numbers<[1], [0], [0], [1], [0, 0, 1, 1], [], []>} : vector<16x64xf32>, vector<64x128xf32>, vector<16x128xf32> -> vector<16x128xf32>
    %c0_42 = arith.constant 0 : index
    %c3 = arith.constant 3 : index
    %c0_43 = arith.constant 0 : index
    %c0_44 = arith.constant 0 : index
    %82 = vector.load %arg8[%c0_42, %c3, %c0_43, %c0_44] : memref<1x6x128x128xf32, #tpu.memory_space<vmem>>, vector<1x1x128x128xf32>
    %83 = vector.shape_cast %82 : vector<1x1x128x128xf32> to vector<128x128xf32>
    %cst_45 = arith.constant dense<0.000000e+00> : vector<16x128xf32>
    %84 = tpu.matmul %81, %83, %cst_45 {dimension_numbers = #tpu.dot_dimension_numbers<[1], [0], [0], [1], [0, 0, 1, 1], [], []>} : vector<16x128xf32>, vector<128x128xf32>, vector<16x128xf32> -> vector<16x128xf32>
    %85 = arith.addf %3, %84 : vector<16x128xf32>
    %86 = vector.broadcast %15 : vector<1x128xf32> to vector<16x128xf32>
    %87 = arith.addf %85, %86 : vector<16x128xf32>
    %cst_46 = arith.constant dense<0.000000e+00> : vector<16xf32>
    %88 = vector.multi_reduction <add>, %87, %cst_46 [1] : vector<16x128xf32> to vector<16xf32>
    %89 = vector.shape_cast %88 : vector<16xf32> to vector<16x1xf32>
    %cst_47 = arith.constant 3.125000e-02 : f32
    %90 = vector.broadcast %cst_47 : f32 to vector<16x1xf32>
    %91 = arith.mulf %89, %90 : vector<16x1xf32>
    %92 = arith.mulf %87, %87 : vector<16x128xf32>
    %cst_48 = arith.constant dense<0.000000e+00> : vector<16xf32>
    %93 = vector.multi_reduction <add>, %92, %cst_48 [1] : vector<16x128xf32> to vector<16xf32>
    %94 = vector.shape_cast %93 : vector<16xf32> to vector<16x1xf32>
    %cst_49 = arith.constant 3.125000e-02 : f32
    %95 = vector.broadcast %cst_49 : f32 to vector<16x1xf32>
    %96 = arith.mulf %94, %95 : vector<16x1xf32>
    %97 = arith.mulf %91, %91 : vector<16x1xf32>
    %98 = arith.subf %96, %97 : vector<16x1xf32>
    %99 = vector.broadcast %91 : vector<16x1xf32> to vector<16x128xf32>
    %100 = arith.subf %87, %99 : vector<16x128xf32>
    %cst_50 = arith.constant 9.99999996E-13 : f32
    %101 = vector.broadcast %cst_50 : f32 to vector<16x1xf32>
    %102 = arith.addf %98, %101 : vector<16x1xf32>
    %103 = math.rsqrt %102 : vector<16x1xf32>
    %104 = vector.broadcast %103 : vector<16x1xf32> to vector<16x128xf32>
    %105 = arith.mulf %100, %104 : vector<16x128xf32>
    %106 = vector.broadcast %16 : vector<1x128xf32> to vector<16x128xf32>
    %107 = arith.mulf %105, %106 : vector<16x128xf32>
    %108 = vector.broadcast %17 : vector<1x128xf32> to vector<16x128xf32>
    %109 = arith.addf %107, %108 : vector<16x128xf32>
    %c0_51 = arith.constant 0 : index
    %c4 = arith.constant 4 : index
    %c0_52 = arith.constant 0 : index
    %c0_53 = arith.constant 0 : index
    %110 = vector.load %arg8[%c0_51, %c4, %c0_52, %c0_53] : memref<1x6x128x128xf32, #tpu.memory_space<vmem>>, vector<1x1x128x128xf32>
    %111 = vector.shape_cast %110 : vector<1x1x128x128xf32> to vector<128x128xf32>
    %cst_54 = arith.constant dense<0.000000e+00> : vector<16x128xf32>
    %112 = tpu.matmul %109, %111, %cst_54 {dimension_numbers = #tpu.dot_dimension_numbers<[1], [0], [0], [1], [0, 0, 1, 1], [], []>} : vector<16x128xf32>, vector<128x128xf32>, vector<16x128xf32> -> vector<16x128xf32>
    %113 = vector.broadcast %18 : vector<1x128xf32> to vector<16x128xf32>
    %114 = arith.addf %112, %113 : vector<16x128xf32>
    %cst_55 = arith.constant 5.000000e-01 : f32
    %115 = vector.broadcast %cst_55 : f32 to vector<16x128xf32>
    %116 = arith.mulf %115, %114 : vector<16x128xf32>
    %117 = arith.mulf %114, %114 : vector<16x128xf32>
    %118 = arith.mulf %114, %117 : vector<16x128xf32>
    %cst_56 = arith.constant 4.471500e-02 : f32
    %119 = vector.broadcast %cst_56 : f32 to vector<16x128xf32>
    %120 = arith.mulf %119, %118 : vector<16x128xf32>
    %121 = arith.addf %114, %120 : vector<16x128xf32>
    %cst_57 = arith.constant 0.797884583 : f32
    %122 = vector.broadcast %cst_57 : f32 to vector<16x128xf32>
    %123 = arith.mulf %122, %121 : vector<16x128xf32>
    %124 = math.tanh %123 : vector<16x128xf32>
    %cst_58 = arith.constant 1.000000e+00 : f32
    %125 = vector.broadcast %cst_58 : f32 to vector<16x128xf32>
    %126 = arith.addf %125, %124 : vector<16x128xf32>
    %127 = arith.mulf %116, %126 : vector<16x128xf32>
    %c0_59 = arith.constant 0 : index
    %c5 = arith.constant 5 : index
    %c0_60 = arith.constant 0 : index
    %c0_61 = arith.constant 0 : index
    %128 = vector.load %arg8[%c0_59, %c5, %c0_60, %c0_61] : memref<1x6x128x128xf32, #tpu.memory_space<vmem>>, vector<1x1x128x128xf32>
    %129 = vector.shape_cast %128 : vector<1x1x128x128xf32> to vector<128x128xf32>
    %cst_62 = arith.constant dense<0.000000e+00> : vector<16x128xf32>
    %130 = tpu.matmul %127, %129, %cst_62 {dimension_numbers = #tpu.dot_dimension_numbers<[1], [0], [0], [1], [0, 0, 1, 1], [], []>} : vector<16x128xf32>, vector<128x128xf32>, vector<16x128xf32> -> vector<16x128xf32>
    %131 = arith.addf %87, %130 : vector<16x128xf32>
    %132 = vector.broadcast %19 : vector<1x128xf32> to vector<16x128xf32>
    %133 = arith.addf %131, %132 : vector<16x128xf32>
    %c0_63 = arith.constant 0 : index
    %c0_64 = arith.constant 0 : index
    %134 = vector.load %arg11[%c0_63, %c0_64] : memref<16x128xf32, #tpu.memory_space<vmem>>, vector<16x128xf32>
    tpu.vector_store %arg11[%c0_63, %c0_64], %133 {strides = array<i32>} : memref<16x128xf32, #tpu.memory_space<vmem>>, vector<16x128xf32>,
    %c1_i32 = arith.constant 1 : i32
    %135 = arith.cmpi eq, %arg1, %c1_i32 : i32
    %136 = arith.extui %135 : i1 to i32
    %c0_i32_65 = arith.constant 0 : i32
    %137 = arith.cmpi ne, %136, %c0_i32_65 : i32
    scf.if %137 {
      %c0_66 = arith.constant 0 : index
      %c0_67 = arith.constant 0 : index
      %138 = vector.load %arg10[%c0_66, %c0_67] : memref<16x128xf32, #tpu.memory_space<vmem>>, vector<16x128xf32>
      tpu.vector_store %arg10[%c0_66, %c0_67], %133 {strides = array<i32>} : memref<16x128xf32, #tpu.memory_space<vmem>>, vector<16x128xf32>,
    } else {
    }
    return
  }
  func.func @transform_0(%arg0: i32, %arg1: i32) -> (i32, i32) {
    %c0_i32 = arith.constant 0 : i32
    %c0_i32_0 = arith.constant 0 : i32
    return %arg0, %c0_i32 : i32, i32
  }
  func.func @transform_1(%arg0: i32, %arg1: i32) -> (i32, i32) {
    %c0_i32 = arith.constant 0 : i32
    %c0_i32_0 = arith.constant 0 : i32
    return %arg0, %c0_i32 : i32, i32
  }
  func.func @transform_2(%arg0: i32, %arg1: i32) -> (i32, i32) {
    %c0_i32 = arith.constant 0 : i32
    %c0_i32_0 = arith.constant 0 : i32
    %c0_i32_1 = arith.constant 0 : i32
    return %c0_i32, %c0_i32_0 : i32, i32
  }
  func.func @transform_3(%arg0: i32, %arg1: i32) -> (i32, i32) {
    %c0_i32 = arith.constant 0 : i32
    %c0_i32_0 = arith.constant 0 : i32
    %c0_i32_1 = arith.constant 0 : i32
    return %c0_i32, %c0_i32_0 : i32, i32
  }
  func.func @transform_4(%arg0: i32, %arg1: i32) -> (i32, i32) {
    %c0_i32 = arith.constant 0 : i32
    %c0_i32_0 = arith.constant 0 : i32
    %c0_i32_1 = arith.constant 0 : i32
    return %c0_i32, %c0_i32_0 : i32, i32
  }
  func.func @transform_5(%arg0: i32, %arg1: i32) -> (i32, i32) {
    %c0_i32 = arith.constant 0 : i32
    %c0_i32_0 = arith.constant 0 : i32
    %c0_i32_1 = arith.constant 0 : i32
    return %c0_i32, %c0_i32_0 : i32, i32
  }
  func.func @transform_6(%arg0: i32, %arg1: i32) -> (i32, i32, i32, i32) {
    %c0_i32 = arith.constant 0 : i32
    %c0_i32_0 = arith.constant 0 : i32
    %c0_i32_1 = arith.constant 0 : i32
    %c0_i32_2 = arith.constant 0 : i32
    return %arg1, %c0_i32, %c0_i32_0, %c0_i32_1 : i32, i32, i32, i32
  }
  func.func @transform_7(%arg0: i32, %arg1: i32) -> (i32, i32, i32) {
    %c0_i32 = arith.constant 0 : i32
    %c0_i32_0 = arith.constant 0 : i32
    %c0_i32_1 = arith.constant 0 : i32
    return %arg1, %c0_i32, %c0_i32_0 : i32, i32, i32
  }
  func.func @transform_8(%arg0: i32, %arg1: i32) -> (i32, i32) {
    %c0_i32 = arith.constant 0 : i32
    %c0_i32_0 = arith.constant 0 : i32
    return %arg0, %c0_i32 : i32, i32
  }
}

module attributes {stable_mosaic.version = 11 : i64} {
  func.func @_decoder_stack_kernel(%arg0: i32, %arg1: memref<4x128xf32, #tpu.memory_space<vmem>>, %arg2: memref<28x128xf32, #tpu.memory_space<vmem>>, %arg3: memref<4x112xf32, #tpu.memory_space<vmem>>, %arg4: memref<112x28xf32, #tpu.memory_space<vmem>>, %arg5: memref<112x128xf32, #tpu.memory_space<vmem>>, %arg6: memref<112x112xf32, #tpu.memory_space<vmem>>, %arg7: memref<1x8x128x128xf32, #tpu.memory_space<vmem>>, %arg8: memref<1x14x128xf32, #tpu.memory_space<vmem>>, %arg9: memref<2x128xf32, #tpu.memory_space<vmem>>, %arg10: memref<4x128xf32, #tpu.memory_space<vmem>>, %arg11: memref<4x128xf32, #tpu.memory_space<vmem>>) attributes {dimension_semantics = [#tpu.dimension_semantics<arbitrary>], iteration_bounds = array<i64: 2>, scalar_prefetch = 0 : i64, scratch_operands = 1 : i64, tpu.core_type = #tpu.core_type<tc>, window_params = [{pipeline_mode = #tpu.pipeline_mode<synchronous>, transform_indices = @transform_0, window_bounds = array<i64: 4, 128>}, {pipeline_mode = #tpu.pipeline_mode<synchronous>, transform_indices = @transform_1, window_bounds = array<i64: 28, 128>}, {pipeline_mode = #tpu.pipeline_mode<synchronous>, transform_indices = @transform_2, window_bounds = array<i64: 4, 112>}, {pipeline_mode = #tpu.pipeline_mode<synchronous>, transform_indices = @transform_3, window_bounds = array<i64: 112, 28>}, {pipeline_mode = #tpu.pipeline_mode<synchronous>, transform_indices = @transform_4, window_bounds = array<i64: 112, 128>}, {pipeline_mode = #tpu.pipeline_mode<synchronous>, transform_indices = @transform_5, window_bounds = array<i64: 112, 112>}, {transform_indices = @transform_6, window_bounds = array<i64: 1, 8, 128, 128>}, {transform_indices = @transform_7, window_bounds = array<i64: 1, 14, 128>}, {pipeline_mode = #tpu.pipeline_mode<synchronous>, transform_indices = @transform_8, window_bounds = array<i64: 2, 128>}, {pipeline_mode = #tpu.pipeline_mode<synchronous>, transform_indices = @transform_9, window_bounds = array<i64: 4, 128>}]} {
    %c0_i32 = arith.constant 0 : i32
    %0 = arith.cmpi eq, %arg0, %c0_i32 : i32
    %1 = arith.extui %0 : i1 to i32
    %c0_i32_0 = arith.constant 0 : i32
    %2 = arith.cmpi ne, %1, %c0_i32_0 : i32
    scf.if %2 {
      %c0_81 = arith.constant 0 : index
      %c0_82 = arith.constant 0 : index
      %176 = vector.load %arg1[%c0_81, %c0_82] : memref<4x128xf32, #tpu.memory_space<vmem>>, vector<4x128xf32>
      %c0_83 = arith.constant 0 : index
      %c0_84 = arith.constant 0 : index
      %177 = vector.load %arg11[%c0_83, %c0_84] : memref<4x128xf32, #tpu.memory_space<vmem>>, vector<4x128xf32>
      tpu.vector_store %arg11[%c0_83, %c0_84], %176 {strides = array<i32>} : memref<4x128xf32, #tpu.memory_space<vmem>>, vector<4x128xf32>,
    } else {
    }
    %c0 = arith.constant 0 : index
    %c0_1 = arith.constant 0 : index
    %3 = vector.load %arg11[%c0, %c0_1] : memref<4x128xf32, #tpu.memory_space<vmem>>, vector<4x128xf32>
    %c0_2 = arith.constant 0 : index
    %c0_3 = arith.constant 0 : index
    %4 = vector.load %arg2[%c0_2, %c0_3] : memref<28x128xf32, #tpu.memory_space<vmem>>, vector<28x128xf32>
    %c0_4 = arith.constant 0 : index
    %c0_5 = arith.constant 0 : index
    %5 = vector.load %arg3[%c0_4, %c0_5] : memref<4x112xf32, #tpu.memory_space<vmem>>, vector<4x112xf32>
    %c0_6 = arith.constant 0 : index
    %c0_7 = arith.constant 0 : index
    %6 = vector.load %arg4[%c0_6, %c0_7] : memref<112x28xf32, #tpu.memory_space<vmem>>, vector<112x28xf32>
    %c0_8 = arith.constant 0 : index
    %c0_9 = arith.constant 0 : index
    %7 = vector.load %arg5[%c0_8, %c0_9] : memref<112x128xf32, #tpu.memory_space<vmem>>, vector<112x128xf32>
    %c0_10 = arith.constant 0 : index
    %c0_11 = arith.constant 0 : index
    %8 = vector.load %arg6[%c0_10, %c0_11] : memref<112x112xf32, #tpu.memory_space<vmem>>, vector<112x112xf32>
    %c0_12 = arith.constant 0 : index
    %c0_13 = arith.constant 0 : index
    %c0_14 = arith.constant 0 : index
    %9 = vector.load %arg8[%c0_12, %c0_13, %c0_14] : memref<1x14x128xf32, #tpu.memory_space<vmem>>, vector<1x14x128xf32>
    %10 = vector.shape_cast %9 : vector<1x14x128xf32> to vector<14x128xf32>
    %11 = vector.extract_strided_slice %10 {offsets = [0, 0], sizes = [1, 128], strides = [1, 1]} : vector<14x128xf32> to vector<1x128xf32>
    %12 = vector.extract_strided_slice %10 {offsets = [1, 0], sizes = [1, 128], strides = [1, 1]} : vector<14x128xf32> to vector<1x128xf32>
    %13 = vector.extract_strided_slice %10 {offsets = [2, 0], sizes = [1, 128], strides = [1, 1]} : vector<14x128xf32> to vector<1x128xf32>
    %14 = vector.extract_strided_slice %10 {offsets = [3, 0], sizes = [1, 128], strides = [1, 1]} : vector<14x128xf32> to vector<1x128xf32>
    %15 = vector.extract_strided_slice %10 {offsets = [4, 0], sizes = [1, 128], strides = [1, 1]} : vector<14x128xf32> to vector<1x128xf32>
    %16 = vector.extract_strided_slice %10 {offsets = [5, 0], sizes = [1, 128], strides = [1, 1]} : vector<14x128xf32> to vector<1x128xf32>
    %17 = vector.extract_strided_slice %10 {offsets = [6, 0], sizes = [1, 128], strides = [1, 1]} : vector<14x128xf32> to vector<1x128xf32>
    %18 = vector.extract_strided_slice %10 {offsets = [7, 0], sizes = [1, 128], strides = [1, 1]} : vector<14x128xf32> to vector<1x128xf32>
    %19 = vector.extract_strided_slice %10 {offsets = [8, 0], sizes = [1, 128], strides = [1, 1]} : vector<14x128xf32> to vector<1x128xf32>
    %20 = vector.extract_strided_slice %10 {offsets = [9, 0], sizes = [1, 128], strides = [1, 1]} : vector<14x128xf32> to vector<1x128xf32>
    %21 = vector.extract_strided_slice %10 {offsets = [10, 0], sizes = [1, 128], strides = [1, 1]} : vector<14x128xf32> to vector<1x128xf32>
    %22 = vector.extract_strided_slice %10 {offsets = [11, 0], sizes = [1, 128], strides = [1, 1]} : vector<14x128xf32> to vector<1x128xf32>
    %23 = vector.extract_strided_slice %10 {offsets = [12, 0], sizes = [1, 128], strides = [1, 1]} : vector<14x128xf32> to vector<1x128xf32>
    %24 = vector.extract_strided_slice %10 {offsets = [13, 0], sizes = [1, 128], strides = [1, 1]} : vector<14x128xf32> to vector<1x128xf32>
    %cst = arith.constant dense<0.000000e+00> : vector<4xf32>
    %25 = vector.multi_reduction <add>, %3, %cst [1] : vector<4x128xf32> to vector<4xf32>
    %26 = vector.shape_cast %25 : vector<4xf32> to vector<4x1xf32>
    %cst_15 = arith.constant 3.125000e-02 : f32
    %27 = vector.broadcast %cst_15 : f32 to vector<4x1xf32>
    %28 = arith.mulf %26, %27 : vector<4x1xf32>
    %29 = arith.mulf %3, %3 : vector<4x128xf32>
    %cst_16 = arith.constant dense<0.000000e+00> : vector<4xf32>
    %30 = vector.multi_reduction <add>, %29, %cst_16 [1] : vector<4x128xf32> to vector<4xf32>
    %31 = vector.shape_cast %30 : vector<4xf32> to vector<4x1xf32>
    %cst_17 = arith.constant 3.125000e-02 : f32
    %32 = vector.broadcast %cst_17 : f32 to vector<4x1xf32>
    %33 = arith.mulf %31, %32 : vector<4x1xf32>
    %34 = arith.mulf %28, %28 : vector<4x1xf32>
    %35 = arith.subf %33, %34 : vector<4x1xf32>
    %36 = vector.broadcast %28 : vector<4x1xf32> to vector<4x128xf32>
    %37 = arith.subf %3, %36 : vector<4x128xf32>
    %cst_18 = arith.constant 9.99999997E-7 : f32
    %38 = vector.broadcast %cst_18 : f32 to vector<4x1xf32>
    %39 = arith.addf %35, %38 : vector<4x1xf32>
    %40 = math.rsqrt %39 : vector<4x1xf32>
    %41 = vector.broadcast %40 : vector<4x1xf32> to vector<4x128xf32>
    %42 = arith.mulf %37, %41 : vector<4x128xf32>
    %43 = vector.broadcast %11 : vector<1x128xf32> to vector<4x128xf32>
    %44 = arith.mulf %42, %43 : vector<4x128xf32>
    %45 = vector.broadcast %12 : vector<1x128xf32> to vector<4x128xf32>
    %46 = arith.addf %44, %45 : vector<4x128xf32>
    %c0_19 = arith.constant 0 : index
    %c0_20 = arith.constant 0 : index
    %c0_21 = arith.constant 0 : index
    %c0_22 = arith.constant 0 : index
    %47 = vector.load %arg7[%c0_19, %c0_20, %c0_21, %c0_22] : memref<1x8x128x128xf32, #tpu.memory_space<vmem>>, vector<1x1x128x128xf32>
    %48 = vector.shape_cast %47 : vector<1x1x128x128xf32> to vector<128x128xf32>
    %cst_23 = arith.constant dense<0.000000e+00> : vector<4x128xf32>
    %49 = tpu.matmul %46, %48, %cst_23 {dimension_numbers = #tpu.dot_dimension_numbers<[1], [0], [0], [1], [0, 0, 1, 1], [], []>} : vector<4x128xf32>, vector<128x128xf32>, vector<4x128xf32> -> vector<4x128xf32>
    %50 = vector.broadcast %13 : vector<1x128xf32> to vector<4x128xf32>
    %51 = arith.addf %49, %50 : vector<4x128xf32>
    %c0_24 = arith.constant 0 : index
    %c1 = arith.constant 1 : index
    %c0_25 = arith.constant 0 : index
    %c0_26 = arith.constant 0 : index
    %52 = vector.load %arg7[%c0_24, %c1, %c0_25, %c0_26] : memref<1x8x128x128xf32, #tpu.memory_space<vmem>>, vector<1x1x128x128xf32>
    %53 = vector.shape_cast %52 : vector<1x1x128x128xf32> to vector<128x128xf32>
    %cst_27 = arith.constant dense<0.000000e+00> : vector<4x128xf32>
    %54 = tpu.matmul %51, %53, %cst_27 {dimension_numbers = #tpu.dot_dimension_numbers<[1], [0], [0], [1], [0, 0, 1, 1], [], []>} : vector<4x128xf32>, vector<128x128xf32>, vector<4x128xf32> -> vector<4x128xf32>
    %55 = vector.broadcast %14 : vector<1x128xf32> to vector<4x128xf32>
    %56 = arith.addf %54, %55 : vector<4x128xf32>
    %57 = arith.addf %56, %3 : vector<4x128xf32>
    %cst_28 = arith.constant dense<0.000000e+00> : vector<4xf32>
    %58 = vector.multi_reduction <add>, %57, %cst_28 [1] : vector<4x128xf32> to vector<4xf32>
    %59 = vector.shape_cast %58 : vector<4xf32> to vector<4x1xf32>
    %cst_29 = arith.constant 3.125000e-02 : f32
    %60 = vector.broadcast %cst_29 : f32 to vector<4x1xf32>
    %61 = arith.mulf %59, %60 : vector<4x1xf32>
    %62 = arith.mulf %57, %57 : vector<4x128xf32>
    %cst_30 = arith.constant dense<0.000000e+00> : vector<4xf32>
    %63 = vector.multi_reduction <add>, %62, %cst_30 [1] : vector<4x128xf32> to vector<4xf32>
    %64 = vector.shape_cast %63 : vector<4xf32> to vector<4x1xf32>
    %cst_31 = arith.constant 3.125000e-02 : f32
    %65 = vector.broadcast %cst_31 : f32 to vector<4x1xf32>
    %66 = arith.mulf %64, %65 : vector<4x1xf32>
    %67 = arith.mulf %61, %61 : vector<4x1xf32>
    %68 = arith.subf %66, %67 : vector<4x1xf32>
    %69 = vector.broadcast %61 : vector<4x1xf32> to vector<4x128xf32>
    %70 = arith.subf %57, %69 : vector<4x128xf32>
    %cst_32 = arith.constant 9.99999997E-7 : f32
    %71 = vector.broadcast %cst_32 : f32 to vector<4x1xf32>
    %72 = arith.addf %68, %71 : vector<4x1xf32>
    %73 = math.rsqrt %72 : vector<4x1xf32>
    %74 = vector.broadcast %73 : vector<4x1xf32> to vector<4x128xf32>
    %75 = arith.mulf %70, %74 : vector<4x128xf32>
    %76 = vector.broadcast %15 : vector<1x128xf32> to vector<4x128xf32>
    %77 = arith.mulf %75, %76 : vector<4x128xf32>
    %78 = vector.broadcast %16 : vector<1x128xf32> to vector<4x128xf32>
    %79 = arith.addf %77, %78 : vector<4x128xf32>
    %c0_33 = arith.constant 0 : index
    %c2 = arith.constant 2 : index
    %c0_34 = arith.constant 0 : index
    %c0_35 = arith.constant 0 : index
    %80 = vector.load %arg7[%c0_33, %c2, %c0_34, %c0_35] : memref<1x8x128x128xf32, #tpu.memory_space<vmem>>, vector<1x1x128x128xf32>
    %81 = vector.shape_cast %80 : vector<1x1x128x128xf32> to vector<128x128xf32>
    %cst_36 = arith.constant dense<0.000000e+00> : vector<4x128xf32>
    %82 = tpu.matmul %79, %81, %cst_36 {dimension_numbers = #tpu.dot_dimension_numbers<[1], [0], [0], [1], [0, 0, 1, 1], [], []>} : vector<4x128xf32>, vector<128x128xf32>, vector<4x128xf32> -> vector<4x128xf32>
    %83 = vector.broadcast %17 : vector<1x128xf32> to vector<4x128xf32>
    %84 = arith.addf %82, %83 : vector<4x128xf32>
    %c0_37 = arith.constant 0 : index
    %c3 = arith.constant 3 : index
    %c0_38 = arith.constant 0 : index
    %c0_39 = arith.constant 0 : index
    %85 = vector.load %arg7[%c0_37, %c3, %c0_38, %c0_39] : memref<1x8x128x128xf32, #tpu.memory_space<vmem>>, vector<1x1x128x128xf32>
    %86 = vector.shape_cast %85 : vector<1x1x128x128xf32> to vector<128x128xf32>
    %cst_40 = arith.constant dense<0.000000e+00> : vector<28x128xf32>
    %87 = tpu.matmul %4, %86, %cst_40 {dimension_numbers = #tpu.dot_dimension_numbers<[1], [0], [0], [1], [0, 0, 1, 1], [], []>} : vector<28x128xf32>, vector<128x128xf32>, vector<28x128xf32> -> vector<28x128xf32>
    %88 = vector.broadcast %18 : vector<1x128xf32> to vector<28x128xf32>
    %89 = arith.addf %87, %88 : vector<28x128xf32>
    %c0_41 = arith.constant 0 : index
    %c4 = arith.constant 4 : index
    %c0_42 = arith.constant 0 : index
    %c0_43 = arith.constant 0 : index
    %90 = vector.load %arg7[%c0_41, %c4, %c0_42, %c0_43] : memref<1x8x128x128xf32, #tpu.memory_space<vmem>>, vector<1x1x128x128xf32>
    %91 = vector.shape_cast %90 : vector<1x1x128x128xf32> to vector<128x128xf32>
    %cst_44 = arith.constant dense<0.000000e+00> : vector<28x128xf32>
    %92 = tpu.matmul %4, %91, %cst_44 {dimension_numbers = #tpu.dot_dimension_numbers<[1], [0], [0], [1], [0, 0, 1, 1], [], []>} : vector<28x128xf32>, vector<128x128xf32>, vector<28x128xf32> -> vector<28x128xf32>
    %93 = vector.broadcast %19 : vector<1x128xf32> to vector<28x128xf32>
    %94 = arith.addf %92, %93 : vector<28x128xf32>
    %cst_45 = arith.constant dense<0.000000e+00> : vector<112x128xf32>
    %95 = tpu.matmul %6, %89, %cst_45 {dimension_numbers = #tpu.dot_dimension_numbers<[1], [0], [0], [1], [0, 0, 1, 1], [], []>} : vector<112x28xf32>, vector<28x128xf32>, vector<112x128xf32> -> vector<112x128xf32>
    %96 = arith.mulf %95, %7 : vector<112x128xf32>
    %cst_46 = arith.constant dense<0.000000e+00> : vector<112x128xf32>
    %97 = tpu.matmul %6, %94, %cst_46 {dimension_numbers = #tpu.dot_dimension_numbers<[1], [0], [0], [1], [0, 0, 1, 1], [], []>} : vector<112x28xf32>, vector<28x128xf32>, vector<112x128xf32> -> vector<112x128xf32>
    %98 = arith.mulf %97, %7 : vector<112x128xf32>
    %cst_47 = arith.constant 0.353553385 : f32
    %99 = vector.broadcast %cst_47 : f32 to vector<4x128xf32>
    %100 = arith.mulf %84, %99 : vector<4x128xf32>
    %cst_48 = arith.constant dense<0.000000e+00> : vector<4x112xf32>
    %101 = tpu.matmul %100, %96, %cst_48 {dimension_numbers = #tpu.dot_dimension_numbers<[1], [1], [0], [0], [0, 0, 1, 0], [], []>} : vector<4x128xf32>, vector<112x128xf32>, vector<4x112xf32> -> vector<4x112xf32>
    %cst_49 = arith.constant 0.000000e+00 : f32
    %102 = vector.broadcast %cst_49 : f32 to vector<4x112xf32>
    %103 = arith.cmpf one, %5, %102 : vector<4x112xf32>
    %cst_50 = arith.constant -9.99999984E+17 : f32
    %104 = vector.broadcast %cst_50 : f32 to vector<4x112xf32>
    %105 = arith.select %103, %104, %101 : vector<4x112xi1>, vector<4x112xf32>
    %cst_51 = arith.constant dense<0xFF800000> : vector<4xf32>
    %106 = vector.multi_reduction <maximumf>, %105, %cst_51 [1] : vector<4x112xf32> to vector<4xf32>
    %107 = vector.shape_cast %106 : vector<4xf32> to vector<4x1xf32>
    %cst_52 = arith.constant 0.000000e+00 : f32
    %108 = vector.broadcast %cst_52 : f32 to vector<4x112xf32>
    %109 = arith.cmpf one, %5, %108 : vector<4x112xf32>
    %110 = vector.broadcast %107 : vector<4x1xf32> to vector<4x112xf32>
    %111 = arith.subf %105, %110 : vector<4x112xf32>
    %112 = math.exp %111 : vector<4x112xf32>
    %cst_53 = arith.constant 0.000000e+00 : f32
    %113 = vector.broadcast %cst_53 : f32 to vector<4x112xf32>
    %114 = arith.select %109, %113, %112 : vector<4x112xi1>, vector<4x112xf32>
    %cst_54 = arith.constant dense<0.000000e+00> : vector<4x112xf32>
    %115 = tpu.matmul %114, %8, %cst_54 {dimension_numbers = #tpu.dot_dimension_numbers<[1], [0], [0], [1], [0, 0, 1, 1], [], []>} : vector<4x112xf32>, vector<112x112xf32>, vector<4x112xf32> -> vector<4x112xf32>
    %cst_55 = arith.constant 1.000000e-30 : f32
    %116 = vector.broadcast %cst_55 : f32 to vector<4x112xf32>
    %117 = arith.maximumf %115, %116 : vector<4x112xf32>
    %118 = arith.divf %114, %117 : vector<4x112xf32>
    %cst_56 = arith.constant dense<0.000000e+00> : vector<4x128xf32>
    %119 = tpu.matmul %118, %98, %cst_56 {dimension_numbers = #tpu.dot_dimension_numbers<[1], [0], [0], [1], [0, 0, 1, 1], [], []>} : vector<4x112xf32>, vector<112x128xf32>, vector<4x128xf32> -> vector<4x128xf32>
    %c0_57 = arith.constant 0 : index
    %c5 = arith.constant 5 : index
    %c0_58 = arith.constant 0 : index
    %c0_59 = arith.constant 0 : index
    %120 = vector.load %arg7[%c0_57, %c5, %c0_58, %c0_59] : memref<1x8x128x128xf32, #tpu.memory_space<vmem>>, vector<1x1x128x128xf32>
    %121 = vector.shape_cast %120 : vector<1x1x128x128xf32> to vector<128x128xf32>
    %cst_60 = arith.constant dense<0.000000e+00> : vector<4x128xf32>
    %122 = tpu.matmul %119, %121, %cst_60 {dimension_numbers = #tpu.dot_dimension_numbers<[1], [0], [0], [1], [0, 0, 1, 1], [], []>} : vector<4x128xf32>, vector<128x128xf32>, vector<4x128xf32> -> vector<4x128xf32>
    %123 = vector.broadcast %20 : vector<1x128xf32> to vector<4x128xf32>
    %124 = arith.addf %122, %123 : vector<4x128xf32>
    %125 = arith.addf %124, %57 : vector<4x128xf32>
    %cst_61 = arith.constant dense<0.000000e+00> : vector<4xf32>
    %126 = vector.multi_reduction <add>, %125, %cst_61 [1] : vector<4x128xf32> to vector<4xf32>
    %127 = vector.shape_cast %126 : vector<4xf32> to vector<4x1xf32>
    %cst_62 = arith.constant 3.125000e-02 : f32
    %128 = vector.broadcast %cst_62 : f32 to vector<4x1xf32>
    %129 = arith.mulf %127, %128 : vector<4x1xf32>
    %130 = arith.mulf %125, %125 : vector<4x128xf32>
    %cst_63 = arith.constant dense<0.000000e+00> : vector<4xf32>
    %131 = vector.multi_reduction <add>, %130, %cst_63 [1] : vector<4x128xf32> to vector<4xf32>
    %132 = vector.shape_cast %131 : vector<4xf32> to vector<4x1xf32>
    %cst_64 = arith.constant 3.125000e-02 : f32
    %133 = vector.broadcast %cst_64 : f32 to vector<4x1xf32>
    %134 = arith.mulf %132, %133 : vector<4x1xf32>
    %135 = arith.mulf %129, %129 : vector<4x1xf32>
    %136 = arith.subf %134, %135 : vector<4x1xf32>
    %137 = vector.broadcast %129 : vector<4x1xf32> to vector<4x128xf32>
    %138 = arith.subf %125, %137 : vector<4x128xf32>
    %cst_65 = arith.constant 9.99999997E-7 : f32
    %139 = vector.broadcast %cst_65 : f32 to vector<4x1xf32>
    %140 = arith.addf %136, %139 : vector<4x1xf32>
    %141 = math.rsqrt %140 : vector<4x1xf32>
    %142 = vector.broadcast %141 : vector<4x1xf32> to vector<4x128xf32>
    %143 = arith.mulf %138, %142 : vector<4x128xf32>
    %144 = vector.broadcast %21 : vector<1x128xf32> to vector<4x128xf32>
    %145 = arith.mulf %143, %144 : vector<4x128xf32>
    %146 = vector.broadcast %22 : vector<1x128xf32> to vector<4x128xf32>
    %147 = arith.addf %145, %146 : vector<4x128xf32>
    %c0_66 = arith.constant 0 : index
    %c6 = arith.constant 6 : index
    %c0_67 = arith.constant 0 : index
    %c0_68 = arith.constant 0 : index
    %148 = vector.load %arg7[%c0_66, %c6, %c0_67, %c0_68] : memref<1x8x128x128xf32, #tpu.memory_space<vmem>>, vector<1x1x128x128xf32>
    %149 = vector.shape_cast %148 : vector<1x1x128x128xf32> to vector<128x128xf32>
    %cst_69 = arith.constant dense<0.000000e+00> : vector<4x128xf32>
    %150 = tpu.matmul %147, %149, %cst_69 {dimension_numbers = #tpu.dot_dimension_numbers<[1], [0], [0], [1], [0, 0, 1, 1], [], []>} : vector<4x128xf32>, vector<128x128xf32>, vector<4x128xf32> -> vector<4x128xf32>
    %151 = vector.broadcast %23 : vector<1x128xf32> to vector<4x128xf32>
    %152 = arith.addf %150, %151 : vector<4x128xf32>
    %cst_70 = arith.constant 5.000000e-01 : f32
    %153 = vector.broadcast %cst_70 : f32 to vector<4x128xf32>
    %154 = arith.mulf %153, %152 : vector<4x128xf32>
    %155 = arith.mulf %152, %152 : vector<4x128xf32>
    %156 = arith.mulf %152, %155 : vector<4x128xf32>
    %cst_71 = arith.constant 4.471500e-02 : f32
    %157 = vector.broadcast %cst_71 : f32 to vector<4x128xf32>
    %158 = arith.mulf %157, %156 : vector<4x128xf32>
    %159 = arith.addf %152, %158 : vector<4x128xf32>
    %cst_72 = arith.constant 0.797884583 : f32
    %160 = vector.broadcast %cst_72 : f32 to vector<4x128xf32>
    %161 = arith.mulf %160, %159 : vector<4x128xf32>
    %162 = math.tanh %161 : vector<4x128xf32>
    %cst_73 = arith.constant 1.000000e+00 : f32
    %163 = vector.broadcast %cst_73 : f32 to vector<4x128xf32>
    %164 = arith.addf %163, %162 : vector<4x128xf32>
    %165 = arith.mulf %154, %164 : vector<4x128xf32>
    %c0_74 = arith.constant 0 : index
    %c7 = arith.constant 7 : index
    %c0_75 = arith.constant 0 : index
    %c0_76 = arith.constant 0 : index
    %166 = vector.load %arg7[%c0_74, %c7, %c0_75, %c0_76] : memref<1x8x128x128xf32, #tpu.memory_space<vmem>>, vector<1x1x128x128xf32>
    %167 = vector.shape_cast %166 : vector<1x1x128x128xf32> to vector<128x128xf32>
    %cst_77 = arith.constant dense<0.000000e+00> : vector<4x128xf32>
    %168 = tpu.matmul %165, %167, %cst_77 {dimension_numbers = #tpu.dot_dimension_numbers<[1], [0], [0], [1], [0, 0, 1, 1], [], []>} : vector<4x128xf32>, vector<128x128xf32>, vector<4x128xf32> -> vector<4x128xf32>
    %169 = arith.addf %125, %168 : vector<4x128xf32>
    %170 = vector.broadcast %24 : vector<1x128xf32> to vector<4x128xf32>
    %171 = arith.addf %169, %170 : vector<4x128xf32>
    %c0_78 = arith.constant 0 : index
    %c0_79 = arith.constant 0 : index
    %172 = vector.load %arg11[%c0_78, %c0_79] : memref<4x128xf32, #tpu.memory_space<vmem>>, vector<4x128xf32>
    tpu.vector_store %arg11[%c0_78, %c0_79], %171 {strides = array<i32>} : memref<4x128xf32, #tpu.memory_space<vmem>>, vector<4x128xf32>,
    %c1_i32 = arith.constant 1 : i32
    %173 = arith.cmpi eq, %arg0, %c1_i32 : i32
    %174 = arith.extui %173 : i1 to i32
    %c0_i32_80 = arith.constant 0 : i32
    %175 = arith.cmpi ne, %174, %c0_i32_80 : i32
    scf.if %175 {
      %c0_81 = arith.constant 0 : index
      %c0_82 = arith.constant 0 : index
      %176 = vector.load %arg9[%c0_81, %c0_82] : memref<2x128xf32, #tpu.memory_space<vmem>>, vector<1x128xf32>
      %c1_83 = arith.constant 1 : index
      %c0_84 = arith.constant 0 : index
      %177 = vector.load %arg9[%c1_83, %c0_84] : memref<2x128xf32, #tpu.memory_space<vmem>>, vector<1x128xf32>
      %cst_85 = arith.constant dense<0.000000e+00> : vector<4xf32>
      %178 = vector.multi_reduction <add>, %171, %cst_85 [1] : vector<4x128xf32> to vector<4xf32>
      %179 = vector.shape_cast %178 : vector<4xf32> to vector<4x1xf32>
      %cst_86 = arith.constant 3.125000e-02 : f32
      %180 = vector.broadcast %cst_86 : f32 to vector<4x1xf32>
      %181 = arith.mulf %179, %180 : vector<4x1xf32>
      %182 = arith.mulf %171, %171 : vector<4x128xf32>
      %cst_87 = arith.constant dense<0.000000e+00> : vector<4xf32>
      %183 = vector.multi_reduction <add>, %182, %cst_87 [1] : vector<4x128xf32> to vector<4xf32>
      %184 = vector.shape_cast %183 : vector<4xf32> to vector<4x1xf32>
      %cst_88 = arith.constant 3.125000e-02 : f32
      %185 = vector.broadcast %cst_88 : f32 to vector<4x1xf32>
      %186 = arith.mulf %184, %185 : vector<4x1xf32>
      %187 = arith.mulf %181, %181 : vector<4x1xf32>
      %188 = arith.subf %186, %187 : vector<4x1xf32>
      %189 = vector.broadcast %181 : vector<4x1xf32> to vector<4x128xf32>
      %190 = arith.subf %171, %189 : vector<4x128xf32>
      %cst_89 = arith.constant 9.99999997E-7 : f32
      %191 = vector.broadcast %cst_89 : f32 to vector<4x1xf32>
      %192 = arith.addf %188, %191 : vector<4x1xf32>
      %193 = math.rsqrt %192 : vector<4x1xf32>
      %194 = vector.broadcast %193 : vector<4x1xf32> to vector<4x128xf32>
      %195 = arith.mulf %190, %194 : vector<4x128xf32>
      %196 = vector.broadcast %176 : vector<1x128xf32> to vector<4x128xf32>
      %197 = arith.mulf %195, %196 : vector<4x128xf32>
      %198 = vector.broadcast %177 : vector<1x128xf32> to vector<4x128xf32>
      %199 = arith.addf %197, %198 : vector<4x128xf32>
      %c0_90 = arith.constant 0 : index
      %c0_91 = arith.constant 0 : index
      %200 = vector.load %arg10[%c0_90, %c0_91] : memref<4x128xf32, #tpu.memory_space<vmem>>, vector<4x128xf32>
      tpu.vector_store %arg10[%c0_90, %c0_91], %199 {strides = array<i32>} : memref<4x128xf32, #tpu.memory_space<vmem>>, vector<4x128xf32>,
    } else {
    }
    return
  }
  func.func @transform_0(%arg0: i32) -> (i32, i32) {
    %c0_i32 = arith.constant 0 : i32
    %c0_i32_0 = arith.constant 0 : i32
    %c0_i32_1 = arith.constant 0 : i32
    return %c0_i32, %c0_i32_0 : i32, i32
  }
  func.func @transform_1(%arg0: i32) -> (i32, i32) {
    %c0_i32 = arith.constant 0 : i32
    %c0_i32_0 = arith.constant 0 : i32
    %c0_i32_1 = arith.constant 0 : i32
    return %c0_i32, %c0_i32_0 : i32, i32
  }
  func.func @transform_2(%arg0: i32) -> (i32, i32) {
    %c0_i32 = arith.constant 0 : i32
    %c0_i32_0 = arith.constant 0 : i32
    %c0_i32_1 = arith.constant 0 : i32
    return %c0_i32, %c0_i32_0 : i32, i32
  }
  func.func @transform_3(%arg0: i32) -> (i32, i32) {
    %c0_i32 = arith.constant 0 : i32
    %c0_i32_0 = arith.constant 0 : i32
    %c0_i32_1 = arith.constant 0 : i32
    return %c0_i32, %c0_i32_0 : i32, i32
  }
  func.func @transform_4(%arg0: i32) -> (i32, i32) {
    %c0_i32 = arith.constant 0 : i32
    %c0_i32_0 = arith.constant 0 : i32
    %c0_i32_1 = arith.constant 0 : i32
    return %c0_i32, %c0_i32_0 : i32, i32
  }
  func.func @transform_5(%arg0: i32) -> (i32, i32) {
    %c0_i32 = arith.constant 0 : i32
    %c0_i32_0 = arith.constant 0 : i32
    %c0_i32_1 = arith.constant 0 : i32
    return %c0_i32, %c0_i32_0 : i32, i32
  }
  func.func @transform_6(%arg0: i32) -> (i32, i32, i32, i32) {
    %c0_i32 = arith.constant 0 : i32
    %c0_i32_0 = arith.constant 0 : i32
    %c0_i32_1 = arith.constant 0 : i32
    %c0_i32_2 = arith.constant 0 : i32
    return %arg0, %c0_i32, %c0_i32_0, %c0_i32_1 : i32, i32, i32, i32
  }
  func.func @transform_7(%arg0: i32) -> (i32, i32, i32) {
    %c0_i32 = arith.constant 0 : i32
    %c0_i32_0 = arith.constant 0 : i32
    %c0_i32_1 = arith.constant 0 : i32
    return %arg0, %c0_i32, %c0_i32_0 : i32, i32, i32
  }
  func.func @transform_8(%arg0: i32) -> (i32, i32) {
    %c0_i32 = arith.constant 0 : i32
    %c0_i32_0 = arith.constant 0 : i32
    %c0_i32_1 = arith.constant 0 : i32
    return %c0_i32, %c0_i32_0 : i32, i32
  }
  func.func @transform_9(%arg0: i32) -> (i32, i32) {
    %c0_i32 = arith.constant 0 : i32
    %c0_i32_0 = arith.constant 0 : i32
    %c0_i32_1 = arith.constant 0 : i32
    return %c0_i32, %c0_i32_0 : i32, i32
  }
}

</mosaic_0001>

<llo_original>
// kernel: _lambda_.2
$region0: #{_lambda_.2}
  #allocation0 [shape = 'u32[]', space=smem, size = 0x4, offset = 0x4, fixed_abs, tag = 'smem constant byte address 0x4 - core index']
  #allocation1 [shape = 'u32[144,128]{1,0:T(1,128)}', space=vmem, size = 0x12000, scoped, tag = 'internal scratch']
  #allocation2 [shape = 'f32[16,128]{1,0:T(8,128)}', space=vmem, size = 0x2000, scoped, tag = 'scratch operand']
  %s0 = inlined_call_operand.vmem [shape: f32[32,128], index: 0, kind: input, shape index: {}]
  %s1 = inlined_call_operand.vmem [shape: f32[32,64], index: 1, kind: input, shape index: {}]
  %s2 = inlined_call_operand.vmem [shape: f32[64,16], index: 2, kind: input, shape index: {}]
  %s3 = inlined_call_operand.vmem [shape: f32[64,128], index: 3, kind: input, shape index: {}]
  %s4 = inlined_call_operand.vmem [shape: f32[64,64], index: 4, kind: input, shape index: {}]
  %s5 = inlined_call_operand.vmem [shape: f32[2,128], index: 5, kind: input, shape index: {}]
  %s6 = inlined_call_operand.vmem [shape: f32[2,6,128,128], index: 6, kind: input, shape index: {}]
  %s7 = inlined_call_operand.vmem [shape: f32[2,10,128], index: 7, kind: input, shape index: {}]
  %s8 = inlined_call_operand.vmem [shape: f32[32,128], index: 8, kind: output, shape index: {}]
  %s9 = sld [smem:[#allocation0]]
  $region73: #{_lambda_.2} parent=0
    _
  %s11 = ssub.s32 1, %s9
  %s12 = scalar_select 0, %s11, %s9
  loop: start=0, step=1, limit=6
  $region2: #{_lambda_.2} parent=0 // loop_pre_header
    _
  $region3: #{_lambda_.2} parent=0 // loop_header
    %s14 = sphi 0, %s18
    %p15 = scmp.ge.s32.totalorder %s14, 6
    %s21 = sphi 0, %s33
    %s22 = sphi 0, %s29
    %s23 = sphi 0, %s21
    %s24 = sphi 0, %s22
    %s25 = sphi 0, %s23
    %s26 = sphi 0, %s24
    %s36 = sphi 0, %s38
    %s39 = sphi 0, %s36
    %s40 = sphi 0, %s39
    %s56 = sphi 0, %s40
    %s62 = sphi 0, %s64
    %s65 = sphi 0, %s62
    %s66 = sphi 0, %s65
    %s82 = sphi 0, %s66
    %s86 = sphi 0, %s86
    %s88 = sphi 0, %s86
    %s89 = sphi 0, %s88
    %s103 = sphi 0, %s89
    %s107 = sphi 0, %s107
    %s109 = sphi 0, %s107
    %s110 = sphi 0, %s109
    %s124 = sphi 0, %s110
    %s128 = sphi 0, %s128
    %s130 = sphi 0, %s128
    %s131 = sphi 0, %s130
    %s145 = sphi 0, %s131
    %s149 = sphi 0, %s149
    %s151 = sphi 0, %s149
    %s152 = sphi 0, %s151
    %s166 = sphi 0, %s152
    %s172 = sphi 0, %s174
    %s175 = sphi 0, %s172
    %s176 = sphi 0, %s175
    %s192 = sphi 0, %s176
    %s198 = sphi 0, %s200
    %s201 = sphi 0, %s198
    %s202 = sphi 0, %s201
    %s218 = sphi 0, %s202
    %s224 = sphi 0, %s226
    %s227 = sphi 0, %s224
    %s228 = sphi 0, %s227
    %s244 = sphi 0, %s228
  $region4: #{_lambda_.2} parent=0 // loop_header_branch
    %17 = sbr.rel (%p15) target = $region8
  $region5: #{_lambda_.2} parent=0 // loop_body
    %s19 = ssub.s32 %s14, 1
    %s20 = ssub.s32 %s14, 2
    %s27 = sadd.s32 1, %s22
    %p28 = scmp.ge.s32.totalorder %s27, 2
    %s29 = scalar_select %p28, 0, %s27
    %s30 = sadd.s32 1, %s21
    %s31 = scalar_select %p28, %s30, %s21
    %p32 = scmp.ge.s32.totalorder %s31, 2
    %s33 = scalar_select %p32, 0, %s31
    %s34 = ssub.s32 %s21, %s33
    %p35 = scmp.eq.s32.totalorder %s34, 0
    %s37 = sadd.s32 %s36, 1
    %s38 = scalar_select %p35, %s36, %s37
    %p41 = pneg %p35
    %p42 = scmp.eq.s32.totalorder %s14, 3
    %p43 = por %p41, %p42
    %p44 = scmp.ne.s32.totalorder %s36, %s39
    %p45 = scmp.eq.s32.totalorder %s14, 0
    %p46 = por %p44, %p45
    %p47 = scmp.ne.s32.totalorder %s36, %s39
    %p48 = scmp.eq.s32.totalorder %s19, 3
    %p49 = por %p47, %p48
    %p50 = scmp.ne.s32.totalorder %s39, %s40
    %p51 = scmp.eq.s32.totalorder %s19, 0
    %p52 = por %p50, %p51
    %p53 = scmp.ne.s32.totalorder %s39, %s40
    %p54 = scmp.eq.s32.totalorder %s20, 3
    %p55 = por %p53, %p54
    %p57 = scmp.ne.s32.totalorder %s40, %s56
    %p58 = scmp.eq.s32.totalorder %s20, 0
    %p59 = por %p57, %p58
    %s60 = ssub.s32 %s21, %s33
    %p61 = scmp.eq.s32.totalorder %s60, 0
    %s63 = sadd.s32 %s62, 1
    %s64 = scalar_select %p61, %s62, %s63
    %p67 = pneg %p61
    %p68 = scmp.eq.s32.totalorder %s14, 3
    %p69 = por %p67, %p68
    %p70 = scmp.ne.s32.totalorder %s62, %s65
    %p71 = scmp.eq.s32.totalorder %s14, 0
    %p72 = por %p70, %p71
    %p73 = scmp.ne.s32.totalorder %s62, %s65
    %p74 = scmp.eq.s32.totalorder %s19, 3
    %p75 = por %p73, %p74
    %p76 = scmp.ne.s32.totalorder %s65, %s66
    %p77 = scmp.eq.s32.totalorder %s19, 0
    %p78 = por %p76, %p77
    %p79 = scmp.ne.s32.totalorder %s65, %s66
    %p80 = scmp.eq.s32.totalorder %s20, 3
    %p81 = por %p79, %p80
    %p83 = scmp.ne.s32.totalorder %s66, %s82
    %p84 = scmp.eq.s32.totalorder %s20, 0
    %p85 = por %p83, %p84
    %s87 = sadd.s32 %s86, 1
    %p90 = scmp.eq.s32.totalorder %s14, 3
    %p91 = scmp.ne.s32.totalorder %s86, %s88
    %p92 = scmp.eq.s32.totalorder %s14, 0
    %p93 = por %p91, %p92
    %p94 = scmp.ne.s32.totalorder %s86, %s88
    %p95 = scmp.eq.s32.totalorder %s19, 3
    %p96 = por %p94, %p95
    %p97 = scmp.ne.s32.totalorder %s88, %s89
    %p98 = scmp.eq.s32.totalorder %s19, 0
    %p99 = por %p97, %p98
    %p100 = scmp.ne.s32.totalorder %s88, %s89
    %p101 = scmp.eq.s32.totalorder %s20, 3
    %p102 = por %p100, %p101
    %p104 = scmp.ne.s32.totalorder %s89, %s103
    %p105 = scmp.eq.s32.totalorder %s20, 0
    %p106 = por %p104, %p105
    %s108 = sadd.s32 %s107, 1
    %p111 = scmp.eq.s32.totalorder %s14, 3
    %p112 = scmp.ne.s32.totalorder %s107, %s109
    %p113 = scmp.eq.s32.totalorder %s14, 0
    %p114 = por %p112, %p113
    %p115 = scmp.ne.s32.totalorder %s107, %s109
    %p116 = scmp.eq.s32.totalorder %s19, 3
    %p117 = por %p115, %p116
    %p118 = scmp.ne.s32.totalorder %s109, %s110
    %p119 = scmp.eq.s32.totalorder %s19, 0
    %p120 = por %p118, %p119
    %p121 = scmp.ne.s32.totalorder %s109, %s110
    %p122 = scmp.eq.s32.totalorder %s20, 3
    %p123 = por %p121, %p122
    %p125 = scmp.ne.s32.totalorder %s110, %s124
    %p126 = scmp.eq.s32.totalorder %s20, 0
    %p127 = por %p125, %p126
    %s129 = sadd.s32 %s128, 1
    %p132 = scmp.eq.s32.totalorder %s14, 3
    %p133 = scmp.ne.s32.totalorder %s128, %s130
    %p134 = scmp.eq.s32.totalorder %s14, 0
    %p135 = por %p133, %p134
    %p136 = scmp.ne.s32.totalorder %s128, %s130
    %p137 = scmp.eq.s32.totalorder %s19, 3
    %p138 = por %p136, %p137
    %p139 = scmp.ne.s32.totalorder %s130, %s131
    %p140 = scmp.eq.s32.totalorder %s19, 0
    %p141 = por %p139, %p140
    %p142 = scmp.ne.s32.totalorder %s130, %s131
    %p143 = scmp.eq.s32.totalorder %s20, 3
    %p144 = por %p142, %p143
    %p146 = scmp.ne.s32.totalorder %s131, %s145
    %p147 = scmp.eq.s32.totalorder %s20, 0
    %p148 = por %p146, %p147
    %s150 = sadd.s32 %s149, 1
    %p153 = scmp.eq.s32.totalorder %s14, 3
    %p154 = scmp.ne.s32.totalorder %s149, %s151
    %p155 = scmp.eq.s32.totalorder %s14, 0
    %p156 = por %p154, %p155
    %p157 = scmp.ne.s32.totalorder %s149, %s151
    %p158 = scmp.eq.s32.totalorder %s19, 3
    %p159 = por %p157, %p158
    %p160 = scmp.ne.s32.totalorder %s151, %s152
    %p161 = scmp.eq.s32.totalorder %s19, 0
    %p162 = por %p160, %p161
    %p163 = scmp.ne.s32.totalorder %s151, %s152
    %p164 = scmp.eq.s32.totalorder %s20, 3
    %p165 = por %p163, %p164
    %p167 = scmp.ne.s32.totalorder %s152, %s166
    %p168 = scmp.eq.s32.totalorder %s20, 0
    %p169 = por %p167, %p168
    %s170 = ssub.s32 %s22, %s29
    %p171 = scmp.eq.s32.totalorder %s170, 0
    %s173 = sadd.s32 %s172, 1
    %s174 = scalar_select %p171, %s172, %s173
    %p177 = pneg %p171
    %p178 = scmp.eq.s32.totalorder %s14, 3
    %p179 = por %p177, %p178
    %p180 = scmp.ne.s32.totalorder %s172, %s175
    %p181 = scmp.eq.s32.totalorder %s14, 0
    %p182 = por %p180, %p181
    %p183 = scmp.ne.s32.totalorder %s172, %s175
    %p184 = scmp.eq.s32.totalorder %s19, 3
    %p185 = por %p183, %p184
    %p186 = scmp.ne.s32.totalorder %s175, %s176
    %p187 = scmp.eq.s32.totalorder %s19, 0
    %p188 = por %p186, %p187
    %p189 = scmp.ne.s32.totalorder %s175, %s176
    %p190 = scmp.eq.s32.totalorder %s20, 3
    %p191 = por %p189, %p190
    %p193 = scmp.ne.s32.totalorder %s176, %s192
    %p194 = scmp.eq.s32.totalorder %s20, 0
    %p195 = por %p193, %p194
    %s196 = ssub.s32 %s22, %s29
    %p197 = scmp.eq.s32.totalorder %s196, 0
    %s199 = sadd.s32 %s198, 1
    %s200 = scalar_select %p197, %s198, %s199
    %p203 = pneg %p197
    %p204 = scmp.eq.s32.totalorder %s14, 3
    %p205 = por %p203, %p204
    %p206 = scmp.ne.s32.totalorder %s198, %s201
    %p207 = scmp.eq.s32.totalorder %s14, 0
    %p208 = por %p206, %p207
    %p209 = scmp.ne.s32.totalorder %s198, %s201
    %p210 = scmp.eq.s32.totalorder %s19, 3
    %p211 = por %p209, %p210
    %p212 = scmp.ne.s32.totalorder %s201, %s202
    %p213 = scmp.eq.s32.totalorder %s19, 0
    %p214 = por %p212, %p213
    %p215 = scmp.ne.s32.totalorder %s201, %s202
    %p216 = scmp.eq.s32.totalorder %s20, 3
    %p217 = por %p215, %p216
    %p219 = scmp.ne.s32.totalorder %s202, %s218
    %p220 = scmp.eq.s32.totalorder %s20, 0
    %p221 = por %p219, %p220
    %s222 = ssub.s32 %s21, %s33
    %p223 = scmp.eq.s32.totalorder %s222, 0
    %s225 = sadd.s32 %s224, 1
    %s226 = scalar_select %p223, %s224, %s225
    %p229 = pneg %p223
    %p230 = scmp.eq.s32.totalorder %s14, 3
    %p231 = por %p229, %p230
    %p232 = scmp.ne.s32.totalorder %s224, %s227
    %p233 = scmp.eq.s32.totalorder %s14, 0
    %p234 = por %p232, %p233
    %p235 = scmp.ne.s32.totalorder %s224, %s227
    %p236 = scmp.eq.s32.totalorder %s19, 3
    %p237 = por %p235, %p236
    %p238 = scmp.ne.s32.totalorder %s227, %s228
    %p239 = scmp.eq.s32.totalorder %s19, 0
    %p240 = por %p238, %p239
    %p241 = scmp.ne.s32.totalorder %s227, %s228
    %p242 = scmp.eq.s32.totalorder %s20, 3
    %p243 = por %p241, %p242
    %p245 = scmp.ne.s32.totalorder %s228, %s244
    %p246 = scmp.eq.s32.totalorder %s20, 0
    %p247 = por %p245, %p246
    %p248 = scmp.le.s32.totalorder 1, %s14
    %p249 = scmp.lt.s32.totalorder %s14, 5
    %p250 = pnand %p248, %p249
    %p251 = pneg %p250
    // Predicated region
    $region9: #{_lambda_.2} parent=5 // pred_check
      _
    $region10: #{_lambda_.2} parent=5 // pred_check_branch
      %253 = sbr.rel (%p250) target = $region12
    $region11: #{_lambda_.2} parent=5 // pred_region
      %s254 = ssub.s32 %s14, 1
      // Predicated region
      $region13: #{_lambda_.2} parent=11 // pred_check
        %p255 = pneg %p99
      $region14: #{_lambda_.2} parent=11 // pred_check_branch
        %257 = sbr.rel (%p255) target = $region16
      $region15: #{_lambda_.2} parent=11 // pred_region
        _
      $region16: #{_lambda_.2} parent=11 // pred_fallthru
        _
      // Predicated region
      $region17: #{_lambda_.2} parent=11 // pred_check
        %p258 = pneg %p120
      $region18: #{_lambda_.2} parent=11 // pred_check_branch
        %260 = sbr.rel (%p258) target = $region20
      $region19: #{_lambda_.2} parent=11 // pred_region
        _
      $region20: #{_lambda_.2} parent=11 // pred_fallthru
        _
      // Predicated region
      $region21: #{_lambda_.2} parent=11 // pred_check
        %p261 = pneg %p141
      $region22: #{_lambda_.2} parent=11 // pred_check_branch
        %263 = sbr.rel (%p261) target = $region24
      $region23: #{_lambda_.2} parent=11 // pred_region
        _
      $region24: #{_lambda_.2} parent=11 // pred_fallthru
        _
      // Predicated region
      $region25: #{_lambda_.2} parent=11 // pred_check
        %p264 = pneg %p162
      $region26: #{_lambda_.2} parent=11 // pred_check_branch
        %266 = sbr.rel (%p264) target = $region28
      $region27: #{_lambda_.2} parent=11 // pred_region
        _
      $region28: #{_lambda_.2} parent=11 // pred_fallthru
        _
    $region12: #{_lambda_.2} parent=5 // pred_fallthru
      _
    %p267 = scmp.lt.s32.totalorder %s14, 4
    // Predicated region
    $region29: #{_lambda_.2} parent=5 // pred_check
      %p268 = pneg %p267
    $region30: #{_lambda_.2} parent=5 // pred_check_branch
      %270 = sbr.rel (%p268) target = $region32
    $region31: #{_lambda_.2} parent=5 // pred_region
      // Predicated region
      $region33: #{_lambda_.2} parent=31 // pred_check
        %p271 = pneg %p46
      $region34: #{_lambda_.2} parent=31 // pred_check_branch
        %273 = sbr.rel (%p271) target = $region36
      $region35: #{_lambda_.2} parent=31 // pred_region
        %s274 = smul.u32 2, %s21
        %p275 = scmp.lt.s32.totalorder %s274, 3
        %s276 = scalar_select %p275, %s274, 3
        %s277 = smul.addr %s276, 8
        %s278 = scalar_lea.vmem %s0, %s277
        %s279 = smul.u32 2, %s21
      $region36: #{_lambda_.2} parent=31 // pred_fallthru
        _
      // Predicated region
      $region37: #{_lambda_.2} parent=31 // pred_check
        %p280 = pneg %p72
      $region38: #{_lambda_.2} parent=31 // pred_check_branch
        %282 = sbr.rel (%p280) target = $region40
      $region39: #{_lambda_.2} parent=31 // pred_region
        %s283 = smul.u32 2, %s21
        %p284 = scmp.lt.s32.totalorder %s283, 3
        %s285 = scalar_select %p284, %s283, 3
        %s286 = smul.addr %s285, 8
        %s287 = scalar_lea.vmem %s1, %s286
        %s288 = smul.u32 2, %s21
      $region40: #{_lambda_.2} parent=31 // pred_fallthru
        _
      // Predicated region
      $region41: #{_lambda_.2} parent=31 // pred_check
        %p289 = pneg %p182
      $region42: #{_lambda_.2} parent=31 // pred_check_branch
        %291 = sbr.rel (%p289) target = $region44
      $region43: #{_lambda_.2} parent=31 // pred_region
        %p292 = scmp.lt.s32.totalorder %s22, 1
        %s293 = scalar_select %p292, %s22, 1
        %s294 = smul.addr %s293, 96
        %s295 = smul.addr %s294, 8
        %s296 = scalar_lea.vmem %s6, %s295
      $region44: #{_lambda_.2} parent=31 // pred_fallthru
        _
      // Predicated region
      $region45: #{_lambda_.2} parent=31 // pred_check
        %p297 = pneg %p208
      $region46: #{_lambda_.2} parent=31 // pred_check_branch
        %299 = sbr.rel (%p297) target = $region48
      $region47: #{_lambda_.2} parent=31 // pred_region
        %p300 = scmp.lt.s32.totalorder %s22, 1
        %s301 = scalar_select %p300, %s22, 1
        %s302 = smul.addr %s301, 2
        %s303 = smul.addr %s302, 8
        %s304 = scalar_lea.vmem %s7, %s303
      $region48: #{_lambda_.2} parent=31 // pred_fallthru
        _
    $region32: #{_lambda_.2} parent=5 // pred_fallthru
      _
    %p305 = scmp.le.s32.totalorder 1, %s14
    %p306 = scmp.lt.s32.totalorder %s14, 5
    %p307 = pnand %p305, %p306
    %p308 = pneg %p307
    // Predicated region
    $region49: #{_lambda_.2} parent=5 // pred_check
      _
    $region50: #{_lambda_.2} parent=5 // pred_check_branch
      %310 = sbr.rel (%p307) target = $region52
    $region51: #{_lambda_.2} parent=5 // pred_region
      %s311 = ssub.s32 %s14, 1
      %s312 = smul.u32 2, %s23
      %p313 = scmp.lt.s32.totalorder %s312, 3
      %s314 = scalar_select %p313, %s312, 3
      %s315 = smul.addr %s314, 8
      %s316 = scalar_lea.vmem %s0, %s315
      %p317 = pneg %p52
      %p318 = pneg %p49
      %s319 = smul.u32 2, %s23
      %p320 = scmp.lt.s32.totalorder %s319, 3
      %s321 = scalar_select %p320, %s319, 3
      %s322 = smul.addr %s321, 8
      %s323 = scalar_lea.vmem %s1, %s322
      %p324 = pneg %p78
      %p325 = pneg %p75
      %p326 = pneg %p99
      %p327 = pneg %p96
      %p328 = pneg %p120
      %p329 = pneg %p117
      %p330 = pneg %p141
      %p331 = pneg %p138
      %p332 = pneg %p162
      %p333 = pneg %p159
      %p334 = scmp.lt.s32.totalorder %s24, 1
      %s335 = scalar_select %p334, %s24, 1
      %s336 = smul.addr %s335, 96
      %s337 = smul.addr %s336, 8
      %s338 = scalar_lea.vmem %s6, %s337
      %p339 = pneg %p188
      %p340 = pneg %p185
      %p341 = scmp.lt.s32.totalorder %s24, 1
      %s342 = scalar_select %p341, %s24, 1
      %s343 = smul.addr %s342, 2
      %s344 = smul.addr %s343, 8
      %s345 = scalar_lea.vmem %s7, %s344
      %p346 = pneg %p214
      %p347 = pneg %p211
      %p348 = pneg %p240
      %p349 = pneg %p237
      %s350 = smul.u32 2, %s23
      %p351 = scmp.lt.s32.totalorder %s350, 3
      %s352 = scalar_select %p351, %s350, 3
      %s353 = smul.addr %s352, 8
      %s354 = scalar_lea.vmem %s8, %s353
      %s355 = smul.u32 2, %s23
      %p356 = scmp.lt.s32.totalorder %s355, 3
      %s357 = scalar_select %p356, %s355, 3
      %s358 = smul.addr %s357, 8
      %s359 = scalar_lea.vmem %s0, %s358
      %s360 = smul.u32 2, %s23
      %s361 = smul.u32 2, %s23
      %p362 = scmp.lt.s32.totalorder %s361, 3
      %s363 = scalar_select %p362, %s361, 3
      %s364 = smul.addr %s363, 8
      %s365 = scalar_lea.vmem %s1, %s364
      %s366 = smul.u32 2, %s23
      %p367 = scmp.lt.s32.totalorder %s24, 1
      %s368 = scalar_select %p367, %s24, 1
      %s369 = smul.addr %s368, 96
      %s370 = smul.addr %s369, 8
      %s371 = scalar_lea.vmem %s6, %s370
      %p372 = scmp.lt.s32.totalorder %s24, 1
      %s373 = scalar_select %p372, %s24, 1
      %s374 = smul.addr %s373, 2
      %s375 = smul.addr %s374, 8
      %s376 = scalar_lea.vmem %s7, %s375
      %s377 = smul.u32 2, %s23
      %p378 = scmp.lt.s32.totalorder %s377, 3
      %s379 = scalar_select %p378, %s377, 3
      %s380 = smul.addr %s379, 8
      %s381 = scalar_lea.vmem %s8, %s380
      %s382 = smul.u32 2, %s23
      %p383 = scmp.eq.s32.totalorder %s24, 0
      // Predicated region
      $region53: #{_lambda_.2} parent=51 // pred_check
        %p384 = pneg %p383
      $region54: #{_lambda_.2} parent=51 // pred_check_branch
        %386 = sbr.rel (%p384) target = $region56
      $region55: #{_lambda_.2} parent=51 // pred_region
        %v387 = vld [vmem:[%s359] sm:$0xff]
        %v388 = vld [vmem:[%s359 + $0x8] sm:$0xff]
        %v389 = vld [vmem:[%s5] sm:$0x1]
        %v390 = vld [vmem:[%s5 + $0x1] sm:$0x1]
        %391 = vadd.xlane.f32.xlu0 %v387
        %v392 = vpop.xlane.xlu0 %391
        %393 = vadd.xlane.f32.xlu0 %v388
        %v394 = vpop.xlane.xlu0 %393
        %v395 = vmul.f32 %v392, 0.03125
        %v396 = vmul.f32 %v394, 0.03125
        %v397 = vmul.f32 %v387, %v387
        %v398 = vmul.f32 %v388, %v388
        %399 = vadd.xlane.f32.xlu0 %v397
        %v400 = vpop.xlane.xlu0 %399
        %401 = vadd.xlane.f32.xlu0 %v398
        %v402 = vpop.xlane.xlu0 %401
        %v403 = vmul.f32 %v400, 0.03125
        %v404 = vmul.f32 %v402, 0.03125
        %v405 = vmul.f32 %v395, %v395
        %v406 = vmul.f32 %v396, %v396
        %v407 = vsub.f32 %v403, %v405
        %v408 = vsub.f32 %v404, %v406
        %v409 = vsub.f32 %v387, %v395
        %v410 = vsub.f32 %v388, %v396
        %v411 = vadd.f32 %v407, 1e-12
        %v412 = vadd.f32 %v408, 1e-12
        %v413 = vrsqrt.pop %v411
        %v414 = vrsqrt.pop %v412
        %v415 = vmul.f32 %v409, %v413
        %v416 = vmul.f32 %v410, %v414
        %v417 = vlaneseq
        %v418 = vshrl.u32 %v417, 7
        %v419 = vsub.s32 0, %v418
        %v420 = vrot.slane %v389, %v419
        %v421 = vmul.f32 %v415, %v420
        %v422 = vmul.f32 %v416, %v420
        %v423 = vlaneseq
        %v424 = vshrl.u32 %v423, 7
        %v425 = vsub.s32 0, %v424
        %v426 = vrot.slane %v390, %v425
        %v427 = vadd.f32 %v421, %v426
        %v428 = vadd.f32 %v422, %v426
        %429 = vst [vmem:[#allocation2] sm:$0xff] %v427
        %430 = vst [vmem:[#allocation2 + $0x8] sm:$0xff] %v428
      $region56: #{_lambda_.2} parent=51 // pred_fallthru
        _
      %v431 = vld [vmem:[#allocation2] sm:$0xff]
      %v432 = vld [vmem:[#allocation2 + $0x8] sm:$0xff]
      %v433 = vld [vmem:[%s365] sm:$0xff]
      %v434 = vld [vmem:[%s365 + $0x8] sm:$0xff]
      %v435 = vld [vmem:[%s2] sm:$0xff]
      %v436 = vld [vmem:[%s2 + $0x8] sm:$0xff]
      %v437 = vld [vmem:[%s2 + $0x10] sm:$0xff]
      %v438 = vld [vmem:[%s2 + $0x18] sm:$0xff]
      %v439 = vld [vmem:[%s2 + $0x20] sm:$0xff]
      %v440 = vld [vmem:[%s2 + $0x28] sm:$0xff]
      %v441 = vld [vmem:[%s2 + $0x30] sm:$0xff]
      %v442 = vld [vmem:[%s2 + $0x38] sm:$0xff]
      %v443 = vld [vmem:[%s3] sm:$0xff]
      %v444 = vld [vmem:[%s3 + $0x8] sm:$0xff]
      %v445 = vld [vmem:[%s3 + $0x10] sm:$0xff]
      %v446 = vld [vmem:[%s3 + $0x18] sm:$0xff]
      %v447 = vld [vmem:[%s3 + $0x20] sm:$0xff]
      %v448 = vld [vmem:[%s3 + $0x28] sm:$0xff]
      %v449 = vld [vmem:[%s3 + $0x30] sm:$0xff]
      %v450 = vld [vmem:[%s3 + $0x38] sm:$0xff]
      %v451 = vld [vmem:[%s4] sm:$0xff]
      %v452 = vld [vmem:[%s4 + $0x8] sm:$0xff]
      %v453 = vld [vmem:[%s4 + $0x10] sm:$0xff]
      %v454 = vld [vmem:[%s4 + $0x18] sm:$0xff]
      %v455 = vld [vmem:[%s4 + $0x20] sm:$0xff]
      %v456 = vld [vmem:[%s4 + $0x28] sm:$0xff]
      %v457 = vld [vmem:[%s4 + $0x30] sm:$0xff]
      %v458 = vld [vmem:[%s4 + $0x38] sm:$0xff]
      %v459 = vld [vmem:[%s376] sm:$0xff]
      %v460 = vld [vmem:[%s376 + $0x8] sm:$0x3]
      %461 = vadd.xlane.f32.xlu0 %v431
      %v462 = vpop.xlane.xlu0 %461
      %463 = vadd.xlane.f32.xlu0 %v432
      %v464 = vpop.xlane.xlu0 %463
      %v465 = vmul.f32 %v462, 0.03125
      %v466 = vmul.f32 %v464, 0.03125
      %v467 = vmul.f32 %v431, %v431
      %v468 = vmul.f32 %v432, %v432
      %469 = vadd.xlane.f32.xlu0 %v467
      %v470 = vpop.xlane.xlu0 %469
      %471 = vadd.xlane.f32.xlu0 %v468
      %v472 = vpop.xlane.xlu0 %471
      %v473 = vmul.f32 %v470, 0.03125
      %v474 = vmul.f32 %v472, 0.03125
      %v475 = vmul.f32 %v465, %v465
      %v476 = vmul.f32 %v466, %v466
      %v477 = vsub.f32 %v473, %v475
      %v478 = vsub.f32 %v474, %v476
      %v479 = vsub.f32 %v431, %v465
      %v480 = vsub.f32 %v432, %v466
      %v481 = vadd.f32 %v477, 1e-12
      %v482 = vadd.f32 %v478, 1e-12
      %v483 = vrsqrt.pop %v481
      %v484 = vrsqrt.pop %v482
      %v485 = vmul.f32 %v479, %v483
      %v486 = vmul.f32 %v480, %v484
      %v487 = vlaneseq
      %v488 = vshrl.u32 %v487, 7
      %v489 = vsub.s32 0, %v488
      %v490 = vrot.slane %v459, %v489
      %v491 = vmul.f32 %v485, %v490
      %v492 = vmul.f32 %v486, %v490
      %v493 = vlaneseq
      %v494 = vshrl.u32 %v493, 7
      %v495 = vsub.s32 1, %v494
      %v496 = vrot.slane %v459, %v495
      %v497 = vadd.f32 %v491, %v496
      %v498 = vadd.f32 %v492, %v496
      %v499 = vld [vmem:[%s371] sm:$0xff]
      %v500 = vld [vmem:[%s371 + $0x8] sm:$0xff]
      %v501 = vld [vmem:[%s371 + $0x10] sm:$0xff]
      %v502 = vld [vmem:[%s371 + $0x18] sm:$0xff]
      %v503 = vld [vmem:[%s371 + $0x20] sm:$0xff]
      %v504 = vld [vmem:[%s371 + $0x28] sm:$0xff]
      %v505 = vld [vmem:[%s371 + $0x30] sm:$0xff]
      %v506 = vld [vmem:[%s371 + $0x38] sm:$0xff]
      %v507 = vld [vmem:[%s371 + $0x40] sm:$0xff]
      %v508 = vld [vmem:[%s371 + $0x48] sm:$0xff]
      %v509 = vld [vmem:[%s371 + $0x50] sm:$0xff]
      %v510 = vld [vmem:[%s371 + $0x58] sm:$0xff]
      %v511 = vld [vmem:[%s371 + $0x60] sm:$0xff]
      %v512 = vld [vmem:[%s371 + $0x68] sm:$0xff]
      %v513 = vld [vmem:[%s371 + $0x70] sm:$0xff]
      %v514 = vld [vmem:[%s371 + $0x78] sm:$0xff]
      %v515 = vlaneseq
      %v516 = vshrl.u32 %v515, 7
      %v517 = vsub.s32 2, %v516
      %v518 = vrot.slane %v459, %v517
      %519 = vmatprep.subr.mxu0 0.0
      %520 = vmatpush1.msra.mxu0 %v514
      %521 = vmatprep.subr.mxu0 0.0
      %522 = vmatpush1.msra.mxu0 %v513
      %523 = vmatprep.subr.mxu0 0.0
      %524 = vmatpush1.msra.mxu0 %v512
      %525 = vmatprep.subr.mxu0 0.0
      %526 = vmatpush1.msra.mxu0 %v511
      %527 = vmatprep.subr.mxu0 0.0
      %528 = vmatpush1.msra.mxu0 %v510
      %529 = vmatprep.subr.mxu0 0.0
      %530 = vmatpush1.msra.mxu0 %v509
      %531 = vmatprep.subr.mxu0 0.0
      %532 = vmatpush1.msra.mxu0 %v508
      %533 = vmatprep.subr.mxu0 0.0
      %534 = vmatpush1.msra.mxu0 %v507
      %535 = vmatprep.subr.mxu0 0.0
      %536 = vmatpush1.msra.mxu0 %v506
      %537 = vmatprep.subr.mxu0 0.0
      %538 = vmatpush1.msra.mxu0 %v505
      %539 = vmatprep.subr.mxu0 0.0
      %540 = vmatpush1.msra.mxu0 %v504
      %541 = vmatprep.subr.mxu0 0.0
      %542 = vmatpush1.msra.mxu0 %v503
      %543 = vmatprep.subr.mxu0 0.0
      %544 = vmatpush1.msra.mxu0 %v502
      %545 = vmatprep.subr.mxu0 0.0
      %546 = vmatpush1.msra.mxu0 %v501
      %547 = vmatprep.subr.mxu0 0.0
      %548 = vmatpush1.msra.mxu0 %v500
      %549 = vmatprep.subr.mxu0 0.0
      %550 = vmatpush1.msra.mxu0 %v499
      %551 = vmatprep.subr.mxu0 0.0
      %552 = vmatpush2.msra.mxu0 0.0
      %553 = vmatprep.subr.mxu0 0.0
      %554 = vmatpush2.msra.mxu0 0.0
      %555 = vmatprep.subr.mxu0 0.0
      %556 = vmatpush2.msra.mxu0 0.0
      %557 = vmatprep.subr.mxu0 0.0
      %558 = vmatpush2.msra.mxu0 0.0
      %559 = vmatprep.subr.mxu0 0.0
      %560 = vmatpush2.msra.mxu0 0.0
      %561 = vmatprep.subr.mxu0 0.0
      %562 = vmatpush2.msra.mxu0 0.0
      %563 = vmatprep.subr.mxu0 0.0
      %564 = vmatpush2.msra.mxu0 0.0
      %565 = vmatprep.subr.mxu0 0.0
      %566 = vmatpush2.msra.mxu0 0.0
      %567 = vmatprep.subr.mxu0 0.0
      %568 = vmatpush2.msra.mxu0 0.0
      %569 = vmatprep.subr.mxu0 0.0
      %570 = vmatpush2.msra.mxu0 0.0
      %571 = vmatprep.subr.mxu0 0.0
      %572 = vmatpush2.msra.mxu0 0.0
      %573 = vmatprep.subr.mxu0 0.0
      %574 = vmatpush2.msra.mxu0 0.0
      %575 = vmatprep.subr.mxu0 0.0
      %576 = vmatpush2.msra.mxu0 0.0
      %577 = vmatprep.subr.mxu0 0.0
      %578 = vmatpush2.msra.mxu0 0.0
      %579 = vmatprep.subr.mxu0 0.0
      %580 = vmatpush2.msra.mxu0 0.0
      %581 = vmatprep.subr.mxu0 0.0
      %582 = vmatpush2.msra.mxu0 0.0
      %583 = vmatprep.mubr.f32.mxu0 0.0
      %584 = vmatmul.mubr.f32.gmra.mxu0 %v497
      %v585 = vpop.f32.mrf.mxu0
      %v586 = vadd.f32 %v518, %v585
      %v587 = vpop.f32.mrf.mxu0
      %588 = vmatprep.mubr.f32.mxu0 0.0
      %589 = vmatmul.mubr.f32.gmra.mxu0 %v498
      %v590 = vpop.f32.mrf.mxu0
      %v591 = vadd.f32 %v518, %v590
      %v592 = vpop.f32.mrf.mxu0
      %593 = vdwg.mxu0
      %s594 = scalar_lea.vmem %s371, 128
      %v595 = vld [vmem:[%s594] sm:$0xff]
      %v596 = vld [vmem:[%s594 + $0x8] sm:$0xff]
      %v597 = vld [vmem:[%s594 + $0x10] sm:$0xff]
      %v598 = vld [vmem:[%s594 + $0x18] sm:$0xff]
      %v599 = vld [vmem:[%s594 + $0x20] sm:$0xff]
      %v600 = vld [vmem:[%s594 + $0x28] sm:$0xff]
      %v601 = vld [vmem:[%s594 + $0x30] sm:$0xff]
      %v602 = vld [vmem:[%s594 + $0x38] sm:$0xff]
      %v603 = vld [vmem:[%s594 + $0x40] sm:$0xff]
      %v604 = vld [vmem:[%s594 + $0x48] sm:$0xff]
      %v605 = vld [vmem:[%s594 + $0x50] sm:$0xff]
      %v606 = vld [vmem:[%s594 + $0x58] sm:$0xff]
      %v607 = vld [vmem:[%s594 + $0x60] sm:$0xff]
      %v608 = vld [vmem:[%s594 + $0x68] sm:$0xff]
      %v609 = vld [vmem:[%s594 + $0x70] sm:$0xff]
      %v610 = vld [vmem:[%s594 + $0x78] sm:$0xff]
      %v611 = vlaneseq
      %v612 = vshrl.u32 %v611, 7
      %v613 = vsub.s32 3, %v612
      %v614 = vrot.slane %v459, %v613
      %615 = vmatprep.subr.mxu0 0.0
      %616 = vmatpush1.msra.mxu0 %v610
      %617 = vmatprep.subr.mxu0 0.0
      %618 = vmatpush1.msra.mxu0 %v609
      %619 = vmatprep.subr.mxu0 0.0
      %620 = vmatpush1.msra.mxu0 %v608
      %621 = vmatprep.subr.mxu0 0.0
      %622 = vmatpush1.msra.mxu0 %v607
      %623 = vmatprep.subr.mxu0 0.0
      %624 = vmatpush1.msra.mxu0 %v606
      %625 = vmatprep.subr.mxu0 0.0
      %626 = vmatpush1.msra.mxu0 %v605
      %627 = vmatprep.subr.mxu0 0.0
      %628 = vmatpush1.msra.mxu0 %v604
      %629 = vmatprep.subr.mxu0 0.0
      %630 = vmatpush1.msra.mxu0 %v603
      %631 = vmatprep.subr.mxu0 0.0
      %632 = vmatpush1.msra.mxu0 %v602
      %633 = vmatprep.subr.mxu0 0.0
      %634 = vmatpush1.msra.mxu0 %v601
      %635 = vmatprep.subr.mxu0 0.0
      %636 = vmatpush1.msra.mxu0 %v600
      %637 = vmatprep.subr.mxu0 0.0
      %638 = vmatpush1.msra.mxu0 %v599
      %639 = vmatprep.subr.mxu0 0.0
      %640 = vmatpush1.msra.mxu0 %v598
      %641 = vmatprep.subr.mxu0 0.0
      %642 = vmatpush1.msra.mxu0 %v597
      %643 = vmatprep.subr.mxu0 0.0
      %644 = vmatpush1.msra.mxu0 %v596
      %645 = vmatprep.subr.mxu0 0.0
      %646 = vmatpush1.msra.mxu0 %v595
      %647 = vmatprep.subr.mxu0 0.0
      %648 = vmatpush2.msra.mxu0 0.0
      %649 = vmatprep.subr.mxu0 0.0
      %650 = vmatpush2.msra.mxu0 0.0
      %651 = vmatprep.subr.mxu0 0.0
      %652 = vmatpush2.msra.mxu0 0.0
      %653 = vmatprep.subr.mxu0 0.0
      %654 = vmatpush2.msra.mxu0 0.0
      %655 = vmatprep.subr.mxu0 0.0
      %656 = vmatpush2.msra.mxu0 0.0
      %657 = vmatprep.subr.mxu0 0.0
      %658 = vmatpush2.msra.mxu0 0.0
      %659 = vmatprep.subr.mxu0 0.0
      %660 = vmatpush2.msra.mxu0 0.0
      %661 = vmatprep.subr.mxu0 0.0
      %662 = vmatpush2.msra.mxu0 0.0
      %663 = vmatprep.subr.mxu0 0.0
      %664 = vmatpush2.msra.mxu0 0.0
      %665 = vmatprep.subr.mxu0 0.0
      %666 = vmatpush2.msra.mxu0 0.0
      %667 = vmatprep.subr.mxu0 0.0
      %668 = vmatpush2.msra.mxu0 0.0
      %669 = vmatprep.subr.mxu0 0.0
      %670 = vmatpush2.msra.mxu0 0.0
      %671 = vmatprep.subr.mxu0 0.0
      %672 = vmatpush2.msra.mxu0 0.0
      %673 = vmatprep.subr.mxu0 0.0
      %674 = vmatpush2.msra.mxu0 0.0
      %675 = vmatprep.subr.mxu0 0.0
      %676 = vmatpush2.msra.mxu0 0.0
      %677 = vmatprep.subr.mxu0 0.0
      %678 = vmatpush2.msra.mxu0 0.0
      %679 = vmatprep.mubr.f32.mxu0 0.0
      %680 = vmatmul.mubr.f32.gmra.mxu0 %v497
      %v681 = vpop.f32.mrf.mxu0
      %v682 = vadd.f32 %v614, %v681
      %v683 = vpop.f32.mrf.mxu0
      %684 = vmatprep.mubr.f32.mxu0 0.0
      %685 = vmatmul.mubr.f32.gmra.mxu0 %v498
      %v686 = vpop.f32.mrf.mxu0
      %v687 = vadd.f32 %v614, %v686
      %v688 = vpop.f32.mrf.mxu0
      %689 = vdwg.mxu0
      %s690 = scalar_lea.vmem %s371, 256
      %v691 = vld [vmem:[%s690] sm:$0xff]
      %v692 = vld [vmem:[%s690 + $0x8] sm:$0xff]
      %v693 = vld [vmem:[%s690 + $0x10] sm:$0xff]
      %v694 = vld [vmem:[%s690 + $0x18] sm:$0xff]
      %v695 = vld [vmem:[%s690 + $0x20] sm:$0xff]
      %v696 = vld [vmem:[%s690 + $0x28] sm:$0xff]
      %v697 = vld [vmem:[%s690 + $0x30] sm:$0xff]
      %v698 = vld [vmem:[%s690 + $0x38] sm:$0xff]
      %v699 = vld [vmem:[%s690 + $0x40] sm:$0xff]
      %v700 = vld [vmem:[%s690 + $0x48] sm:$0xff]
      %v701 = vld [vmem:[%s690 + $0x50] sm:$0xff]
      %v702 = vld [vmem:[%s690 + $0x58] sm:$0xff]
      %v703 = vld [vmem:[%s690 + $0x60] sm:$0xff]
      %v704 = vld [vmem:[%s690 + $0x68] sm:$0xff]
      %v705 = vld [vmem:[%s690 + $0x70] sm:$0xff]
      %v706 = vld [vmem:[%s690 + $0x78] sm:$0xff]
      %v707 = vlaneseq
      %v708 = vshrl.u32 %v707, 7
      %v709 = vsub.s32 4, %v708
      %v710 = vrot.slane %v459, %v709
      %711 = vmatprep.subr.mxu0 0.0
      %712 = vmatpush1.msra.mxu0 %v706
      %713 = vmatprep.subr.mxu0 0.0
      %714 = vmatpush1.msra.mxu0 %v705
      %715 = vmatprep.subr.mxu0 0.0
      %716 = vmatpush1.msra.mxu0 %v704
      %717 = vmatprep.subr.mxu0 0.0
      %718 = vmatpush1.msra.mxu0 %v703
      %719 = vmatprep.subr.mxu0 0.0
      %720 = vmatpush1.msra.mxu0 %v702
      %721 = vmatprep.subr.mxu0 0.0
      %722 = vmatpush1.msra.mxu0 %v701
      %723 = vmatprep.subr.mxu0 0.0
      %724 = vmatpush1.msra.mxu0 %v700
      %725 = vmatprep.subr.mxu0 0.0
      %726 = vmatpush1.msra.mxu0 %v699
      %727 = vmatprep.subr.mxu0 0.0
      %728 = vmatpush1.msra.mxu0 %v698
      %729 = vmatprep.subr.mxu0 0.0
      %730 = vmatpush1.msra.mxu0 %v697
      %731 = vmatprep.subr.mxu0 0.0
      %732 = vmatpush1.msra.mxu0 %v696
      %733 = vmatprep.subr.mxu0 0.0
      %734 = vmatpush1.msra.mxu0 %v695
      %735 = vmatprep.subr.mxu0 0.0
      %736 = vmatpush1.msra.mxu0 %v694
      %737 = vmatprep.subr.mxu0 0.0
      %738 = vmatpush1.msra.mxu0 %v693
      %739 = vmatprep.subr.mxu0 0.0
      %740 = vmatpush1.msra.mxu0 %v692
      %741 = vmatprep.subr.mxu0 0.0
      %742 = vmatpush1.msra.mxu0 %v691
      %743 = vmatprep.subr.mxu0 0.0
      %744 = vmatpush2.msra.mxu0 0.0
      %745 = vmatprep.subr.mxu0 0.0
      %746 = vmatpush2.msra.mxu0 0.0
      %747 = vmatprep.subr.mxu0 0.0
      %748 = vmatpush2.msra.mxu0 0.0
      %749 = vmatprep.subr.mxu0 0.0
      %750 = vmatpush2.msra.mxu0 0.0
      %751 = vmatprep.subr.mxu0 0.0
      %752 = vmatpush2.msra.mxu0 0.0
      %753 = vmatprep.subr.mxu0 0.0
      %754 = vmatpush2.msra.mxu0 0.0
      %755 = vmatprep.subr.mxu0 0.0
      %756 = vmatpush2.msra.mxu0 0.0
      %757 = vmatprep.subr.mxu0 0.0
      %758 = vmatpush2.msra.mxu0 0.0
      %759 = vmatprep.subr.mxu0 0.0
      %760 = vmatpush2.msra.mxu0 0.0
      %761 = vmatprep.subr.mxu0 0.0
      %762 = vmatpush2.msra.mxu0 0.0
      %763 = vmatprep.subr.mxu0 0.0
      %764 = vmatpush2.msra.mxu0 0.0
      %765 = vmatprep.subr.mxu0 0.0
      %766 = vmatpush2.msra.mxu0 0.0
      %767 = vmatprep.subr.mxu0 0.0
      %768 = vmatpush2.msra.mxu0 0.0
      %769 = vmatprep.subr.mxu0 0.0
      %770 = vmatpush2.msra.mxu0 0.0
      %771 = vmatprep.subr.mxu0 0.0
      %772 = vmatpush2.msra.mxu0 0.0
      %773 = vmatprep.subr.mxu0 0.0
      %774 = vmatpush2.msra.mxu0 0.0
      %775 = vmatprep.mubr.f32.mxu0 0.0
      %776 = vmatmul.mubr.f32.gmra.mxu0 %v497
      %v777 = vpop.f32.mrf.mxu0
      %v778 = vadd.f32 %v710, %v777
      %v779 = vpop.f32.mrf.mxu0
      %780 = vmatprep.mubr.f32.mxu0 0.0
      %781 = vmatmul.mubr.f32.gmra.mxu0 %v498
      %v782 = vpop.f32.mrf.mxu0
      %v783 = vadd.f32 %v710, %v782
      %v784 = vpop.f32.mrf.mxu0
      %785 = vdwg.mxu0
      %vm786 = vcmask 130048
      %v788 = vsel %vm786, %v435, 0
      %v791 = vsel %vm786, %v436, 0
      %v794 = vsel %vm786, %v437, 0
      %v797 = vsel %vm786, %v438, 0
      %v800 = vsel %vm786, %v439, 0
      %v803 = vsel %vm786, %v440, 0
      %v806 = vsel %vm786, %v441, 0
      %v809 = vsel %vm786, %v442, 0
      %811 = vmatprep.subr.mxu0 0.0
      %812 = vmatpush1.msra.mxu0 0.0
      %813 = vmatprep.subr.mxu0 0.0
      %814 = vmatpush1.msra.mxu0 0.0
      %815 = vmatprep.subr.mxu0 0.0
      %816 = vmatpush1.msra.mxu0 0.0
      %817 = vmatprep.subr.mxu0 0.0
      %818 = vmatpush1.msra.mxu0 0.0
      %819 = vmatprep.subr.mxu0 0.0
      %820 = vmatpush1.msra.mxu0 0.0
      %821 = vmatprep.subr.mxu0 0.0
      %822 = vmatpush1.msra.mxu0 0.0
      %823 = vmatprep.subr.mxu0 0.0
      %824 = vmatpush1.msra.mxu0 0.0
      %825 = vmatprep.subr.mxu0 0.0
      %826 = vmatpush1.msra.mxu0 0.0
      %827 = vmatprep.subr.mxu0 0.0
      %828 = vmatpush1.msra.mxu0 0.0
      %829 = vmatprep.subr.mxu0 0.0
      %830 = vmatpush1.msra.mxu0 0.0
      %831 = vmatprep.subr.mxu0 0.0
      %832 = vmatpush1.msra.mxu0 0.0
      %833 = vmatprep.subr.mxu0 0.0
      %834 = vmatpush1.msra.mxu0 0.0
      %835 = vmatprep.subr.mxu0 0.0
      %836 = vmatpush1.msra.mxu0 0.0
      %837 = vmatprep.subr.mxu0 0.0
      %838 = vmatpush1.msra.mxu0 0.0
      %839 = vmatprep.subr.mxu0 0.0
      %840 = vmatpush1.msra.mxu0 %v687
      %841 = vmatprep.subr.mxu0 0.0
      %842 = vmatpush1.msra.mxu0 %v682
      %843 = vmatprep.subr.mxu0 0.0
      %844 = vmatpush2.msra.mxu0 0.0
      %845 = vmatprep.subr.mxu0 0.0
      %846 = vmatpush2.msra.mxu0 0.0
      %847 = vmatprep.subr.mxu0 0.0
      %848 = vmatpush2.msra.mxu0 0.0
      %849 = vmatprep.subr.mxu0 0.0
      %850 = vmatpush2.msra.mxu0 0.0
      %851 = vmatprep.subr.mxu0 0.0
      %852 = vmatpush2.msra.mxu0 0.0
      %853 = vmatprep.subr.mxu0 0.0
      %854 = vmatpush2.msra.mxu0 0.0
      %855 = vmatprep.subr.mxu0 0.0
      %856 = vmatpush2.msra.mxu0 0.0
      %857 = vmatprep.subr.mxu0 0.0
      %858 = vmatpush2.msra.mxu0 0.0
      %859 = vmatprep.subr.mxu0 0.0
      %860 = vmatpush2.msra.mxu0 0.0
      %861 = vmatprep.subr.mxu0 0.0
      %862 = vmatpush2.msra.mxu0 0.0
      %863 = vmatprep.subr.mxu0 0.0
      %864 = vmatpush2.msra.mxu0 0.0
      %865 = vmatprep.subr.mxu0 0.0
      %866 = vmatpush2.msra.mxu0 0.0
      %867 = vmatprep.subr.mxu0 0.0
      %868 = vmatpush2.msra.mxu0 0.0
      %869 = vmatprep.subr.mxu0 0.0
      %870 = vmatpush2.msra.mxu0 0.0
      %871 = vmatprep.subr.mxu0 0.0
      %872 = vmatpush2.msra.mxu0 0.0
      %873 = vmatprep.subr.mxu0 0.0
      %874 = vmatpush2.msra.mxu0 0.0
      %875 = vmatprep.mubr.f32.mxu0 0.0
      %876 = vmatmul.mubr.f32.gmra.mxu0 %v788
      %v877 = vpop.f32.mrf.mxu0
      %v878 = vadd.f32 0.0, %v877
      %v879 = vpop.f32.mrf.mxu0
      %880 = vmatprep.mubr.f32.mxu0 0.0
      %881 = vmatmul.mubr.f32.gmra.mxu0 %v791
      %v882 = vpop.f32.mrf.mxu0
      %v883 = vadd.f32 0.0, %v882
      %v884 = vpop.f32.mrf.mxu0
      %885 = vmatprep.mubr.f32.mxu0 0.0
      %886 = vmatmul.mubr.f32.gmra.mxu0 %v794
      %v887 = vpop.f32.mrf.mxu0
      %v888 = vadd.f32 0.0, %v887
      %v889 = vpop.f32.mrf.mxu0
      %890 = vmatprep.mubr.f32.mxu0 0.0
      %891 = vmatmul.mubr.f32.gmra.mxu0 %v797
      %v892 = vpop.f32.mrf.mxu0
      %v893 = vadd.f32 0.0, %v892
      %v894 = vpop.f32.mrf.mxu0
      %895 = vmatprep.mubr.f32.mxu0 0.0
      %896 = vmatmul.mubr.f32.gmra.mxu0 %v800
      %v897 = vpop.f32.mrf.mxu0
      %v898 = vadd.f32 0.0, %v897
      %v899 = vpop.f32.mrf.mxu0
      %900 = vmatprep.mubr.f32.mxu0 0.0
      %901 = vmatmul.mubr.f32.gmra.mxu0 %v803
      %v902 = vpop.f32.mrf.mxu0
      %v903 = vadd.f32 0.0, %v902
      %v904 = vpop.f32.mrf.mxu0
      %905 = vmatprep.mubr.f32.mxu0 0.0
      %906 = vmatmul.mubr.f32.gmra.mxu0 %v806
      %v907 = vpop.f32.mrf.mxu0
      %v908 = vadd.f32 0.0, %v907
      %v909 = vpop.f32.mrf.mxu0
      %910 = vmatprep.mubr.f32.mxu0 0.0
      %911 = vmatmul.mubr.f32.gmra.mxu0 %v809
      %v912 = vpop.f32.mrf.mxu0
      %v913 = vadd.f32 0.0, %v912
      %v914 = vpop.f32.mrf.mxu0
      %915 = vdwg.mxu0
      %v916 = vmul.f32 %v878, %v443
      %v917 = vmul.f32 %v883, %v444
      %v918 = vmul.f32 %v888, %v445
      %v919 = vmul.f32 %v893, %v446
      %v920 = vmul.f32 %v898, %v447
      %v921 = vmul.f32 %v903, %v448
      %v922 = vmul.f32 %v908, %v449
      %v923 = vmul.f32 %v913, %v450
      %924 = vmatprep.subr.mxu0 0.0
      %925 = vmatpush1.msra.mxu0 0.0
      %926 = vmatprep.subr.mxu0 0.0
      %927 = vmatpush1.msra.mxu0 0.0
      %928 = vmatprep.subr.mxu0 0.0
      %929 = vmatpush1.msra.mxu0 0.0
      %930 = vmatprep.subr.mxu0 0.0
      %931 = vmatpush1.msra.mxu0 0.0
      %932 = vmatprep.subr.mxu0 0.0
      %933 = vmatpush1.msra.mxu0 0.0
      %934 = vmatprep.subr.mxu0 0.0
      %935 = vmatpush1.msra.mxu0 0.0
      %936 = vmatprep.subr.mxu0 0.0
      %937 = vmatpush1.msra.mxu0 0.0
      %938 = vmatprep.subr.mxu0 0.0
      %939 = vmatpush1.msra.mxu0 0.0
      %940 = vmatprep.subr.mxu0 0.0
      %941 = vmatpush1.msra.mxu0 0.0
      %942 = vmatprep.subr.mxu0 0.0
      %943 = vmatpush1.msra.mxu0 0.0
      %944 = vmatprep.subr.mxu0 0.0
      %945 = vmatpush1.msra.mxu0 0.0
      %946 = vmatprep.subr.mxu0 0.0
      %947 = vmatpush1.msra.mxu0 0.0
      %948 = vmatprep.subr.mxu0 0.0
      %949 = vmatpush1.msra.mxu0 0.0
      %950 = vmatprep.subr.mxu0 0.0
      %951 = vmatpush1.msra.mxu0 0.0
      %952 = vmatprep.subr.mxu0 0.0
      %953 = vmatpush1.msra.mxu0 %v783
      %954 = vmatprep.subr.mxu0 0.0
      %955 = vmatpush1.msra.mxu0 %v778
      %956 = vmatprep.subr.mxu0 0.0
      %957 = vmatpush2.msra.mxu0 0.0
      %958 = vmatprep.subr.mxu0 0.0
      %959 = vmatpush2.msra.mxu0 0.0
      %960 = vmatprep.subr.mxu0 0.0
      %961 = vmatpush2.msra.mxu0 0.0
      %962 = vmatprep.subr.mxu0 0.0
      %963 = vmatpush2.msra.mxu0 0.0
      %964 = vmatprep.subr.mxu0 0.0
      %965 = vmatpush2.msra.mxu0 0.0
      %966 = vmatprep.subr.mxu0 0.0
      %967 = vmatpush2.msra.mxu0 0.0
      %968 = vmatprep.subr.mxu0 0.0
      %969 = vmatpush2.msra.mxu0 0.0
      %970 = vmatprep.subr.mxu0 0.0
      %971 = vmatpush2.msra.mxu0 0.0
      %972 = vmatprep.subr.mxu0 0.0
      %973 = vmatpush2.msra.mxu0 0.0
      %974 = vmatprep.subr.mxu0 0.0
      %975 = vmatpush2.msra.mxu0 0.0
      %976 = vmatprep.subr.mxu0 0.0
      %977 = vmatpush2.msra.mxu0 0.0
      %978 = vmatprep.subr.mxu0 0.0
      %979 = vmatpush2.msra.mxu0 0.0
      %980 = vmatprep.subr.mxu0 0.0
      %981 = vmatpush2.msra.mxu0 0.0
      %982 = vmatprep.subr.mxu0 0.0
      %983 = vmatpush2.msra.mxu0 0.0
      %984 = vmatprep.subr.mxu0 0.0
      %985 = vmatpush2.msra.mxu0 0.0
      %986 = vmatprep.subr.mxu0 0.0
      %987 = vmatpush2.msra.mxu0 0.0
      %988 = vmatprep.mubr.f32.mxu0 0.0
      %989 = vmatmul.mubr.f32.gmra.mxu0 %v788
      %v990 = vpop.f32.mrf.mxu0
      %v991 = vadd.f32 0.0, %v990
      %v992 = vpop.f32.mrf.mxu0
      %993 = vmatprep.mubr.f32.mxu0 0.0
      %994 = vmatmul.mubr.f32.gmra.mxu0 %v791
      %v995 = vpop.f32.mrf.mxu0
      %v996 = vadd.f32 0.0, %v995
      %v997 = vpop.f32.mrf.mxu0
      %998 = vmatprep.mubr.f32.mxu0 0.0
      %999 = vmatmul.mubr.f32.gmra.mxu0 %v794
      %v1000 = vpop.f32.mrf.mxu0
      %v1001 = vadd.f32 0.0, %v1000
      %v1002 = vpop.f32.mrf.mxu0
      %1003 = vmatprep.mubr.f32.mxu0 0.0
      %1004 = vmatmul.mubr.f32.gmra.mxu0 %v797
      %v1005 = vpop.f32.mrf.mxu0
      %v1006 = vadd.f32 0.0, %v1005
      %v1007 = vpop.f32.mrf.mxu0
      %1008 = vmatprep.mubr.f32.mxu0 0.0
      %1009 = vmatmul.mubr.f32.gmra.mxu0 %v800
      %v1010 = vpop.f32.mrf.mxu0
      %v1011 = vadd.f32 0.0, %v1010
      %v1012 = vpop.f32.mrf.mxu0
      %1013 = vmatprep.mubr.f32.mxu0 0.0
      %1014 = vmatmul.mubr.f32.gmra.mxu0 %v803
      %v1015 = vpop.f32.mrf.mxu0
      %v1016 = vadd.f32 0.0, %v1015
      %v1017 = vpop.f32.mrf.mxu0
      %1018 = vmatprep.mubr.f32.mxu0 0.0
      %1019 = vmatmul.mubr.f32.gmra.mxu0 %v806
      %v1020 = vpop.f32.mrf.mxu0
      %v1021 = vadd.f32 0.0, %v1020
      %v1022 = vpop.f32.mrf.mxu0
      %1023 = vmatprep.mubr.f32.mxu0 0.0
      %1024 = vmatmul.mubr.f32.gmra.mxu0 %v809
      %v1025 = vpop.f32.mrf.mxu0
      %v1026 = vadd.f32 0.0, %v1025
      %v1027 = vpop.f32.mrf.mxu0
      %1028 = vdwg.mxu0
      %v1029 = vmul.f32 %v991, %v443
      %v1030 = vmul.f32 %v996, %v444
      %v1031 = vmul.f32 %v1001, %v445
      %v1032 = vmul.f32 %v1006, %v446
      %v1033 = vmul.f32 %v1011, %v447
      %v1034 = vmul.f32 %v1016, %v448
      %v1035 = vmul.f32 %v1021, %v449
      %v1036 = vmul.f32 %v1026, %v450
      %v1037 = vmul.f32 %v586, 0.35355338
      %v1038 = vmul.f32 %v591, 0.35355338
      %1039 = vmatprep.subr.mxu0 0.0
      %1040 = vmatpush1.xpose.msra.mxu0 0.0
      %1041 = vmatprep.subr.mxu0 0.0
      %1042 = vmatpush1.xpose.msra.mxu0 0.0
      %1043 = vmatprep.subr.mxu0 0.0
      %1044 = vmatpush1.xpose.msra.mxu0 0.0
      %1045 = vmatprep.subr.mxu0 0.0
      %1046 = vmatpush1.xpose.msra.mxu0 0.0
      %1047 = vmatprep.subr.mxu0 0.0
      %1048 = vmatpush1.xpose.msra.mxu0 0.0
      %1049 = vmatprep.subr.mxu0 0.0
      %1050 = vmatpush1.xpose.msra.mxu0 0.0
      %1051 = vmatprep.subr.mxu0 0.0
      %1052 = vmatpush1.xpose.msra.mxu0 0.0
      %1053 = vmatprep.subr.mxu0 0.0
      %1054 = vmatpush1.xpose.msra.mxu0 0.0
      %1055 = vmatprep.subr.mxu0 0.0
      %1056 = vmatpush1.xpose.msra.mxu0 %v923
      %1057 = vmatprep.subr.mxu0 0.0
      %1058 = vmatpush1.xpose.msra.mxu0 %v922
      %1059 = vmatprep.subr.mxu0 0.0
      %1060 = vmatpush1.xpose.msra.mxu0 %v921
      %1061 = vmatprep.subr.mxu0 0.0
      %1062 = vmatpush1.xpose.msra.mxu0 %v920
      %1063 = vmatprep.subr.mxu0 0.0
      %1064 = vmatpush1.xpose.msra.mxu0 %v919
      %1065 = vmatprep.subr.mxu0 0.0
      %1066 = vmatpush1.xpose.msra.mxu0 %v918
      %1067 = vmatprep.subr.mxu0 0.0
      %1068 = vmatpush1.xpose.msra.mxu0 %v917
      %1069 = vmatprep.subr.mxu0 0.0
      %1070 = vmatpush1.xpose.msra.mxu0 %v916
      %1071 = vmatprep.subr.mxu0 0.0
      %1072 = vmatpush2.xpose.msra.mxu0 0.0
      %1073 = vmatprep.subr.mxu0 0.0
      %1074 = vmatpush2.xpose.msra.mxu0 0.0
      %1075 = vmatprep.subr.mxu0 0.0
      %1076 = vmatpush2.xpose.msra.mxu0 0.0
      %1077 = vmatprep.subr.mxu0 0.0
      %1078 = vmatpush2.xpose.msra.mxu0 0.0
      %1079 = vmatprep.subr.mxu0 0.0
      %1080 = vmatpush2.xpose.msra.mxu0 0.0
      %1081 = vmatprep.subr.mxu0 0.0
      %1082 = vmatpush2.xpose.msra.mxu0 0.0
      %1083 = vmatprep.subr.mxu0 0.0
      %1084 = vmatpush2.xpose.msra.mxu0 0.0
      %1085 = vmatprep.subr.mxu0 0.0
      %1086 = vmatpush2.xpose.msra.mxu0 0.0
      %1087 = vmatprep.subr.mxu0 0.0
      %1088 = vmatpush2.xpose.msra.mxu0 0.0
      %1089 = vmatprep.subr.mxu0 0.0
      %1090 = vmatpush2.xpose.msra.mxu0 0.0
      %1091 = vmatprep.subr.mxu0 0.0
      %1092 = vmatpush2.xpose.msra.mxu0 0.0
      %1093 = vmatprep.subr.mxu0 0.0
      %1094 = vmatpush2.xpose.msra.mxu0 0.0
      %1095 = vmatprep.subr.mxu0 0.0
      %1096 = vmatpush2.xpose.msra.mxu0 0.0
      %1097 = vmatprep.subr.mxu0 0.0
      %1098 = vmatpush2.xpose.msra.mxu0 0.0
      %1099 = vmatprep.subr.mxu0 0.0
      %1100 = vmatpush2.xpose.msra.mxu0 0.0
      %1101 = vmatprep.subr.mxu0 0.0
      %1102 = vmatpush2.xpose.msra.mxu0 0.0
      %1103 = vmatprep.mubr.f32.mxu0 0.0
      %1104 = vmatmul.mubr.f32.gmra.mxu0 %v1037
      %v1105 = vpop.f32.mrf.mxu0
      %v1106 = vadd.f32 0.0, %v1105
      %v1107 = vpop.f32.mrf.mxu0
      %1108 = vmatprep.mubr.f32.mxu0 0.0
      %1109 = vmatmul.mubr.f32.gmra.mxu0 %v1038
      %v1110 = vpop.f32.mrf.mxu0
      %v1111 = vadd.f32 0.0, %v1110
      %v1112 = vpop.f32.mrf.mxu0
      %1113 = vdwg.mxu0
      %vm1114 = vcmp.ne.f32.partialorder %v433, 0.0
      %vm1115 = vcmp.ne.f32.partialorder %v434, 0.0
      %v1116 = vsel %vm1114, -1e+18, %v1106
      %v1117 = vsel %vm1115, -1e+18, %v1111
      %vm1118 = vcmask 523264
      %v1119 = vsel %vm1118, %v1116, -inf
      %1120 = vmax.xlane.f32.xlu0 %v1119
      %v1121 = vpop.xlane.xlu0 %1120
      %v1122 = vsel %vm1118, %v1117, -inf
      %1123 = vmax.xlane.f32.xlu0 %v1122
      %v1124 = vpop.xlane.xlu0 %1123
      %v1125 = vsub.f32 %v1116, %v1121
      %v1126 = vsub.f32 %v1117, %v1124
      %v1127 = vmul.f32 %v1125, 1.442695
      %v1128 = vpow.pop %v1127
      %v1129 = vmul.f32 %v1126, 1.442695
      %v1130 = vpow.pop %v1129
      %v1131 = vsel %vm1114, 0.0, %v1128
      %v1132 = vsel %vm1115, 0.0, %v1130
      %v1134 = vsel %vm1118, %v1131, 0
      %v1137 = vsel %vm1118, %v1132, 0
      %1139 = vmatprep.subr.mxu0 0.0
      %1140 = vmatpush1.msra.mxu0 0.0
      %1141 = vmatprep.subr.mxu0 0.0
      %1142 = vmatpush1.msra.mxu0 0.0
      %1143 = vmatprep.subr.mxu0 0.0
      %1144 = vmatpush1.msra.mxu0 0.0
      %1145 = vmatprep.subr.mxu0 0.0
      %1146 = vmatpush1.msra.mxu0 0.0
      %1147 = vmatprep.subr.mxu0 0.0
      %1148 = vmatpush1.msra.mxu0 0.0
      %1149 = vmatprep.subr.mxu0 0.0
      %1150 = vmatpush1.msra.mxu0 0.0
      %1151 = vmatprep.subr.mxu0 0.0
      %1152 = vmatpush1.msra.mxu0 0.0
      %1153 = vmatprep.subr.mxu0 0.0
      %1154 = vmatpush1.msra.mxu0 0.0
      %1155 = vmatprep.subr.mxu0 0.0
      %1156 = vmatpush1.msra.mxu0 %v458
      %1157 = vmatprep.subr.mxu0 0.0
      %1158 = vmatpush1.msra.mxu0 %v457
      %1159 = vmatprep.subr.mxu0 0.0
      %1160 = vmatpush1.msra.mxu0 %v456
      %1161 = vmatprep.subr.mxu0 0.0
      %1162 = vmatpush1.msra.mxu0 %v455
      %1163 = vmatprep.subr.mxu0 0.0
      %1164 = vmatpush1.msra.mxu0 %v454
      %1165 = vmatprep.subr.mxu0 0.0
      %1166 = vmatpush1.msra.mxu0 %v453
      %1167 = vmatprep.subr.mxu0 0.0
      %1168 = vmatpush1.msra.mxu0 %v452
      %1169 = vmatprep.subr.mxu0 0.0
      %1170 = vmatpush1.msra.mxu0 %v451
      %1171 = vmatprep.subr.mxu0 0.0
      %1172 = vmatpush2.msra.mxu0 0.0
      %1173 = vmatprep.subr.mxu0 0.0
      %1174 = vmatpush2.msra.mxu0 0.0
      %1175 = vmatprep.subr.mxu0 0.0
      %1176 = vmatpush2.msra.mxu0 0.0
      %1177 = vmatprep.subr.mxu0 0.0
      %1178 = vmatpush2.msra.mxu0 0.0
      %1179 = vmatprep.subr.mxu0 0.0
      %1180 = vmatpush2.msra.mxu0 0.0
      %1181 = vmatprep.subr.mxu0 0.0
      %1182 = vmatpush2.msra.mxu0 0.0
      %1183 = vmatprep.subr.mxu0 0.0
      %1184 = vmatpush2.msra.mxu0 0.0
      %1185 = vmatprep.subr.mxu0 0.0
      %1186 = vmatpush2.msra.mxu0 0.0
      %1187 = vmatprep.subr.mxu0 0.0
      %1188 = vmatpush2.msra.mxu0 0.0
      %1189 = vmatprep.subr.mxu0 0.0
      %1190 = vmatpush2.msra.mxu0 0.0
      %1191 = vmatprep.subr.mxu0 0.0
      %1192 = vmatpush2.msra.mxu0 0.0
      %1193 = vmatprep.subr.mxu0 0.0
      %1194 = vmatpush2.msra.mxu0 0.0
      %1195 = vmatprep.subr.mxu0 0.0
      %1196 = vmatpush2.msra.mxu0 0.0
      %1197 = vmatprep.subr.mxu0 0.0
      %1198 = vmatpush2.msra.mxu0 0.0
      %1199 = vmatprep.subr.mxu0 0.0
      %1200 = vmatpush2.msra.mxu0 0.0
      %1201 = vmatprep.subr.mxu0 0.0
      %1202 = vmatpush2.msra.mxu0 0.0
      %1203 = vmatprep.mubr.f32.mxu0 0.0
      %1204 = vmatmul.mubr.f32.gmra.mxu0 %v1134
      %v1205 = vpop.f32.mrf.mxu0
      %v1206 = vadd.f32 0.0, %v1205
      %v1207 = vpop.f32.mrf.mxu0
      %1208 = vmatprep.mubr.f32.mxu0 0.0
      %1209 = vmatmul.mubr.f32.gmra.mxu0 %v1137
      %v1210 = vpop.f32.mrf.mxu0
      %v1211 = vadd.f32 0.0, %v1210
      %v1212 = vpop.f32.mrf.mxu0
      %1213 = vdwg.mxu0
      %v1214 = vmax.f32 %v1206, 1e-30
      %v1215 = vmax.f32 %v1211, 1e-30
      %v1216 = vrcp.pop %v1214
      %v1217 = vmul.f32 %v1131, %v1216
      %v1218 = vrcp.pop %v1215
      %v1219 = vmul.f32 %v1132, %v1218
      %v1221 = vsel %vm1118, %v1217, 0
      %v1224 = vsel %vm1118, %v1219, 0
      %1226 = vmatprep.subr.mxu0 0.0
      %1227 = vmatpush1.msra.mxu0 0.0
      %1228 = vmatprep.subr.mxu0 0.0
      %1229 = vmatpush1.msra.mxu0 0.0
      %1230 = vmatprep.subr.mxu0 0.0
      %1231 = vmatpush1.msra.mxu0 0.0
      %1232 = vmatprep.subr.mxu0 0.0
      %1233 = vmatpush1.msra.mxu0 0.0
      %1234 = vmatprep.subr.mxu0 0.0
      %1235 = vmatpush1.msra.mxu0 0.0
      %1236 = vmatprep.subr.mxu0 0.0
      %1237 = vmatpush1.msra.mxu0 0.0
      %1238 = vmatprep.subr.mxu0 0.0
      %1239 = vmatpush1.msra.mxu0 0.0
      %1240 = vmatprep.subr.mxu0 0.0
      %1241 = vmatpush1.msra.mxu0 0.0
      %1242 = vmatprep.subr.mxu0 0.0
      %1243 = vmatpush1.msra.mxu0 %v1036
      %1244 = vmatprep.subr.mxu0 0.0
      %1245 = vmatpush1.msra.mxu0 %v1035
      %1246 = vmatprep.subr.mxu0 0.0
      %1247 = vmatpush1.msra.mxu0 %v1034
      %1248 = vmatprep.subr.mxu0 0.0
      %1249 = vmatpush1.msra.mxu0 %v1033
      %1250 = vmatprep.subr.mxu0 0.0
      %1251 = vmatpush1.msra.mxu0 %v1032
      %1252 = vmatprep.subr.mxu0 0.0
      %1253 = vmatpush1.msra.mxu0 %v1031
      %1254 = vmatprep.subr.mxu0 0.0
      %1255 = vmatpush1.msra.mxu0 %v1030
      %1256 = vmatprep.subr.mxu0 0.0
      %1257 = vmatpush1.msra.mxu0 %v1029
      %1258 = vmatprep.subr.mxu0 0.0
      %1259 = vmatpush2.msra.mxu0 0.0
      %1260 = vmatprep.subr.mxu0 0.0
      %1261 = vmatpush2.msra.mxu0 0.0
      %1262 = vmatprep.subr.mxu0 0.0
      %1263 = vmatpush2.msra.mxu0 0.0
      %1264 = vmatprep.subr.mxu0 0.0
      %1265 = vmatpush2.msra.mxu0 0.0
      %1266 = vmatprep.subr.mxu0 0.0
      %1267 = vmatpush2.msra.mxu0 0.0
      %1268 = vmatprep.subr.mxu0 0.0
      %1269 = vmatpush2.msra.mxu0 0.0
      %1270 = vmatprep.subr.mxu0 0.0
      %1271 = vmatpush2.msra.mxu0 0.0
      %1272 = vmatprep.subr.mxu0 0.0
      %1273 = vmatpush2.msra.mxu0 0.0
      %1274 = vmatprep.subr.mxu0 0.0
      %1275 = vmatpush2.msra.mxu0 0.0
      %1276 = vmatprep.subr.mxu0 0.0
      %1277 = vmatpush2.msra.mxu0 0.0
      %1278 = vmatprep.subr.mxu0 0.0
      %1279 = vmatpush2.msra.mxu0 0.0
      %1280 = vmatprep.subr.mxu0 0.0
      %1281 = vmatpush2.msra.mxu0 0.0
      %1282 = vmatprep.subr.mxu0 0.0
      %1283 = vmatpush2.msra.mxu0 0.0
      %1284 = vmatprep.subr.mxu0 0.0
      %1285 = vmatpush2.msra.mxu0 0.0
      %1286 = vmatprep.subr.mxu0 0.0
      %1287 = vmatpush2.msra.mxu0 0.0
      %1288 = vmatprep.subr.mxu0 0.0
      %1289 = vmatpush2.msra.mxu0 0.0
      %1290 = vmatprep.mubr.f32.mxu0 0.0
      %1291 = vmatmul.mubr.f32.gmra.mxu0 %v1221
      %v1292 = vpop.f32.mrf.mxu0
      %v1293 = vadd.f32 0.0, %v1292
      %v1294 = vpop.f32.mrf.mxu0
      %1295 = vmatprep.mubr.f32.mxu0 0.0
      %1296 = vmatmul.mubr.f32.gmra.mxu0 %v1224
      %v1297 = vpop.f32.mrf.mxu0
      %v1298 = vadd.f32 0.0, %v1297
      %v1299 = vpop.f32.mrf.mxu0
      %1300 = vdwg.mxu0
      %s1301 = scalar_lea.vmem %s371, 384
      %v1302 = vld [vmem:[%s1301] sm:$0xff]
      %v1303 = vld [vmem:[%s1301 + $0x8] sm:$0xff]
      %v1304 = vld [vmem:[%s1301 + $0x10] sm:$0xff]
      %v1305 = vld [vmem:[%s1301 + $0x18] sm:$0xff]
      %v1306 = vld [vmem:[%s1301 + $0x20] sm:$0xff]
      %v1307 = vld [vmem:[%s1301 + $0x28] sm:$0xff]
      %v1308 = vld [vmem:[%s1301 + $0x30] sm:$0xff]
      %v1309 = vld [vmem:[%s1301 + $0x38] sm:$0xff]
      %v1310 = vld [vmem:[%s1301 + $0x40] sm:$0xff]
      %v1311 = vld [vmem:[%s1301 + $0x48] sm:$0xff]
      %v1312 = vld [vmem:[%s1301 + $0x50] sm:$0xff]
      %v1313 = vld [vmem:[%s1301 + $0x58] sm:$0xff]
      %v1314 = vld [vmem:[%s1301 + $0x60] sm:$0xff]
      %v1315 = vld [vmem:[%s1301 + $0x68] sm:$0xff]
      %v1316 = vld [vmem:[%s1301 + $0x70] sm:$0xff]
      %v1317 = vld [vmem:[%s1301 + $0x78] sm:$0xff]
      %1318 = vmatprep.subr.mxu0 0.0
      %1319 = vmatpush1.msra.mxu0 %v1317
      %1320 = vmatprep.subr.mxu0 0.0
      %1321 = vmatpush1.msra.mxu0 %v1316
      %1322 = vmatprep.subr.mxu0 0.0
      %1323 = vmatpush1.msra.mxu0 %v1315
      %1324 = vmatprep.subr.mxu0 0.0
      %1325 = vmatpush1.msra.mxu0 %v1314
      %1326 = vmatprep.subr.mxu0 0.0
      %1327 = vmatpush1.msra.mxu0 %v1313
      %1328 = vmatprep.subr.mxu0 0.0
      %1329 = vmatpush1.msra.mxu0 %v1312
      %1330 = vmatprep.subr.mxu0 0.0
      %1331 = vmatpush1.msra.mxu0 %v1311
      %1332 = vmatprep.subr.mxu0 0.0
      %1333 = vmatpush1.msra.mxu0 %v1310
      %1334 = vmatprep.subr.mxu0 0.0
      %1335 = vmatpush1.msra.mxu0 %v1309
      %1336 = vmatprep.subr.mxu0 0.0
      %1337 = vmatpush1.msra.mxu0 %v1308
      %1338 = vmatprep.subr.mxu0 0.0
      %1339 = vmatpush1.msra.mxu0 %v1307
      %1340 = vmatprep.subr.mxu0 0.0
      %1341 = vmatpush1.msra.mxu0 %v1306
      %1342 = vmatprep.subr.mxu0 0.0
      %1343 = vmatpush1.msra.mxu0 %v1305
      %1344 = vmatprep.subr.mxu0 0.0
      %1345 = vmatpush1.msra.mxu0 %v1304
      %1346 = vmatprep.subr.mxu0 0.0
      %1347 = vmatpush1.msra.mxu0 %v1303
      %1348 = vmatprep.subr.mxu0 0.0
      %1349 = vmatpush1.msra.mxu0 %v1302
      %1350 = vmatprep.subr.mxu0 0.0
      %1351 = vmatpush2.msra.mxu0 0.0
      %1352 = vmatprep.subr.mxu0 0.0
      %1353 = vmatpush2.msra.mxu0 0.0
      %1354 = vmatprep.subr.mxu0 0.0
      %1355 = vmatpush2.msra.mxu0 0.0
      %1356 = vmatprep.subr.mxu0 0.0
      %1357 = vmatpush2.msra.mxu0 0.0
      %1358 = vmatprep.subr.mxu0 0.0
      %1359 = vmatpush2.msra.mxu0 0.0
      %1360 = vmatprep.subr.mxu0 0.0
      %1361 = vmatpush2.msra.mxu0 0.0
      %1362 = vmatprep.subr.mxu0 0.0
      %1363 = vmatpush2.msra.mxu0 0.0
      %1364 = vmatprep.subr.mxu0 0.0
      %1365 = vmatpush2.msra.mxu0 0.0
      %1366 = vmatprep.subr.mxu0 0.0
      %1367 = vmatpush2.msra.mxu0 0.0
      %1368 = vmatprep.subr.mxu0 0.0
      %1369 = vmatpush2.msra.mxu0 0.0
      %1370 = vmatprep.subr.mxu0 0.0
      %1371 = vmatpush2.msra.mxu0 0.0
      %1372 = vmatprep.subr.mxu0 0.0
      %1373 = vmatpush2.msra.mxu0 0.0
      %1374 = vmatprep.subr.mxu0 0.0
      %1375 = vmatpush2.msra.mxu0 0.0
      %1376 = vmatprep.subr.mxu0 0.0
      %1377 = vmatpush2.msra.mxu0 0.0
      %1378 = vmatprep.subr.mxu0 0.0
      %1379 = vmatpush2.msra.mxu0 0.0
      %1380 = vmatprep.subr.mxu0 0.0
      %1381 = vmatpush2.msra.mxu0 0.0
      %1382 = vmatprep.mubr.f32.mxu0 0.0
      %1383 = vmatmul.mubr.f32.gmra.mxu0 %v1293
      %v1384 = vpop.f32.mrf.mxu0
      %v1385 = vadd.f32 0.0, %v1384
      %v1386 = vpop.f32.mrf.mxu0
      %1387 = vmatprep.mubr.f32.mxu0 0.0
      %1388 = vmatmul.mubr.f32.gmra.mxu0 %v1298
      %v1389 = vpop.f32.mrf.mxu0
      %v1390 = vadd.f32 0.0, %v1389
      %v1391 = vpop.f32.mrf.mxu0
      %1392 = vdwg.mxu0
      %v1393 = vadd.f32 %v431, %v1385
      %v1394 = vadd.f32 %v432, %v1390
      %v1395 = vlaneseq
      %v1396 = vshrl.u32 %v1395, 7
      %v1397 = vsub.s32 5, %v1396
      %v1398 = vrot.slane %v459, %v1397
      %v1399 = vadd.f32 %v1393, %v1398
      %v1400 = vadd.f32 %v1394, %v1398
      %1401 = vadd.xlane.f32.xlu0 %v1399
      %v1402 = vpop.xlane.xlu0 %1401
      %1403 = vadd.xlane.f32.xlu0 %v1400
      %v1404 = vpop.xlane.xlu0 %1403
      %v1405 = vmul.f32 %v1402, 0.03125
      %v1406 = vmul.f32 %v1404, 0.03125
      %v1407 = vmul.f32 %v1399, %v1399
      %v1408 = vmul.f32 %v1400, %v1400
      %1409 = vadd.xlane.f32.xlu0 %v1407
      %v1410 = vpop.xlane.xlu0 %1409
      %1411 = vadd.xlane.f32.xlu0 %v1408
      %v1412 = vpop.xlane.xlu0 %1411
      %v1413 = vmul.f32 %v1410, 0.03125
      %v1414 = vmul.f32 %v1412, 0.03125
      %v1415 = vmul.f32 %v1405, %v1405
      %v1416 = vmul.f32 %v1406, %v1406
      %v1417 = vsub.f32 %v1413, %v1415
      %v1418 = vsub.f32 %v1414, %v1416
      %v1419 = vsub.f32 %v1399, %v1405
      %v1420 = vsub.f32 %v1400, %v1406
      %v1421 = vadd.f32 %v1417, 1e-12
      %v1422 = vadd.f32 %v1418, 1e-12
      %v1423 = vrsqrt.pop %v1421
      %v1424 = vrsqrt.pop %v1422
      %v1425 = vmul.f32 %v1419, %v1423
      %v1426 = vmul.f32 %v1420, %v1424
      %v1427 = vlaneseq
      %v1428 = vshrl.u32 %v1427, 7
      %v1429 = vsub.s32 6, %v1428
      %v1430 = vrot.slane %v459, %v1429
      %v1431 = vmul.f32 %v1425, %v1430
      %v1432 = vmul.f32 %v1426, %v1430
      %v1433 = vlaneseq
      %v1434 = vshrl.u32 %v1433, 7
      %v1435 = vsub.s32 7, %v1434
      %v1436 = vrot.slane %v459, %v1435
      %v1437 = vadd.f32 %v1431, %v1436
      %v1438 = vadd.f32 %v1432, %v1436
      %s1439 = scalar_lea.vmem %s371, 512
      %v1440 = vld [vmem:[%s1439] sm:$0xff]
      %v1441 = vld [vmem:[%s1439 + $0x8] sm:$0xff]
      %v1442 = vld [vmem:[%s1439 + $0x10] sm:$0xff]
      %v1443 = vld [vmem:[%s1439 + $0x18] sm:$0xff]
      %v1444 = vld [vmem:[%s1439 + $0x20] sm:$0xff]
      %v1445 = vld [vmem:[%s1439 + $0x28] sm:$0xff]
      %v1446 = vld [vmem:[%s1439 + $0x30] sm:$0xff]
      %v1447 = vld [vmem:[%s1439 + $0x38] sm:$0xff]
      %v1448 = vld [vmem:[%s1439 + $0x40] sm:$0xff]
      %v1449 = vld [vmem:[%s1439 + $0x48] sm:$0xff]
      %v1450 = vld [vmem:[%s1439 + $0x50] sm:$0xff]
      %v1451 = vld [vmem:[%s1439 + $0x58] sm:$0xff]
      %v1452 = vld [vmem:[%s1439 + $0x60] sm:$0xff]
      %v1453 = vld [vmem:[%s1439 + $0x68] sm:$0xff]
      %v1454 = vld [vmem:[%s1439 + $0x70] sm:$0xff]
      %v1455 = vld [vmem:[%s1439 + $0x78] sm:$0xff]
      %v1456 = vlaneseq
      %v1457 = vshrl.u32 %v1456, 7
      %v1458 = vsub.s32 0, %v1457
      %v1459 = vrot.slane %v460, %v1458
      %1460 = vmatprep.subr.mxu0 0.0
      %1461 = vmatpush1.msra.mxu0 %v1455
      %1462 = vmatprep.subr.mxu0 0.0
      %1463 = vmatpush1.msra.mxu0 %v1454
      %1464 = vmatprep.subr.mxu0 0.0
      %1465 = vmatpush1.msra.mxu0 %v1453
      %1466 = vmatprep.subr.mxu0 0.0
      %1467 = vmatpush1.msra.mxu0 %v1452
      %1468 = vmatprep.subr.mxu0 0.0
      %1469 = vmatpush1.msra.mxu0 %v1451
      %1470 = vmatprep.subr.mxu0 0.0
      %1471 = vmatpush1.msra.mxu0 %v1450
      %1472 = vmatprep.subr.mxu0 0.0
      %1473 = vmatpush1.msra.mxu0 %v1449
      %1474 = vmatprep.subr.mxu0 0.0
      %1475 = vmatpush1.msra.mxu0 %v1448
      %1476 = vmatprep.subr.mxu0 0.0
      %1477 = vmatpush1.msra.mxu0 %v1447
      %1478 = vmatprep.subr.mxu0 0.0
      %1479 = vmatpush1.msra.mxu0 %v1446
      %1480 = vmatprep.subr.mxu0 0.0
      %1481 = vmatpush1.msra.mxu0 %v1445
      %1482 = vmatprep.subr.mxu0 0.0
      %1483 = vmatpush1.msra.mxu0 %v1444
      %1484 = vmatprep.subr.mxu0 0.0
      %1485 = vmatpush1.msra.mxu0 %v1443
      %1486 = vmatprep.subr.mxu0 0.0
      %1487 = vmatpush1.msra.mxu0 %v1442
      %1488 = vmatprep.subr.mxu0 0.0
      %1489 = vmatpush1.msra.mxu0 %v1441
      %1490 = vmatprep.subr.mxu0 0.0
      %1491 = vmatpush1.msra.mxu0 %v1440
      %1492 = vmatprep.subr.mxu0 0.0
      %1493 = vmatpush2.msra.mxu0 0.0
      %1494 = vmatprep.subr.mxu0 0.0
      %1495 = vmatpush2.msra.mxu0 0.0
      %1496 = vmatprep.subr.mxu0 0.0
      %1497 = vmatpush2.msra.mxu0 0.0
      %1498 = vmatprep.subr.mxu0 0.0
      %1499 = vmatpush2.msra.mxu0 0.0
      %1500 = vmatprep.subr.mxu0 0.0
      %1501 = vmatpush2.msra.mxu0 0.0
      %1502 = vmatprep.subr.mxu0 0.0
      %1503 = vmatpush2.msra.mxu0 0.0
      %1504 = vmatprep.subr.mxu0 0.0
      %1505 = vmatpush2.msra.mxu0 0.0
      %1506 = vmatprep.subr.mxu0 0.0
      %1507 = vmatpush2.msra.mxu0 0.0
      %1508 = vmatprep.subr.mxu0 0.0
      %1509 = vmatpush2.msra.mxu0 0.0
      %1510 = vmatprep.subr.mxu0 0.0
      %1511 = vmatpush2.msra.mxu0 0.0
      %1512 = vmatprep.subr.mxu0 0.0
      %1513 = vmatpush2.msra.mxu0 0.0
      %1514 = vmatprep.subr.mxu0 0.0
      %1515 = vmatpush2.msra.mxu0 0.0
      %1516 = vmatprep.subr.mxu0 0.0
      %1517 = vmatpush2.msra.mxu0 0.0
      %1518 = vmatprep.subr.mxu0 0.0
      %1519 = vmatpush2.msra.mxu0 0.0
      %1520 = vmatprep.subr.mxu0 0.0
      %1521 = vmatpush2.msra.mxu0 0.0
      %1522 = vmatprep.subr.mxu0 0.0
      %1523 = vmatpush2.msra.mxu0 0.0
      %1524 = vmatprep.mubr.f32.mxu0 0.0
      %1525 = vmatmul.mubr.f32.gmra.mxu0 %v1437
      %v1526 = vpop.f32.mrf.mxu0
      %v1527 = vadd.f32 %v1459, %v1526
      %v1528 = vpop.f32.mrf.mxu0
      %1529 = vmatprep.mubr.f32.mxu0 0.0
      %1530 = vmatmul.mubr.f32.gmra.mxu0 %v1438
      %v1531 = vpop.f32.mrf.mxu0
      %v1532 = vadd.f32 %v1459, %v1531
      %v1533 = vpop.f32.mrf.mxu0
      %1534 = vdwg.mxu0
      %v1535 = vmul.f32 %v1527, 0.5
      %v1536 = vmul.f32 %v1532, 0.5
      %v1537 = vmul.f32 %v1527, %v1527
      %v1538 = vmul.f32 %v1532, %v1532
      %v1539 = vmul.f32 %v1527, %v1537
      %v1540 = vmul.f32 %v1532, %v1538
      %v1541 = vmul.f32 %v1539, 0.044715
      %v1542 = vmul.f32 %v1540, 0.044715
      %v1543 = vadd.f32 %v1527, %v1541
      %v1544 = vadd.f32 %v1532, %v1542
      %v1545 = vmul.f32 %v1543, 0.7978846
      %v1546 = vmul.f32 %v1544, 0.7978846
      %v1547 = vtanh.pop %v1545
      %v1548 = vtanh.pop %v1546
      %v1549 = vadd.f32 %v1547, 1.0
      %v1550 = vadd.f32 %v1548, 1.0
      %v1551 = vmul.f32 %v1535, %v1549
      %v1552 = vmul.f32 %v1536, %v1550
      %s1553 = scalar_lea.vmem %s371, 640
      %v1554 = vld [vmem:[%s1553] sm:$0xff]
      %v1555 = vld [vmem:[%s1553 + $0x8] sm:$0xff]
      %v1556 = vld [vmem:[%s1553 + $0x10] sm:$0xff]
      %v1557 = vld [vmem:[%s1553 + $0x18] sm:$0xff]
      %v1558 = vld [vmem:[%s1553 + $0x20] sm:$0xff]
      %v1559 = vld [vmem:[%s1553 + $0x28] sm:$0xff]
      %v1560 = vld [vmem:[%s1553 + $0x30] sm:$0xff]
      %v1561 = vld [vmem:[%s1553 + $0x38] sm:$0xff]
      %v1562 = vld [vmem:[%s1553 + $0x40] sm:$0xff]
      %v1563 = vld [vmem:[%s1553 + $0x48] sm:$0xff]
      %v1564 = vld [vmem:[%s1553 + $0x50] sm:$0xff]
      %v1565 = vld [vmem:[%s1553 + $0x58] sm:$0xff]
      %v1566 = vld [vmem:[%s1553 + $0x60] sm:$0xff]
      %v1567 = vld [vmem:[%s1553 + $0x68] sm:$0xff]
      %v1568 = vld [vmem:[%s1553 + $0x70] sm:$0xff]
      %v1569 = vld [vmem:[%s1553 + $0x78] sm:$0xff]
      %1570 = vmatprep.subr.mxu0 0.0
      %1571 = vmatpush1.msra.mxu0 %v1569
      %1572 = vmatprep.subr.mxu0 0.0
      %1573 = vmatpush1.msra.mxu0 %v1568
      %1574 = vmatprep.subr.mxu0 0.0
      %1575 = vmatpush1.msra.mxu0 %v1567
      %1576 = vmatprep.subr.mxu0 0.0
      %1577 = vmatpush1.msra.mxu0 %v1566
      %1578 = vmatprep.subr.mxu0 0.0
      %1579 = vmatpush1.msra.mxu0 %v1565
      %1580 = vmatprep.subr.mxu0 0.0
      %1581 = vmatpush1.msra.mxu0 %v1564
      %1582 = vmatprep.subr.mxu0 0.0
      %1583 = vmatpush1.msra.mxu0 %v1563
      %1584 = vmatprep.subr.mxu0 0.0
      %1585 = vmatpush1.msra.mxu0 %v1562
      %1586 = vmatprep.subr.mxu0 0.0
      %1587 = vmatpush1.msra.mxu0 %v1561
      %1588 = vmatprep.subr.mxu0 0.0
      %1589 = vmatpush1.msra.mxu0 %v1560
      %1590 = vmatprep.subr.mxu0 0.0
      %1591 = vmatpush1.msra.mxu0 %v1559
      %1592 = vmatprep.subr.mxu0 0.0
      %1593 = vmatpush1.msra.mxu0 %v1558
      %1594 = vmatprep.subr.mxu0 0.0
      %1595 = vmatpush1.msra.mxu0 %v1557
      %1596 = vmatprep.subr.mxu0 0.0
      %1597 = vmatpush1.msra.mxu0 %v1556
      %1598 = vmatprep.subr.mxu0 0.0
      %1599 = vmatpush1.msra.mxu0 %v1555
      %1600 = vmatprep.subr.mxu0 0.0
      %1601 = vmatpush1.msra.mxu0 %v1554
      %1602 = vmatprep.subr.mxu0 0.0
      %1603 = vmatpush2.msra.mxu0 0.0
      %1604 = vmatprep.subr.mxu0 0.0
      %1605 = vmatpush2.msra.mxu0 0.0
      %1606 = vmatprep.subr.mxu0 0.0
      %1607 = vmatpush2.msra.mxu0 0.0
      %1608 = vmatprep.subr.mxu0 0.0
      %1609 = vmatpush2.msra.mxu0 0.0
      %1610 = vmatprep.subr.mxu0 0.0
      %1611 = vmatpush2.msra.mxu0 0.0
      %1612 = vmatprep.subr.mxu0 0.0
      %1613 = vmatpush2.msra.mxu0 0.0
      %1614 = vmatprep.subr.mxu0 0.0
      %1615 = vmatpush2.msra.mxu0 0.0
      %1616 = vmatprep.subr.mxu0 0.0
      %1617 = vmatpush2.msra.mxu0 0.0
      %1618 = vmatprep.subr.mxu0 0.0
      %1619 = vmatpush2.msra.mxu0 0.0
      %1620 = vmatprep.subr.mxu0 0.0
      %1621 = vmatpush2.msra.mxu0 0.0
      %1622 = vmatprep.subr.mxu0 0.0
      %1623 = vmatpush2.msra.mxu0 0.0
      %1624 = vmatprep.subr.mxu0 0.0
      %1625 = vmatpush2.msra.mxu0 0.0
      %1626 = vmatprep.subr.mxu0 0.0
      %1627 = vmatpush2.msra.mxu0 0.0
      %1628 = vmatprep.subr.mxu0 0.0
      %1629 = vmatpush2.msra.mxu0 0.0
      %1630 = vmatprep.subr.mxu0 0.0
      %1631 = vmatpush2.msra.mxu0 0.0
      %1632 = vmatprep.subr.mxu0 0.0
      %1633 = vmatpush2.msra.mxu0 0.0
      %1634 = vmatprep.mubr.f32.mxu0 0.0
      %1635 = vmatmul.mubr.f32.gmra.mxu0 %v1551
      %v1636 = vpop.f32.mrf.mxu0
      %v1637 = vadd.f32 0.0, %v1636
      %v1638 = vpop.f32.mrf.mxu0
      %1639 = vmatprep.mubr.f32.mxu0 0.0
      %1640 = vmatmul.mubr.f32.gmra.mxu0 %v1552
      %v1641 = vpop.f32.mrf.mxu0
      %v1642 = vadd.f32 0.0, %v1641
      %v1643 = vpop.f32.mrf.mxu0
      %1644 = vdwg.mxu0
      %v1645 = vadd.f32 %v1399, %v1637
      %v1646 = vadd.f32 %v1400, %v1642
      %v1647 = vlaneseq
      %v1648 = vshrl.u32 %v1647, 7
      %v1649 = vsub.s32 1, %v1648
      %v1650 = vrot.slane %v460, %v1649
      %v1651 = vadd.f32 %v1645, %v1650
      %v1652 = vadd.f32 %v1646, %v1650
      %1653 = vst [vmem:[#allocation2] sm:$0xff] %v1651
      %1654 = vst [vmem:[#allocation2 + $0x8] sm:$0xff] %v1652
      %p1655 = scmp.eq.s32.totalorder %s24, 1
      // Predicated region
      $region57: #{_lambda_.2} parent=51 // pred_check
        %p1656 = pneg %p1655
      $region58: #{_lambda_.2} parent=51 // pred_check_branch
        %1658 = sbr.rel (%p1656) target = $region60
      $region59: #{_lambda_.2} parent=51 // pred_region
        %1659 = vst [vmem:[%s381] sm:$0xff] %v1651
        %1660 = vst [vmem:[%s381 + $0x8] sm:$0xff] %v1652
      $region60: #{_lambda_.2} parent=51 // pred_fallthru
        _
      %s1661 = smul.u32 2, %s23
      %p1662 = scmp.lt.s32.totalorder %s1661, 3
      %s1663 = scalar_select %p1662, %s1661, 3
      %s1664 = smul.addr %s1663, 8
      %s1665 = scalar_lea.vmem %s8, %s1664
      // Predicated region
      $region61: #{_lambda_.2} parent=51 // pred_check
        %p1666 = pneg %p237
      $region62: #{_lambda_.2} parent=51 // pred_check_branch
        %1668 = sbr.rel (%p1666) target = $region64
      $region63: #{_lambda_.2} parent=51 // pred_region
        %s1669 = smul.u32 2, %s23
      $region64: #{_lambda_.2} parent=51 // pred_fallthru
        _
    $region52: #{_lambda_.2} parent=5 // pred_fallthru
      _
    %p1670 = scmp.le.s32.totalorder 2, %s14
    // Predicated region
    $region65: #{_lambda_.2} parent=5 // pred_check
      %p1671 = pneg %p1670
    $region66: #{_lambda_.2} parent=5 // pred_check_branch
      %1673 = sbr.rel (%p1671) target = $region68
    $region67: #{_lambda_.2} parent=5 // pred_region
      %s1674 = ssub.s32 %s14, 2
      // Predicated region
      $region69: #{_lambda_.2} parent=67 // pred_check
        %p1675 = pneg %p243
      $region70: #{_lambda_.2} parent=67 // pred_check_branch
        %1677 = sbr.rel (%p1675) target = $region72
      $region71: #{_lambda_.2} parent=67 // pred_region
        %s1678 = smul.u32 2, %s25
        %p1679 = scmp.lt.s32.totalorder %s1678, 3
        %s1680 = scalar_select %p1679, %s1678, 3
        %s1681 = smul.addr %s1680, 8
        %s1682 = scalar_lea.vmem %s8, %s1681
      $region72: #{_lambda_.2} parent=67 // pred_fallthru
        _
    $region68: #{_lambda_.2} parent=5 // pred_fallthru
      _
  $region6: #{_lambda_.2} parent=0 // loop_footer
    %s18 = sadd.s32 1, %s14
  $region7: #{_lambda_.2} parent=0 // loop_footer_branch
    %13 = sbr.rel target = $region3
  $region8: #{_lambda_.2} parent=0 // loop_exit
    _

// kernel: _lambda_.3
$region0: #{_lambda_.3}
  #allocation0 [shape = 'u32[]', space=smem, size = 0x4, offset = 0x4, fixed_abs, tag = 'smem constant byte address 0x4 - core index']
  #allocation1 [shape = 'u32[144,128]{1,0:T(1,128)}', space=vmem, size = 0x12000, scoped, tag = 'internal scratch']
  #allocation2 [shape = 'f32[4,128]{1,0:T(4,128)}', space=vmem, size = 0x800, scoped, tag = 'scratch operand']
  %s0 = inlined_call_operand.vmem [shape: f32[4,128], index: 0, kind: input, shape index: {}]
  %s1 = inlined_call_operand.vmem [shape: f32[28,128], index: 1, kind: input, shape index: {}]
  %s2 = inlined_call_operand.vmem [shape: f32[4,112], index: 2, kind: input, shape index: {}]
  %s3 = inlined_call_operand.vmem [shape: f32[112,28], index: 3, kind: input, shape index: {}]
  %s4 = inlined_call_operand.vmem [shape: f32[112,128], index: 4, kind: input, shape index: {}]
  %s5 = inlined_call_operand.vmem [shape: f32[112,112], index: 5, kind: input, shape index: {}]
  %s6 = inlined_call_operand.vmem [shape: f32[2,8,128,128], index: 6, kind: input, shape index: {}]
  %s7 = inlined_call_operand.vmem [shape: f32[2,14,128], index: 7, kind: input, shape index: {}]
  %s8 = inlined_call_operand.vmem [shape: f32[2,128], index: 8, kind: input, shape index: {}]
  %s9 = inlined_call_operand.vmem [shape: f32[4,128], index: 9, kind: output, shape index: {}]
  %s10 = sld [smem:[#allocation0]]
  $region77: #{_lambda_.3} parent=0
    _
  %s12 = ssub.s32 1, %s10
  %s13 = scalar_select 0, %s12, %s10
  loop: start=0, step=1, limit=4
  $region2: #{_lambda_.3} parent=0 // loop_pre_header
    _
  $region3: #{_lambda_.3} parent=0 // loop_header
    %s15 = sphi 0, %s19
    %p16 = scmp.ge.s32.totalorder %s15, 4
    %s23 = sphi 0, %s23
    %s25 = sphi 0, %s23
    %s26 = sphi 0, %s25
    %s40 = sphi 0, %s26
    %s44 = sphi 0, %s44
    %s46 = sphi 0, %s44
    %s47 = sphi 0, %s46
    %s61 = sphi 0, %s47
    %s65 = sphi 0, %s65
    %s67 = sphi 0, %s65
    %s68 = sphi 0, %s67
    %s82 = sphi 0, %s68
    %s86 = sphi 0, %s86
    %s88 = sphi 0, %s86
    %s89 = sphi 0, %s88
    %s103 = sphi 0, %s89
    %s107 = sphi 0, %s107
    %s109 = sphi 0, %s107
    %s110 = sphi 0, %s109
    %s124 = sphi 0, %s110
    %s128 = sphi 0, %s128
    %s130 = sphi 0, %s128
    %s131 = sphi 0, %s130
    %s145 = sphi 0, %s131
    %s151 = sphi 0, %s153
    %s154 = sphi 0, %s151
    %s155 = sphi 0, %s154
    %s171 = sphi 0, %s155
    %s177 = sphi 0, %s179
    %s180 = sphi 0, %s177
    %s181 = sphi 0, %s180
    %s197 = sphi 0, %s181
    %s201 = sphi 0, %s201
    %s203 = sphi 0, %s201
    %s204 = sphi 0, %s203
    %s218 = sphi 0, %s204
    %s222 = sphi 0, %s222
    %s224 = sphi 0, %s222
    %s225 = sphi 0, %s224
    %s239 = sphi 0, %s225
  $region4: #{_lambda_.3} parent=0 // loop_header_branch
    %18 = sbr.rel (%p16) target = $region8
  $region5: #{_lambda_.3} parent=0 // loop_body
    %s20 = ssub.s32 %s15, 1
    %s21 = ssub.s32 %s15, 2
    %s22 = sadd.s32 %s15, 1
    %s24 = sadd.s32 %s23, 1
    %p27 = scmp.eq.s32.totalorder %s15, 1
    %p28 = scmp.ne.s32.totalorder %s23, %s25
    %p29 = scmp.eq.s32.totalorder %s15, 0
    %p30 = por %p28, %p29
    %p31 = scmp.ne.s32.totalorder %s23, %s25
    %p32 = scmp.eq.s32.totalorder %s20, 1
    %p33 = por %p31, %p32
    %p34 = scmp.ne.s32.totalorder %s25, %s26
    %p35 = scmp.eq.s32.totalorder %s20, 0
    %p36 = por %p34, %p35
    %p37 = scmp.ne.s32.totalorder %s25, %s26
    %p38 = scmp.eq.s32.totalorder %s21, 1
    %p39 = por %p37, %p38
    %p41 = scmp.ne.s32.totalorder %s26, %s40
    %p42 = scmp.eq.s32.totalorder %s21, 0
    %p43 = por %p41, %p42
    %s45 = sadd.s32 %s44, 1
    %p48 = scmp.eq.s32.totalorder %s15, 1
    %p49 = scmp.ne.s32.totalorder %s44, %s46
    %p50 = scmp.eq.s32.totalorder %s15, 0
    %p51 = por %p49, %p50
    %p52 = scmp.ne.s32.totalorder %s44, %s46
    %p53 = scmp.eq.s32.totalorder %s20, 1
    %p54 = por %p52, %p53
    %p55 = scmp.ne.s32.totalorder %s46, %s47
    %p56 = scmp.eq.s32.totalorder %s20, 0
    %p57 = por %p55, %p56
    %p58 = scmp.ne.s32.totalorder %s46, %s47
    %p59 = scmp.eq.s32.totalorder %s21, 1
    %p60 = por %p58, %p59
    %p62 = scmp.ne.s32.totalorder %s47, %s61
    %p63 = scmp.eq.s32.totalorder %s21, 0
    %p64 = por %p62, %p63
    %s66 = sadd.s32 %s65, 1
    %p69 = scmp.eq.s32.totalorder %s15, 1
    %p70 = scmp.ne.s32.totalorder %s65, %s67
    %p71 = scmp.eq.s32.totalorder %s15, 0
    %p72 = por %p70, %p71
    %p73 = scmp.ne.s32.totalorder %s65, %s67
    %p74 = scmp.eq.s32.totalorder %s20, 1
    %p75 = por %p73, %p74
    %p76 = scmp.ne.s32.totalorder %s67, %s68
    %p77 = scmp.eq.s32.totalorder %s20, 0
    %p78 = por %p76, %p77
    %p79 = scmp.ne.s32.totalorder %s67, %s68
    %p80 = scmp.eq.s32.totalorder %s21, 1
    %p81 = por %p79, %p80
    %p83 = scmp.ne.s32.totalorder %s68, %s82
    %p84 = scmp.eq.s32.totalorder %s21, 0
    %p85 = por %p83, %p84
    %s87 = sadd.s32 %s86, 1
    %p90 = scmp.eq.s32.totalorder %s15, 1
    %p91 = scmp.ne.s32.totalorder %s86, %s88
    %p92 = scmp.eq.s32.totalorder %s15, 0
    %p93 = por %p91, %p92
    %p94 = scmp.ne.s32.totalorder %s86, %s88
    %p95 = scmp.eq.s32.totalorder %s20, 1
    %p96 = por %p94, %p95
    %p97 = scmp.ne.s32.totalorder %s88, %s89
    %p98 = scmp.eq.s32.totalorder %s20, 0
    %p99 = por %p97, %p98
    %p100 = scmp.ne.s32.totalorder %s88, %s89
    %p101 = scmp.eq.s32.totalorder %s21, 1
    %p102 = por %p100, %p101
    %p104 = scmp.ne.s32.totalorder %s89, %s103
    %p105 = scmp.eq.s32.totalorder %s21, 0
    %p106 = por %p104, %p105
    %s108 = sadd.s32 %s107, 1
    %p111 = scmp.eq.s32.totalorder %s15, 1
    %p112 = scmp.ne.s32.totalorder %s107, %s109
    %p113 = scmp.eq.s32.totalorder %s15, 0
    %p114 = por %p112, %p113
    %p115 = scmp.ne.s32.totalorder %s107, %s109
    %p116 = scmp.eq.s32.totalorder %s20, 1
    %p117 = por %p115, %p116
    %p118 = scmp.ne.s32.totalorder %s109, %s110
    %p119 = scmp.eq.s32.totalorder %s20, 0
    %p120 = por %p118, %p119
    %p121 = scmp.ne.s32.totalorder %s109, %s110
    %p122 = scmp.eq.s32.totalorder %s21, 1
    %p123 = por %p121, %p122
    %p125 = scmp.ne.s32.totalorder %s110, %s124
    %p126 = scmp.eq.s32.totalorder %s21, 0
    %p127 = por %p125, %p126
    %s129 = sadd.s32 %s128, 1
    %p132 = scmp.eq.s32.totalorder %s15, 1
    %p133 = scmp.ne.s32.totalorder %s128, %s130
    %p134 = scmp.eq.s32.totalorder %s15, 0
    %p135 = por %p133, %p134
    %p136 = scmp.ne.s32.totalorder %s128, %s130
    %p137 = scmp.eq.s32.totalorder %s20, 1
    %p138 = por %p136, %p137
    %p139 = scmp.ne.s32.totalorder %s130, %s131
    %p140 = scmp.eq.s32.totalorder %s20, 0
    %p141 = por %p139, %p140
    %p142 = scmp.ne.s32.totalorder %s130, %s131
    %p143 = scmp.eq.s32.totalorder %s21, 1
    %p144 = por %p142, %p143
    %p146 = scmp.ne.s32.totalorder %s131, %s145
    %p147 = scmp.eq.s32.totalorder %s21, 0
    %p148 = por %p146, %p147
    %s149 = ssub.s32 %s15, %s22
    %p150 = scmp.eq.s32.totalorder %s149, 0
    %s152 = sadd.s32 %s151, 1
    %s153 = scalar_select %p150, %s151, %s152
    %p156 = pneg %p150
    %p157 = scmp.eq.s32.totalorder %s15, 1
    %p158 = por %p156, %p157
    %p159 = scmp.ne.s32.totalorder %s151, %s154
    %p160 = scmp.eq.s32.totalorder %s15, 0
    %p161 = por %p159, %p160
    %p162 = scmp.ne.s32.totalorder %s151, %s154
    %p163 = scmp.eq.s32.totalorder %s20, 1
    %p164 = por %p162, %p163
    %p165 = scmp.ne.s32.totalorder %s154, %s155
    %p166 = scmp.eq.s32.totalorder %s20, 0
    %p167 = por %p165, %p166
    %p168 = scmp.ne.s32.totalorder %s154, %s155
    %p169 = scmp.eq.s32.totalorder %s21, 1
    %p170 = por %p168, %p169
    %p172 = scmp.ne.s32.totalorder %s155, %s171
    %p173 = scmp.eq.s32.totalorder %s21, 0
    %p174 = por %p172, %p173
    %s175 = ssub.s32 %s15, %s22
    %p176 = scmp.eq.s32.totalorder %s175, 0
    %s178 = sadd.s32 %s177, 1
    %s179 = scalar_select %p176, %s177, %s178
    %p182 = pneg %p176
    %p183 = scmp.eq.s32.totalorder %s15, 1
    %p184 = por %p182, %p183
    %p185 = scmp.ne.s32.totalorder %s177, %s180
    %p186 = scmp.eq.s32.totalorder %s15, 0
    %p187 = por %p185, %p186
    %p188 = scmp.ne.s32.totalorder %s177, %s180
    %p189 = scmp.eq.s32.totalorder %s20, 1
    %p190 = por %p188, %p189
    %p191 = scmp.ne.s32.totalorder %s180, %s181
    %p192 = scmp.eq.s32.totalorder %s20, 0
    %p193 = por %p191, %p192
    %p194 = scmp.ne.s32.totalorder %s180, %s181
    %p195 = scmp.eq.s32.totalorder %s21, 1
    %p196 = por %p194, %p195
    %p198 = scmp.ne.s32.totalorder %s181, %s197
    %p199 = scmp.eq.s32.totalorder %s21, 0
    %p200 = por %p198, %p199
    %s202 = sadd.s32 %s201, 1
    %p205 = scmp.eq.s32.totalorder %s15, 1
    %p206 = scmp.ne.s32.totalorder %s201, %s203
    %p207 = scmp.eq.s32.totalorder %s15, 0
    %p208 = por %p206, %p207
    %p209 = scmp.ne.s32.totalorder %s201, %s203
    %p210 = scmp.eq.s32.totalorder %s20, 1
    %p211 = por %p209, %p210
    %p212 = scmp.ne.s32.totalorder %s203, %s204
    %p213 = scmp.eq.s32.totalorder %s20, 0
    %p214 = por %p212, %p213
    %p215 = scmp.ne.s32.totalorder %s203, %s204
    %p216 = scmp.eq.s32.totalorder %s21, 1
    %p217 = por %p215, %p216
    %p219 = scmp.ne.s32.totalorder %s204, %s218
    %p220 = scmp.eq.s32.totalorder %s21, 0
    %p221 = por %p219, %p220
    %s223 = sadd.s32 %s222, 1
    %p226 = scmp.eq.s32.totalorder %s15, 1
    %p227 = scmp.ne.s32.totalorder %s222, %s224
    %p228 = scmp.eq.s32.totalorder %s15, 0
    %p229 = por %p227, %p228
    %p230 = scmp.ne.s32.totalorder %s222, %s224
    %p231 = scmp.eq.s32.totalorder %s20, 1
    %p232 = por %p230, %p231
    %p233 = scmp.ne.s32.totalorder %s224, %s225
    %p234 = scmp.eq.s32.totalorder %s20, 0
    %p235 = por %p233, %p234
    %p236 = scmp.ne.s32.totalorder %s224, %s225
    %p237 = scmp.eq.s32.totalorder %s21, 1
    %p238 = por %p236, %p237
    %p240 = scmp.ne.s32.totalorder %s225, %s239
    %p241 = scmp.eq.s32.totalorder %s21, 0
    %p242 = por %p240, %p241
    %p243 = scmp.le.s32.totalorder 1, %s15
    %p244 = scmp.lt.s32.totalorder %s15, 3
    %p245 = pnand %p243, %p244
    %p246 = pneg %p245
    // Predicated region
    $region9: #{_lambda_.3} parent=5 // pred_check
      _
    $region10: #{_lambda_.3} parent=5 // pred_check_branch
      %248 = sbr.rel (%p245) target = $region12
    $region11: #{_lambda_.3} parent=5 // pred_region
      %s249 = ssub.s32 %s15, 1
      // Predicated region
      $region13: #{_lambda_.3} parent=11 // pred_check
        %p250 = pneg %p36
      $region14: #{_lambda_.3} parent=11 // pred_check_branch
        %252 = sbr.rel (%p250) target = $region16
      $region15: #{_lambda_.3} parent=11 // pred_region
        _
      $region16: #{_lambda_.3} parent=11 // pred_fallthru
        _
      // Predicated region
      $region17: #{_lambda_.3} parent=11 // pred_check
        %p253 = pneg %p57
      $region18: #{_lambda_.3} parent=11 // pred_check_branch
        %255 = sbr.rel (%p253) target = $region20
      $region19: #{_lambda_.3} parent=11 // pred_region
        _
      $region20: #{_lambda_.3} parent=11 // pred_fallthru
        _
      // Predicated region
      $region21: #{_lambda_.3} parent=11 // pred_check
        %p256 = pneg %p78
      $region22: #{_lambda_.3} parent=11 // pred_check_branch
        %258 = sbr.rel (%p256) target = $region24
      $region23: #{_lambda_.3} parent=11 // pred_region
        _
      $region24: #{_lambda_.3} parent=11 // pred_fallthru
        _
      // Predicated region
      $region25: #{_lambda_.3} parent=11 // pred_check
        %p259 = pneg %p99
      $region26: #{_lambda_.3} parent=11 // pred_check_branch
        %261 = sbr.rel (%p259) target = $region28
      $region27: #{_lambda_.3} parent=11 // pred_region
        _
      $region28: #{_lambda_.3} parent=11 // pred_fallthru
        _
      // Predicated region
      $region29: #{_lambda_.3} parent=11 // pred_check
        %p262 = pneg %p120
      $region30: #{_lambda_.3} parent=11 // pred_check_branch
        %264 = sbr.rel (%p262) target = $region32
      $region31: #{_lambda_.3} parent=11 // pred_region
        _
      $region32: #{_lambda_.3} parent=11 // pred_fallthru
        _
      // Predicated region
      $region33: #{_lambda_.3} parent=11 // pred_check
        %p265 = pneg %p141
      $region34: #{_lambda_.3} parent=11 // pred_check_branch
        %267 = sbr.rel (%p265) target = $region36
      $region35: #{_lambda_.3} parent=11 // pred_region
        _
      $region36: #{_lambda_.3} parent=11 // pred_fallthru
        _
      // Predicated region
      $region37: #{_lambda_.3} parent=11 // pred_check
        %p268 = pneg %p214
      $region38: #{_lambda_.3} parent=11 // pred_check_branch
        %270 = sbr.rel (%p268) target = $region40
      $region39: #{_lambda_.3} parent=11 // pred_region
        _
      $region40: #{_lambda_.3} parent=11 // pred_fallthru
        _
    $region12: #{_lambda_.3} parent=5 // pred_fallthru
      _
    %p271 = scmp.lt.s32.totalorder %s15, 2
    // Predicated region
    $region41: #{_lambda_.3} parent=5 // pred_check
      %p272 = pneg %p271
    $region42: #{_lambda_.3} parent=5 // pred_check_branch
      %274 = sbr.rel (%p272) target = $region44
    $region43: #{_lambda_.3} parent=5 // pred_region
      // Predicated region
      $region45: #{_lambda_.3} parent=43 // pred_check
        %p275 = pneg %p161
      $region46: #{_lambda_.3} parent=43 // pred_check_branch
        %277 = sbr.rel (%p275) target = $region48
      $region47: #{_lambda_.3} parent=43 // pred_region
        %p278 = scmp.lt.s32.totalorder %s15, 1
        %s279 = scalar_select %p278, %s15, 1
        %s280 = smul.addr %s279, 128
        %s281 = smul.addr %s280, 8
        %s282 = scalar_lea.vmem %s6, %s281
      $region48: #{_lambda_.3} parent=43 // pred_fallthru
        _
      // Predicated region
      $region49: #{_lambda_.3} parent=43 // pred_check
        %p283 = pneg %p187
      $region50: #{_lambda_.3} parent=43 // pred_check_branch
        %285 = sbr.rel (%p283) target = $region52
      $region51: #{_lambda_.3} parent=43 // pred_region
        %p286 = scmp.lt.s32.totalorder %s15, 1
        %s287 = scalar_select %p286, %s15, 1
        %s288 = smul.addr %s287, 2
        %s289 = smul.addr %s288, 8
        %s290 = scalar_lea.vmem %s7, %s289
      $region52: #{_lambda_.3} parent=43 // pred_fallthru
        _
    $region44: #{_lambda_.3} parent=5 // pred_fallthru
      _
    %p291 = scmp.le.s32.totalorder 1, %s15
    %p292 = scmp.lt.s32.totalorder %s15, 3
    %p293 = pnand %p291, %p292
    %p294 = pneg %p293
    // Predicated region
    $region53: #{_lambda_.3} parent=5 // pred_check
      _
    $region54: #{_lambda_.3} parent=5 // pred_check_branch
      %296 = sbr.rel (%p293) target = $region56
    $region55: #{_lambda_.3} parent=5 // pred_region
      %s297 = ssub.s32 %s15, 1
      %p298 = pneg %p36
      %p299 = pneg %p33
      %p300 = pneg %p57
      %p301 = pneg %p54
      %p302 = pneg %p78
      %p303 = pneg %p75
      %p304 = pneg %p99
      %p305 = pneg %p96
      %p306 = pneg %p120
      %p307 = pneg %p117
      %p308 = pneg %p141
      %p309 = pneg %p138
      %p310 = scmp.lt.s32.totalorder %s20, 1
      %s311 = scalar_select %p310, %s20, 1
      %s312 = smul.addr %s311, 128
      %s313 = smul.addr %s312, 8
      %s314 = scalar_lea.vmem %s6, %s313
      %p315 = pneg %p167
      %p316 = pneg %p164
      %p317 = scmp.lt.s32.totalorder %s20, 1
      %s318 = scalar_select %p317, %s20, 1
      %s319 = smul.addr %s318, 2
      %s320 = smul.addr %s319, 8
      %s321 = scalar_lea.vmem %s7, %s320
      %p322 = pneg %p193
      %p323 = pneg %p190
      %p324 = pneg %p214
      %p325 = pneg %p211
      %p326 = pneg %p235
      %p327 = pneg %p232
      %p328 = scmp.lt.s32.totalorder %s20, 1
      %s329 = scalar_select %p328, %s20, 1
      %s330 = smul.addr %s329, 128
      %s331 = smul.addr %s330, 8
      %s332 = scalar_lea.vmem %s6, %s331
      %p333 = scmp.lt.s32.totalorder %s20, 1
      %s334 = scalar_select %p333, %s20, 1
      %s335 = smul.addr %s334, 2
      %s336 = smul.addr %s335, 8
      %s337 = scalar_lea.vmem %s7, %s336
      %p338 = scmp.eq.s32.totalorder %s20, 0
      // Predicated region
      $region57: #{_lambda_.3} parent=55 // pred_check
        %p339 = pneg %p338
      $region58: #{_lambda_.3} parent=55 // pred_check_branch
        %341 = sbr.rel (%p339) target = $region60
      $region59: #{_lambda_.3} parent=55 // pred_region
        %v342 = vld [vmem:[%s0] sm:$0xf]
        %343 = vst [vmem:[#allocation2] sm:$0xf] %v342
      $region60: #{_lambda_.3} parent=55 // pred_fallthru
        _
      %v344 = vld [vmem:[#allocation2] sm:$0xf]
      %v345 = vld [vmem:[%s1] sm:$0xff]
      %v346 = vld [vmem:[%s1 + $0x8] sm:$0xff]
      %v347 = vld [vmem:[%s1 + $0x10] sm:$0xff]
      %v348 = vld [vmem:[%s1 + $0x18] sm:$0xf]
      %v349 = vld [vmem:[%s2] sm:$0xf]
      %v350 = vld [vmem:[%s3] sm:$0xff]
      %v351 = vld [vmem:[%s3 + $0x8] sm:$0xff]
      %v352 = vld [vmem:[%s3 + $0x10] sm:$0xff]
      %v353 = vld [vmem:[%s3 + $0x18] sm:$0xff]
      %v354 = vld [vmem:[%s3 + $0x20] sm:$0xff]
      %v355 = vld [vmem:[%s3 + $0x28] sm:$0xff]
      %v356 = vld [vmem:[%s3 + $0x30] sm:$0xff]
      %v357 = vld [vmem:[%s3 + $0x38] sm:$0xff]
      %v358 = vld [vmem:[%s3 + $0x40] sm:$0xff]
      %v359 = vld [vmem:[%s3 + $0x48] sm:$0xff]
      %v360 = vld [vmem:[%s3 + $0x50] sm:$0xff]
      %v361 = vld [vmem:[%s3 + $0x58] sm:$0xff]
      %v362 = vld [vmem:[%s3 + $0x60] sm:$0xff]
      %v363 = vld [vmem:[%s3 + $0x68] sm:$0xff]
      %v364 = vld [vmem:[%s4] sm:$0xff]
      %v365 = vld [vmem:[%s4 + $0x8] sm:$0xff]
      %v366 = vld [vmem:[%s4 + $0x10] sm:$0xff]
      %v367 = vld [vmem:[%s4 + $0x18] sm:$0xff]
      %v368 = vld [vmem:[%s4 + $0x20] sm:$0xff]
      %v369 = vld [vmem:[%s4 + $0x28] sm:$0xff]
      %v370 = vld [vmem:[%s4 + $0x30] sm:$0xff]
      %v371 = vld [vmem:[%s4 + $0x38] sm:$0xff]
      %v372 = vld [vmem:[%s4 + $0x40] sm:$0xff]
      %v373 = vld [vmem:[%s4 + $0x48] sm:$0xff]
      %v374 = vld [vmem:[%s4 + $0x50] sm:$0xff]
      %v375 = vld [vmem:[%s4 + $0x58] sm:$0xff]
      %v376 = vld [vmem:[%s4 + $0x60] sm:$0xff]
      %v377 = vld [vmem:[%s4 + $0x68] sm:$0xff]
      %v378 = vld [vmem:[%s5] sm:$0xff]
      %v379 = vld [vmem:[%s5 + $0x8] sm:$0xff]
      %v380 = vld [vmem:[%s5 + $0x10] sm:$0xff]
      %v381 = vld [vmem:[%s5 + $0x18] sm:$0xff]
      %v382 = vld [vmem:[%s5 + $0x20] sm:$0xff]
      %v383 = vld [vmem:[%s5 + $0x28] sm:$0xff]
      %v384 = vld [vmem:[%s5 + $0x30] sm:$0xff]
      %v385 = vld [vmem:[%s5 + $0x38] sm:$0xff]
      %v386 = vld [vmem:[%s5 + $0x40] sm:$0xff]
      %v387 = vld [vmem:[%s5 + $0x48] sm:$0xff]
      %v388 = vld [vmem:[%s5 + $0x50] sm:$0xff]
      %v389 = vld [vmem:[%s5 + $0x58] sm:$0xff]
      %v390 = vld [vmem:[%s5 + $0x60] sm:$0xff]
      %v391 = vld [vmem:[%s5 + $0x68] sm:$0xff]
      %v392 = vld [vmem:[%s337] sm:$0xff]
      %v393 = vld [vmem:[%s337 + $0x8] sm:$0x3f]
      %vm394 = vcmask 1043456
      %v395 = vsel %vm394, %v344, 0.0
      %396 = vadd.xlane.f32.xlu0 %v395
      %v397 = vpop.xlane.xlu0 %396
      %v398 = vmul.f32 %v397, 0.03125
      %v399 = vmul.f32 %v344, %v344
      %v400 = vsel %vm394, %v399, 0.0
      %401 = vadd.xlane.f32.xlu0 %v400
      %v402 = vpop.xlane.xlu0 %401
      %v403 = vmul.f32 %v402, 0.03125
      %v404 = vmul.f32 %v398, %v398
      %v405 = vsub.f32 %v403, %v404
      %v406 = vsub.f32 %v344, %v398
      %v407 = vadd.f32 %v405, 1e-06
      %v408 = vrsqrt.pop %v407
      %v409 = vmul.f32 %v406, %v408
      %v410 = vlaneseq
      %v411 = vshrl.u32 %v410, 7
      %v412 = vsub.s32 0, %v411
      %v413 = vrot.slane %v392, %v412
      %v414 = vmul.f32 %v409, %v413
      %v415 = vlaneseq
      %v416 = vshrl.u32 %v415, 7
      %v417 = vsub.s32 1, %v416
      %v418 = vrot.slane %v392, %v417
      %v419 = vadd.f32 %v414, %v418
      %v420 = vld [vmem:[%s332] sm:$0xff]
      %v421 = vld [vmem:[%s332 + $0x8] sm:$0xff]
      %v422 = vld [vmem:[%s332 + $0x10] sm:$0xff]
      %v423 = vld [vmem:[%s332 + $0x18] sm:$0xff]
      %v424 = vld [vmem:[%s332 + $0x20] sm:$0xff]
      %v425 = vld [vmem:[%s332 + $0x28] sm:$0xff]
      %v426 = vld [vmem:[%s332 + $0x30] sm:$0xff]
      %v427 = vld [vmem:[%s332 + $0x38] sm:$0xff]
      %v428 = vld [vmem:[%s332 + $0x40] sm:$0xff]
      %v429 = vld [vmem:[%s332 + $0x48] sm:$0xff]
      %v430 = vld [vmem:[%s332 + $0x50] sm:$0xff]
      %v431 = vld [vmem:[%s332 + $0x58] sm:$0xff]
      %v432 = vld [vmem:[%s332 + $0x60] sm:$0xff]
      %v433 = vld [vmem:[%s332 + $0x68] sm:$0xff]
      %v434 = vld [vmem:[%s332 + $0x70] sm:$0xff]
      %v435 = vld [vmem:[%s332 + $0x78] sm:$0xff]
      %v436 = vlaneseq
      %v437 = vshrl.u32 %v436, 7
      %v438 = vsub.s32 2, %v437
      %v439 = vrot.slane %v392, %v438
      %440 = vmatprep.subr.mxu0 0.0
      %441 = vmatpush1.msra.mxu0 %v435
      %442 = vmatprep.subr.mxu0 0.0
      %443 = vmatpush1.msra.mxu0 %v434
      %444 = vmatprep.subr.mxu0 0.0
      %445 = vmatpush1.msra.mxu0 %v433
      %446 = vmatprep.subr.mxu0 0.0
      %447 = vmatpush1.msra.mxu0 %v432
      %448 = vmatprep.subr.mxu0 0.0
      %449 = vmatpush1.msra.mxu0 %v431
      %450 = vmatprep.subr.mxu0 0.0
      %451 = vmatpush1.msra.mxu0 %v430
      %452 = vmatprep.subr.mxu0 0.0
      %453 = vmatpush1.msra.mxu0 %v429
      %454 = vmatprep.subr.mxu0 0.0
      %455 = vmatpush1.msra.mxu0 %v428
      %456 = vmatprep.subr.mxu0 0.0
      %457 = vmatpush1.msra.mxu0 %v427
      %458 = vmatprep.subr.mxu0 0.0
      %459 = vmatpush1.msra.mxu0 %v426
      %460 = vmatprep.subr.mxu0 0.0
      %461 = vmatpush1.msra.mxu0 %v425
      %462 = vmatprep.subr.mxu0 0.0
      %463 = vmatpush1.msra.mxu0 %v424
      %464 = vmatprep.subr.mxu0 0.0
      %465 = vmatpush1.msra.mxu0 %v423
      %466 = vmatprep.subr.mxu0 0.0
      %467 = vmatpush1.msra.mxu0 %v422
      %468 = vmatprep.subr.mxu0 0.0
      %469 = vmatpush1.msra.mxu0 %v421
      %470 = vmatprep.subr.mxu0 0.0
      %471 = vmatpush1.msra.mxu0 %v420
      %472 = vmatprep.subr.mxu0 0.0
      %473 = vmatpush2.msra.mxu0 0.0
      %474 = vmatprep.subr.mxu0 0.0
      %475 = vmatpush2.msra.mxu0 0.0
      %476 = vmatprep.subr.mxu0 0.0
      %477 = vmatpush2.msra.mxu0 0.0
      %478 = vmatprep.subr.mxu0 0.0
      %479 = vmatpush2.msra.mxu0 0.0
      %480 = vmatprep.subr.mxu0 0.0
      %481 = vmatpush2.msra.mxu0 0.0
      %482 = vmatprep.subr.mxu0 0.0
      %483 = vmatpush2.msra.mxu0 0.0
      %484 = vmatprep.subr.mxu0 0.0
      %485 = vmatpush2.msra.mxu0 0.0
      %486 = vmatprep.subr.mxu0 0.0
      %487 = vmatpush2.msra.mxu0 0.0
      %488 = vmatprep.subr.mxu0 0.0
      %489 = vmatpush2.msra.mxu0 0.0
      %490 = vmatprep.subr.mxu0 0.0
      %491 = vmatpush2.msra.mxu0 0.0
      %492 = vmatprep.subr.mxu0 0.0
      %493 = vmatpush2.msra.mxu0 0.0
      %494 = vmatprep.subr.mxu0 0.0
      %495 = vmatpush2.msra.mxu0 0.0
      %496 = vmatprep.subr.mxu0 0.0
      %497 = vmatpush2.msra.mxu0 0.0
      %498 = vmatprep.subr.mxu0 0.0
      %499 = vmatpush2.msra.mxu0 0.0
      %500 = vmatprep.subr.mxu0 0.0
      %501 = vmatpush2.msra.mxu0 0.0
      %502 = vmatprep.subr.mxu0 0.0
      %503 = vmatpush2.msra.mxu0 0.0
      %504 = vmatprep.mubr.f32.mxu0 0.0
      %505 = vmatmul.mubr.f32.gmra.mxu0 %v419
      %v506 = vpop.f32.mrf.mxu0
      %v507 = vadd.f32 %v439, %v506
      %v508 = vpop.f32.mrf.mxu0
      %509 = vdwg.mxu0
      %s510 = scalar_lea.vmem %s332, 128
      %v511 = vld [vmem:[%s510] sm:$0xff]
      %v512 = vld [vmem:[%s510 + $0x8] sm:$0xff]
      %v513 = vld [vmem:[%s510 + $0x10] sm:$0xff]
      %v514 = vld [vmem:[%s510 + $0x18] sm:$0xff]
      %v515 = vld [vmem:[%s510 + $0x20] sm:$0xff]
      %v516 = vld [vmem:[%s510 + $0x28] sm:$0xff]
      %v517 = vld [vmem:[%s510 + $0x30] sm:$0xff]
      %v518 = vld [vmem:[%s510 + $0x38] sm:$0xff]
      %v519 = vld [vmem:[%s510 + $0x40] sm:$0xff]
      %v520 = vld [vmem:[%s510 + $0x48] sm:$0xff]
      %v521 = vld [vmem:[%s510 + $0x50] sm:$0xff]
      %v522 = vld [vmem:[%s510 + $0x58] sm:$0xff]
      %v523 = vld [vmem:[%s510 + $0x60] sm:$0xff]
      %v524 = vld [vmem:[%s510 + $0x68] sm:$0xff]
      %v525 = vld [vmem:[%s510 + $0x70] sm:$0xff]
      %v526 = vld [vmem:[%s510 + $0x78] sm:$0xff]
      %v527 = vlaneseq
      %v528 = vshrl.u32 %v527, 7
      %v529 = vsub.s32 3, %v528
      %v530 = vrot.slane %v392, %v529
      %531 = vmatprep.subr.mxu0 0.0
      %532 = vmatpush1.msra.mxu0 %v526
      %533 = vmatprep.subr.mxu0 0.0
      %534 = vmatpush1.msra.mxu0 %v525
      %535 = vmatprep.subr.mxu0 0.0
      %536 = vmatpush1.msra.mxu0 %v524
      %537 = vmatprep.subr.mxu0 0.0
      %538 = vmatpush1.msra.mxu0 %v523
      %539 = vmatprep.subr.mxu0 0.0
      %540 = vmatpush1.msra.mxu0 %v522
      %541 = vmatprep.subr.mxu0 0.0
      %542 = vmatpush1.msra.mxu0 %v521
      %543 = vmatprep.subr.mxu0 0.0
      %544 = vmatpush1.msra.mxu0 %v520
      %545 = vmatprep.subr.mxu0 0.0
      %546 = vmatpush1.msra.mxu0 %v519
      %547 = vmatprep.subr.mxu0 0.0
      %548 = vmatpush1.msra.mxu0 %v518
      %549 = vmatprep.subr.mxu0 0.0
      %550 = vmatpush1.msra.mxu0 %v517
      %551 = vmatprep.subr.mxu0 0.0
      %552 = vmatpush1.msra.mxu0 %v516
      %553 = vmatprep.subr.mxu0 0.0
      %554 = vmatpush1.msra.mxu0 %v515
      %555 = vmatprep.subr.mxu0 0.0
      %556 = vmatpush1.msra.mxu0 %v514
      %557 = vmatprep.subr.mxu0 0.0
      %558 = vmatpush1.msra.mxu0 %v513
      %559 = vmatprep.subr.mxu0 0.0
      %560 = vmatpush1.msra.mxu0 %v512
      %561 = vmatprep.subr.mxu0 0.0
      %562 = vmatpush1.msra.mxu0 %v511
      %563 = vmatprep.subr.mxu0 0.0
      %564 = vmatpush2.msra.mxu0 0.0
      %565 = vmatprep.subr.mxu0 0.0
      %566 = vmatpush2.msra.mxu0 0.0
      %567 = vmatprep.subr.mxu0 0.0
      %568 = vmatpush2.msra.mxu0 0.0
      %569 = vmatprep.subr.mxu0 0.0
      %570 = vmatpush2.msra.mxu0 0.0
      %571 = vmatprep.subr.mxu0 0.0
      %572 = vmatpush2.msra.mxu0 0.0
      %573 = vmatprep.subr.mxu0 0.0
      %574 = vmatpush2.msra.mxu0 0.0
      %575 = vmatprep.subr.mxu0 0.0
      %576 = vmatpush2.msra.mxu0 0.0
      %577 = vmatprep.subr.mxu0 0.0
      %578 = vmatpush2.msra.mxu0 0.0
      %579 = vmatprep.subr.mxu0 0.0
      %580 = vmatpush2.msra.mxu0 0.0
      %581 = vmatprep.subr.mxu0 0.0
      %582 = vmatpush2.msra.mxu0 0.0
      %583 = vmatprep.subr.mxu0 0.0
      %584 = vmatpush2.msra.mxu0 0.0
      %585 = vmatprep.subr.mxu0 0.0
      %586 = vmatpush2.msra.mxu0 0.0
      %587 = vmatprep.subr.mxu0 0.0
      %588 = vmatpush2.msra.mxu0 0.0
      %589 = vmatprep.subr.mxu0 0.0
      %590 = vmatpush2.msra.mxu0 0.0
      %591 = vmatprep.subr.mxu0 0.0
      %592 = vmatpush2.msra.mxu0 0.0
      %593 = vmatprep.subr.mxu0 0.0
      %594 = vmatpush2.msra.mxu0 0.0
      %595 = vmatprep.mubr.f32.mxu0 0.0
      %596 = vmatmul.mubr.f32.gmra.mxu0 %v507
      %v597 = vpop.f32.mrf.mxu0
      %v598 = vadd.f32 %v530, %v597
      %v599 = vpop.f32.mrf.mxu0
      %600 = vdwg.mxu0
      %v601 = vadd.f32 %v598, %v344
      %v602 = vsel %vm394, %v601, 0.0
      %603 = vadd.xlane.f32.xlu0 %v602
      %v604 = vpop.xlane.xlu0 %603
      %v605 = vmul.f32 %v604, 0.03125
      %v606 = vmul.f32 %v601, %v601
      %v607 = vsel %vm394, %v606, 0.0
      %608 = vadd.xlane.f32.xlu0 %v607
      %v609 = vpop.xlane.xlu0 %608
      %v610 = vmul.f32 %v609, 0.03125
      %v611 = vmul.f32 %v605, %v605
      %v612 = vsub.f32 %v610, %v611
      %v613 = vsub.f32 %v601, %v605
      %v614 = vadd.f32 %v612, 1e-06
      %v615 = vrsqrt.pop %v614
      %v616 = vmul.f32 %v613, %v615
      %v617 = vlaneseq
      %v618 = vshrl.u32 %v617, 7
      %v619 = vsub.s32 4, %v618
      %v620 = vrot.slane %v392, %v619
      %v621 = vmul.f32 %v616, %v620
      %v622 = vlaneseq
      %v623 = vshrl.u32 %v622, 7
      %v624 = vsub.s32 5, %v623
      %v625 = vrot.slane %v392, %v624
      %v626 = vadd.f32 %v621, %v625
      %s627 = scalar_lea.vmem %s332, 256
      %v628 = vld [vmem:[%s627] sm:$0xff]
      %v629 = vld [vmem:[%s627 + $0x8] sm:$0xff]
      %v630 = vld [vmem:[%s627 + $0x10] sm:$0xff]
      %v631 = vld [vmem:[%s627 + $0x18] sm:$0xff]
      %v632 = vld [vmem:[%s627 + $0x20] sm:$0xff]
      %v633 = vld [vmem:[%s627 + $0x28] sm:$0xff]
      %v634 = vld [vmem:[%s627 + $0x30] sm:$0xff]
      %v635 = vld [vmem:[%s627 + $0x38] sm:$0xff]
      %v636 = vld [vmem:[%s627 + $0x40] sm:$0xff]
      %v637 = vld [vmem:[%s627 + $0x48] sm:$0xff]
      %v638 = vld [vmem:[%s627 + $0x50] sm:$0xff]
      %v639 = vld [vmem:[%s627 + $0x58] sm:$0xff]
      %v640 = vld [vmem:[%s627 + $0x60] sm:$0xff]
      %v641 = vld [vmem:[%s627 + $0x68] sm:$0xff]
      %v642 = vld [vmem:[%s627 + $0x70] sm:$0xff]
      %v643 = vld [vmem:[%s627 + $0x78] sm:$0xff]
      %v644 = vlaneseq
      %v645 = vshrl.u32 %v644, 7
      %v646 = vsub.s32 6, %v645
      %v647 = vrot.slane %v392, %v646
      %648 = vmatprep.subr.mxu0 0.0
      %649 = vmatpush1.msra.mxu0 %v643
      %650 = vmatprep.subr.mxu0 0.0
      %651 = vmatpush1.msra.mxu0 %v642
      %652 = vmatprep.subr.mxu0 0.0
      %653 = vmatpush1.msra.mxu0 %v641
      %654 = vmatprep.subr.mxu0 0.0
      %655 = vmatpush1.msra.mxu0 %v640
      %656 = vmatprep.subr.mxu0 0.0
      %657 = vmatpush1.msra.mxu0 %v639
      %658 = vmatprep.subr.mxu0 0.0
      %659 = vmatpush1.msra.mxu0 %v638
      %660 = vmatprep.subr.mxu0 0.0
      %661 = vmatpush1.msra.mxu0 %v637
      %662 = vmatprep.subr.mxu0 0.0
      %663 = vmatpush1.msra.mxu0 %v636
      %664 = vmatprep.subr.mxu0 0.0
      %665 = vmatpush1.msra.mxu0 %v635
      %666 = vmatprep.subr.mxu0 0.0
      %667 = vmatpush1.msra.mxu0 %v634
      %668 = vmatprep.subr.mxu0 0.0
      %669 = vmatpush1.msra.mxu0 %v633
      %670 = vmatprep.subr.mxu0 0.0
      %671 = vmatpush1.msra.mxu0 %v632
      %672 = vmatprep.subr.mxu0 0.0
      %673 = vmatpush1.msra.mxu0 %v631
      %674 = vmatprep.subr.mxu0 0.0
      %675 = vmatpush1.msra.mxu0 %v630
      %676 = vmatprep.subr.mxu0 0.0
      %677 = vmatpush1.msra.mxu0 %v629
      %678 = vmatprep.subr.mxu0 0.0
      %679 = vmatpush1.msra.mxu0 %v628
      %680 = vmatprep.subr.mxu0 0.0
      %681 = vmatpush2.msra.mxu0 0.0
      %682 = vmatprep.subr.mxu0 0.0
      %683 = vmatpush2.msra.mxu0 0.0
      %684 = vmatprep.subr.mxu0 0.0
      %685 = vmatpush2.msra.mxu0 0.0
      %686 = vmatprep.subr.mxu0 0.0
      %687 = vmatpush2.msra.mxu0 0.0
      %688 = vmatprep.subr.mxu0 0.0
      %689 = vmatpush2.msra.mxu0 0.0
      %690 = vmatprep.subr.mxu0 0.0
      %691 = vmatpush2.msra.mxu0 0.0
      %692 = vmatprep.subr.mxu0 0.0
      %693 = vmatpush2.msra.mxu0 0.0
      %694 = vmatprep.subr.mxu0 0.0
      %695 = vmatpush2.msra.mxu0 0.0
      %696 = vmatprep.subr.mxu0 0.0
      %697 = vmatpush2.msra.mxu0 0.0
      %698 = vmatprep.subr.mxu0 0.0
      %699 = vmatpush2.msra.mxu0 0.0
      %700 = vmatprep.subr.mxu0 0.0
      %701 = vmatpush2.msra.mxu0 0.0
      %702 = vmatprep.subr.mxu0 0.0
      %703 = vmatpush2.msra.mxu0 0.0
      %704 = vmatprep.subr.mxu0 0.0
      %705 = vmatpush2.msra.mxu0 0.0
      %706 = vmatprep.subr.mxu0 0.0
      %707 = vmatpush2.msra.mxu0 0.0
      %708 = vmatprep.subr.mxu0 0.0
      %709 = vmatpush2.msra.mxu0 0.0
      %710 = vmatprep.subr.mxu0 0.0
      %711 = vmatpush2.msra.mxu0 0.0
      %712 = vmatprep.mubr.f32.mxu0 0.0
      %713 = vmatmul.mubr.f32.gmra.mxu0 %v626
      %v714 = vpop.f32.mrf.mxu0
      %v715 = vadd.f32 %v647, %v714
      %v716 = vpop.f32.mrf.mxu0
      %717 = vdwg.mxu0
      %s718 = scalar_lea.vmem %s332, 384
      %v719 = vld [vmem:[%s718] sm:$0xff]
      %v720 = vld [vmem:[%s718 + $0x8] sm:$0xff]
      %v721 = vld [vmem:[%s718 + $0x10] sm:$0xff]
      %v722 = vld [vmem:[%s718 + $0x18] sm:$0xff]
      %v723 = vld [vmem:[%s718 + $0x20] sm:$0xff]
      %v724 = vld [vmem:[%s718 + $0x28] sm:$0xff]
      %v725 = vld [vmem:[%s718 + $0x30] sm:$0xff]
      %v726 = vld [vmem:[%s718 + $0x38] sm:$0xff]
      %v727 = vld [vmem:[%s718 + $0x40] sm:$0xff]
      %v728 = vld [vmem:[%s718 + $0x48] sm:$0xff]
      %v729 = vld [vmem:[%s718 + $0x50] sm:$0xff]
      %v730 = vld [vmem:[%s718 + $0x58] sm:$0xff]
      %v731 = vld [vmem:[%s718 + $0x60] sm:$0xff]
      %v732 = vld [vmem:[%s718 + $0x68] sm:$0xff]
      %v733 = vld [vmem:[%s718 + $0x70] sm:$0xff]
      %v734 = vld [vmem:[%s718 + $0x78] sm:$0xff]
      %v735 = vlaneseq
      %v736 = vshrl.u32 %v735, 7
      %v737 = vsub.s32 7, %v736
      %v738 = vrot.slane %v392, %v737
      %739 = vmatprep.subr.mxu0 0.0
      %740 = vmatpush1.msra.mxu0 %v734
      %741 = vmatprep.subr.mxu0 0.0
      %742 = vmatpush1.msra.mxu0 %v733
      %743 = vmatprep.subr.mxu0 0.0
      %744 = vmatpush1.msra.mxu0 %v732
      %745 = vmatprep.subr.mxu0 0.0
      %746 = vmatpush1.msra.mxu0 %v731
      %747 = vmatprep.subr.mxu0 0.0
      %748 = vmatpush1.msra.mxu0 %v730
      %749 = vmatprep.subr.mxu0 0.0
      %750 = vmatpush1.msra.mxu0 %v729
      %751 = vmatprep.subr.mxu0 0.0
      %752 = vmatpush1.msra.mxu0 %v728
      %753 = vmatprep.subr.mxu0 0.0
      %754 = vmatpush1.msra.mxu0 %v727
      %755 = vmatprep.subr.mxu0 0.0
      %756 = vmatpush1.msra.mxu0 %v726
      %757 = vmatprep.subr.mxu0 0.0
      %758 = vmatpush1.msra.mxu0 %v725
      %759 = vmatprep.subr.mxu0 0.0
      %760 = vmatpush1.msra.mxu0 %v724
      %761 = vmatprep.subr.mxu0 0.0
      %762 = vmatpush1.msra.mxu0 %v723
      %763 = vmatprep.subr.mxu0 0.0
      %764 = vmatpush1.msra.mxu0 %v722
      %765 = vmatprep.subr.mxu0 0.0
      %766 = vmatpush1.msra.mxu0 %v721
      %767 = vmatprep.subr.mxu0 0.0
      %768 = vmatpush1.msra.mxu0 %v720
      %769 = vmatprep.subr.mxu0 0.0
      %770 = vmatpush1.msra.mxu0 %v719
      %771 = vmatprep.subr.mxu0 0.0
      %772 = vmatpush2.msra.mxu0 0.0
      %773 = vmatprep.subr.mxu0 0.0
      %774 = vmatpush2.msra.mxu0 0.0
      %775 = vmatprep.subr.mxu0 0.0
      %776 = vmatpush2.msra.mxu0 0.0
      %777 = vmatprep.subr.mxu0 0.0
      %778 = vmatpush2.msra.mxu0 0.0
      %779 = vmatprep.subr.mxu0 0.0
      %780 = vmatpush2.msra.mxu0 0.0
      %781 = vmatprep.subr.mxu0 0.0
      %782 = vmatpush2.msra.mxu0 0.0
      %783 = vmatprep.subr.mxu0 0.0
      %784 = vmatpush2.msra.mxu0 0.0
      %785 = vmatprep.subr.mxu0 0.0
      %786 = vmatpush2.msra.mxu0 0.0
      %787 = vmatprep.subr.mxu0 0.0
      %788 = vmatpush2.msra.mxu0 0.0
      %789 = vmatprep.subr.mxu0 0.0
      %790 = vmatpush2.msra.mxu0 0.0
      %791 = vmatprep.subr.mxu0 0.0
      %792 = vmatpush2.msra.mxu0 0.0
      %793 = vmatprep.subr.mxu0 0.0
      %794 = vmatpush2.msra.mxu0 0.0
      %795 = vmatprep.subr.mxu0 0.0
      %796 = vmatpush2.msra.mxu0 0.0
      %797 = vmatprep.subr.mxu0 0.0
      %798 = vmatpush2.msra.mxu0 0.0
      %799 = vmatprep.subr.mxu0 0.0
      %800 = vmatpush2.msra.mxu0 0.0
      %801 = vmatprep.subr.mxu0 0.0
      %802 = vmatpush2.msra.mxu0 0.0
      %803 = vmatprep.mubr.f32.mxu0 0.0
      %804 = vmatmul.mubr.f32.gmra.mxu0 %v345
      %v805 = vpop.f32.mrf.mxu0
      %v806 = vadd.f32 %v738, %v805
      %v807 = vpop.f32.mrf.mxu0
      %808 = vmatprep.mubr.f32.mxu0 0.0
      %809 = vmatmul.mubr.f32.gmra.mxu0 %v346
      %v810 = vpop.f32.mrf.mxu0
      %v811 = vadd.f32 %v738, %v810
      %v812 = vpop.f32.mrf.mxu0
      %813 = vmatprep.mubr.f32.mxu0 0.0
      %814 = vmatmul.mubr.f32.gmra.mxu0 %v347
      %v815 = vpop.f32.mrf.mxu0
      %v816 = vadd.f32 %v738, %v815
      %v817 = vpop.f32.mrf.mxu0
      %818 = vmatprep.mubr.f32.mxu0 0.0
      %819 = vmatmul.mubr.f32.gmra.mxu0 %v348
      %v820 = vpop.f32.mrf.mxu0
      %v821 = vadd.f32 %v738, %v820
      %v822 = vpop.f32.mrf.mxu0
      %823 = vdwg.mxu0
      %s824 = scalar_lea.vmem %s332, 512
      %v825 = vld [vmem:[%s824] sm:$0xff]
      %v826 = vld [vmem:[%s824 + $0x8] sm:$0xff]
      %v827 = vld [vmem:[%s824 + $0x10] sm:$0xff]
      %v828 = vld [vmem:[%s824 + $0x18] sm:$0xff]
      %v829 = vld [vmem:[%s824 + $0x20] sm:$0xff]
      %v830 = vld [vmem:[%s824 + $0x28] sm:$0xff]
      %v831 = vld [vmem:[%s824 + $0x30] sm:$0xff]
      %v832 = vld [vmem:[%s824 + $0x38] sm:$0xff]
      %v833 = vld [vmem:[%s824 + $0x40] sm:$0xff]
      %v834 = vld [vmem:[%s824 + $0x48] sm:$0xff]
      %v835 = vld [vmem:[%s824 + $0x50] sm:$0xff]
      %v836 = vld [vmem:[%s824 + $0x58] sm:$0xff]
      %v837 = vld [vmem:[%s824 + $0x60] sm:$0xff]
      %v838 = vld [vmem:[%s824 + $0x68] sm:$0xff]
      %v839 = vld [vmem:[%s824 + $0x70] sm:$0xff]
      %v840 = vld [vmem:[%s824 + $0x78] sm:$0xff]
      %v841 = vlaneseq
      %v842 = vshrl.u32 %v841, 7
      %v843 = vsub.s32 0, %v842
      %v844 = vrot.slane %v393, %v843
      %845 = vmatprep.subr.mxu0 0.0
      %846 = vmatpush1.msra.mxu0 %v840
      %847 = vmatprep.subr.mxu0 0.0
      %848 = vmatpush1.msra.mxu0 %v839
      %849 = vmatprep.subr.mxu0 0.0
      %850 = vmatpush1.msra.mxu0 %v838
      %851 = vmatprep.subr.mxu0 0.0
      %852 = vmatpush1.msra.mxu0 %v837
      %853 = vmatprep.subr.mxu0 0.0
      %854 = vmatpush1.msra.mxu0 %v836
      %855 = vmatprep.subr.mxu0 0.0
      %856 = vmatpush1.msra.mxu0 %v835
      %857 = vmatprep.subr.mxu0 0.0
      %858 = vmatpush1.msra.mxu0 %v834
      %859 = vmatprep.subr.mxu0 0.0
      %860 = vmatpush1.msra.mxu0 %v833
      %861 = vmatprep.subr.mxu0 0.0
      %862 = vmatpush1.msra.mxu0 %v832
      %863 = vmatprep.subr.mxu0 0.0
      %864 = vmatpush1.msra.mxu0 %v831
      %865 = vmatprep.subr.mxu0 0.0
      %866 = vmatpush1.msra.mxu0 %v830
      %867 = vmatprep.subr.mxu0 0.0
      %868 = vmatpush1.msra.mxu0 %v829
      %869 = vmatprep.subr.mxu0 0.0
      %870 = vmatpush1.msra.mxu0 %v828
      %871 = vmatprep.subr.mxu0 0.0
      %872 = vmatpush1.msra.mxu0 %v827
      %873 = vmatprep.subr.mxu0 0.0
      %874 = vmatpush1.msra.mxu0 %v826
      %875 = vmatprep.subr.mxu0 0.0
      %876 = vmatpush1.msra.mxu0 %v825
      %877 = vmatprep.subr.mxu0 0.0
      %878 = vmatpush2.msra.mxu0 0.0
      %879 = vmatprep.subr.mxu0 0.0
      %880 = vmatpush2.msra.mxu0 0.0
      %881 = vmatprep.subr.mxu0 0.0
      %882 = vmatpush2.msra.mxu0 0.0
      %883 = vmatprep.subr.mxu0 0.0
      %884 = vmatpush2.msra.mxu0 0.0
      %885 = vmatprep.subr.mxu0 0.0
      %886 = vmatpush2.msra.mxu0 0.0
      %887 = vmatprep.subr.mxu0 0.0
      %888 = vmatpush2.msra.mxu0 0.0
      %889 = vmatprep.subr.mxu0 0.0
      %890 = vmatpush2.msra.mxu0 0.0
      %891 = vmatprep.subr.mxu0 0.0
      %892 = vmatpush2.msra.mxu0 0.0
      %893 = vmatprep.subr.mxu0 0.0
      %894 = vmatpush2.msra.mxu0 0.0
      %895 = vmatprep.subr.mxu0 0.0
      %896 = vmatpush2.msra.mxu0 0.0
      %897 = vmatprep.subr.mxu0 0.0
      %898 = vmatpush2.msra.mxu0 0.0
      %899 = vmatprep.subr.mxu0 0.0
      %900 = vmatpush2.msra.mxu0 0.0
      %901 = vmatprep.subr.mxu0 0.0
      %902 = vmatpush2.msra.mxu0 0.0
      %903 = vmatprep.subr.mxu0 0.0
      %904 = vmatpush2.msra.mxu0 0.0
      %905 = vmatprep.subr.mxu0 0.0
      %906 = vmatpush2.msra.mxu0 0.0
      %907 = vmatprep.subr.mxu0 0.0
      %908 = vmatpush2.msra.mxu0 0.0
      %909 = vmatprep.mubr.f32.mxu0 0.0
      %910 = vmatmul.mubr.f32.gmra.mxu0 %v345
      %v911 = vpop.f32.mrf.mxu0
      %v912 = vadd.f32 %v844, %v911
      %v913 = vpop.f32.mrf.mxu0
      %914 = vmatprep.mubr.f32.mxu0 0.0
      %915 = vmatmul.mubr.f32.gmra.mxu0 %v346
      %v916 = vpop.f32.mrf.mxu0
      %v917 = vadd.f32 %v844, %v916
      %v918 = vpop.f32.mrf.mxu0
      %919 = vmatprep.mubr.f32.mxu0 0.0
      %920 = vmatmul.mubr.f32.gmra.mxu0 %v347
      %v921 = vpop.f32.mrf.mxu0
      %v922 = vadd.f32 %v844, %v921
      %v923 = vpop.f32.mrf.mxu0
      %924 = vmatprep.mubr.f32.mxu0 0.0
      %925 = vmatmul.mubr.f32.gmra.mxu0 %v348
      %v926 = vpop.f32.mrf.mxu0
      %v927 = vadd.f32 %v844, %v926
      %v928 = vpop.f32.mrf.mxu0
      %929 = vdwg.mxu0
      %vm930 = vcmask 228352
      %v932 = vsel %vm930, %v350, 0
      %v935 = vsel %vm930, %v351, 0
      %v938 = vsel %vm930, %v352, 0
      %v941 = vsel %vm930, %v353, 0
      %v944 = vsel %vm930, %v354, 0
      %v947 = vsel %vm930, %v355, 0
      %v950 = vsel %vm930, %v356, 0
      %v953 = vsel %vm930, %v357, 0
      %v956 = vsel %vm930, %v358, 0
      %v959 = vsel %vm930, %v359, 0
      %v962 = vsel %vm930, %v360, 0
      %v965 = vsel %vm930, %v361, 0
      %v968 = vsel %vm930, %v362, 0
      %v971 = vsel %vm930, %v363, 0
      %v974 = vsel %vm394, %v821, 0
      %976 = vmatprep.subr.mxu0 0.0
      %977 = vmatpush1.msra.mxu0 0.0
      %978 = vmatprep.subr.mxu0 0.0
      %979 = vmatpush1.msra.mxu0 0.0
      %980 = vmatprep.subr.mxu0 0.0
      %981 = vmatpush1.msra.mxu0 0.0
      %982 = vmatprep.subr.mxu0 0.0
      %983 = vmatpush1.msra.mxu0 0.0
      %984 = vmatprep.subr.mxu0 0.0
      %985 = vmatpush1.msra.mxu0 0.0
      %986 = vmatprep.subr.mxu0 0.0
      %987 = vmatpush1.msra.mxu0 0.0
      %988 = vmatprep.subr.mxu0 0.0
      %989 = vmatpush1.msra.mxu0 0.0
      %990 = vmatprep.subr.mxu0 0.0
      %991 = vmatpush1.msra.mxu0 0.0
      %992 = vmatprep.subr.mxu0 0.0
      %993 = vmatpush1.msra.mxu0 0.0
      %994 = vmatprep.subr.mxu0 0.0
      %995 = vmatpush1.msra.mxu0 0.0
      %996 = vmatprep.subr.mxu0 0.0
      %997 = vmatpush1.msra.mxu0 0.0
      %998 = vmatprep.subr.mxu0 0.0
      %999 = vmatpush1.msra.mxu0 0.0
      %1000 = vmatprep.subr.mxu0 0.0
      %1001 = vmatpush1.msra.mxu0 %v974
      %1002 = vmatprep.subr.mxu0 0.0
      %1003 = vmatpush1.msra.mxu0 %v816
      %1004 = vmatprep.subr.mxu0 0.0
      %1005 = vmatpush1.msra.mxu0 %v811
      %1006 = vmatprep.subr.mxu0 0.0
      %1007 = vmatpush1.msra.mxu0 %v806
      %1008 = vmatprep.subr.mxu0 0.0
      %1009 = vmatpush2.msra.mxu0 0.0
      %1010 = vmatprep.subr.mxu0 0.0
      %1011 = vmatpush2.msra.mxu0 0.0
      %1012 = vmatprep.subr.mxu0 0.0
      %1013 = vmatpush2.msra.mxu0 0.0
      %1014 = vmatprep.subr.mxu0 0.0
      %1015 = vmatpush2.msra.mxu0 0.0
      %1016 = vmatprep.subr.mxu0 0.0
      %1017 = vmatpush2.msra.mxu0 0.0
      %1018 = vmatprep.subr.mxu0 0.0
      %1019 = vmatpush2.msra.mxu0 0.0
      %1020 = vmatprep.subr.mxu0 0.0
      %1021 = vmatpush2.msra.mxu0 0.0
      %1022 = vmatprep.subr.mxu0 0.0
      %1023 = vmatpush2.msra.mxu0 0.0
      %1024 = vmatprep.subr.mxu0 0.0
      %1025 = vmatpush2.msra.mxu0 0.0
      %1026 = vmatprep.subr.mxu0 0.0
      %1027 = vmatpush2.msra.mxu0 0.0
      %1028 = vmatprep.subr.mxu0 0.0
      %1029 = vmatpush2.msra.mxu0 0.0
      %1030 = vmatprep.subr.mxu0 0.0
      %1031 = vmatpush2.msra.mxu0 0.0
      %1032 = vmatprep.subr.mxu0 0.0
      %1033 = vmatpush2.msra.mxu0 0.0
      %1034 = vmatprep.subr.mxu0 0.0
      %1035 = vmatpush2.msra.mxu0 0.0
      %1036 = vmatprep.subr.mxu0 0.0
      %1037 = vmatpush2.msra.mxu0 0.0
      %1038 = vmatprep.subr.mxu0 0.0
      %1039 = vmatpush2.msra.mxu0 0.0
      %1040 = vmatprep.mubr.f32.mxu0 0.0
      %1041 = vmatmul.mubr.f32.gmra.mxu0 %v932
      %v1042 = vpop.f32.mrf.mxu0
      %v1043 = vadd.f32 0.0, %v1042
      %v1044 = vpop.f32.mrf.mxu0
      %1045 = vmatprep.mubr.f32.mxu0 0.0
      %1046 = vmatmul.mubr.f32.gmra.mxu0 %v935
      %v1047 = vpop.f32.mrf.mxu0
      %v1048 = vadd.f32 0.0, %v1047
      %v1049 = vpop.f32.mrf.mxu0
      %1050 = vmatprep.mubr.f32.mxu0 0.0
      %1051 = vmatmul.mubr.f32.gmra.mxu0 %v938
      %v1052 = vpop.f32.mrf.mxu0
      %v1053 = vadd.f32 0.0, %v1052
      %v1054 = vpop.f32.mrf.mxu0
      %1055 = vmatprep.mubr.f32.mxu0 0.0
      %1056 = vmatmul.mubr.f32.gmra.mxu0 %v941
      %v1057 = vpop.f32.mrf.mxu0
      %v1058 = vadd.f32 0.0, %v1057
      %v1059 = vpop.f32.mrf.mxu0
      %1060 = vmatprep.mubr.f32.mxu0 0.0
      %1061 = vmatmul.mubr.f32.gmra.mxu0 %v944
      %v1062 = vpop.f32.mrf.mxu0
      %v1063 = vadd.f32 0.0, %v1062
      %v1064 = vpop.f32.mrf.mxu0
      %1065 = vmatprep.mubr.f32.mxu0 0.0
      %1066 = vmatmul.mubr.f32.gmra.mxu0 %v947
      %v1067 = vpop.f32.mrf.mxu0
      %v1068 = vadd.f32 0.0, %v1067
      %v1069 = vpop.f32.mrf.mxu0
      %1070 = vmatprep.mubr.f32.mxu0 0.0
      %1071 = vmatmul.mubr.f32.gmra.mxu0 %v950
      %v1072 = vpop.f32.mrf.mxu0
      %v1073 = vadd.f32 0.0, %v1072
      %v1074 = vpop.f32.mrf.mxu0
      %1075 = vmatprep.mubr.f32.mxu0 0.0
      %1076 = vmatmul.mubr.f32.gmra.mxu0 %v953
      %v1077 = vpop.f32.mrf.mxu0
      %v1078 = vadd.f32 0.0, %v1077
      %v1079 = vpop.f32.mrf.mxu0
      %1080 = vmatprep.mubr.f32.mxu0 0.0
      %1081 = vmatmul.mubr.f32.gmra.mxu0 %v956
      %v1082 = vpop.f32.mrf.mxu0
      %v1083 = vadd.f32 0.0, %v1082
      %v1084 = vpop.f32.mrf.mxu0
      %1085 = vmatprep.mubr.f32.mxu0 0.0
      %1086 = vmatmul.mubr.f32.gmra.mxu0 %v959
      %v1087 = vpop.f32.mrf.mxu0
      %v1088 = vadd.f32 0.0, %v1087
      %v1089 = vpop.f32.mrf.mxu0
      %1090 = vmatprep.mubr.f32.mxu0 0.0
      %1091 = vmatmul.mubr.f32.gmra.mxu0 %v962
      %v1092 = vpop.f32.mrf.mxu0
      %v1093 = vadd.f32 0.0, %v1092
      %v1094 = vpop.f32.mrf.mxu0
      %1095 = vmatprep.mubr.f32.mxu0 0.0
      %1096 = vmatmul.mubr.f32.gmra.mxu0 %v965
      %v1097 = vpop.f32.mrf.mxu0
      %v1098 = vadd.f32 0.0, %v1097
      %v1099 = vpop.f32.mrf.mxu0
      %1100 = vmatprep.mubr.f32.mxu0 0.0
      %1101 = vmatmul.mubr.f32.gmra.mxu0 %v968
      %v1102 = vpop.f32.mrf.mxu0
      %v1103 = vadd.f32 0.0, %v1102
      %v1104 = vpop.f32.mrf.mxu0
      %1105 = vmatprep.mubr.f32.mxu0 0.0
      %1106 = vmatmul.mubr.f32.gmra.mxu0 %v971
      %v1107 = vpop.f32.mrf.mxu0
      %v1108 = vadd.f32 0.0, %v1107
      %v1109 = vpop.f32.mrf.mxu0
      %1110 = vdwg.mxu0
      %v1111 = vmul.f32 %v1043, %v364
      %v1112 = vmul.f32 %v1048, %v365
      %v1113 = vmul.f32 %v1053, %v366
      %v1114 = vmul.f32 %v1058, %v367
      %v1115 = vmul.f32 %v1063, %v368
      %v1116 = vmul.f32 %v1068, %v369
      %v1117 = vmul.f32 %v1073, %v370
      %v1118 = vmul.f32 %v1078, %v371
      %v1119 = vmul.f32 %v1083, %v372
      %v1120 = vmul.f32 %v1088, %v373
      %v1121 = vmul.f32 %v1093, %v374
      %v1122 = vmul.f32 %v1098, %v375
      %v1123 = vmul.f32 %v1103, %v376
      %v1124 = vmul.f32 %v1108, %v377
      %v1126 = vsel %vm394, %v927, 0
      %1128 = vmatprep.subr.mxu0 0.0
      %1129 = vmatpush1.msra.mxu0 0.0
      %1130 = vmatprep.subr.mxu0 0.0
      %1131 = vmatpush1.msra.mxu0 0.0
      %1132 = vmatprep.subr.mxu0 0.0
      %1133 = vmatpush1.msra.mxu0 0.0
      %1134 = vmatprep.subr.mxu0 0.0
      %1135 = vmatpush1.msra.mxu0 0.0
      %1136 = vmatprep.subr.mxu0 0.0
      %1137 = vmatpush1.msra.mxu0 0.0
      %1138 = vmatprep.subr.mxu0 0.0
      %1139 = vmatpush1.msra.mxu0 0.0
      %1140 = vmatprep.subr.mxu0 0.0
      %1141 = vmatpush1.msra.mxu0 0.0
      %1142 = vmatprep.subr.mxu0 0.0
      %1143 = vmatpush1.msra.mxu0 0.0
      %1144 = vmatprep.subr.mxu0 0.0
      %1145 = vmatpush1.msra.mxu0 0.0
      %1146 = vmatprep.subr.mxu0 0.0
      %1147 = vmatpush1.msra.mxu0 0.0
      %1148 = vmatprep.subr.mxu0 0.0
      %1149 = vmatpush1.msra.mxu0 0.0
      %1150 = vmatprep.subr.mxu0 0.0
      %1151 = vmatpush1.msra.mxu0 0.0
      %1152 = vmatprep.subr.mxu0 0.0
      %1153 = vmatpush1.msra.mxu0 %v1126
      %1154 = vmatprep.subr.mxu0 0.0
      %1155 = vmatpush1.msra.mxu0 %v922
      %1156 = vmatprep.subr.mxu0 0.0
      %1157 = vmatpush1.msra.mxu0 %v917
      %1158 = vmatprep.subr.mxu0 0.0
      %1159 = vmatpush1.msra.mxu0 %v912
      %1160 = vmatprep.subr.mxu0 0.0
      %1161 = vmatpush2.msra.mxu0 0.0
      %1162 = vmatprep.subr.mxu0 0.0
      %1163 = vmatpush2.msra.mxu0 0.0
      %1164 = vmatprep.subr.mxu0 0.0
      %1165 = vmatpush2.msra.mxu0 0.0
      %1166 = vmatprep.subr.mxu0 0.0
      %1167 = vmatpush2.msra.mxu0 0.0
      %1168 = vmatprep.subr.mxu0 0.0
      %1169 = vmatpush2.msra.mxu0 0.0
      %1170 = vmatprep.subr.mxu0 0.0
      %1171 = vmatpush2.msra.mxu0 0.0
      %1172 = vmatprep.subr.mxu0 0.0
      %1173 = vmatpush2.msra.mxu0 0.0
      %1174 = vmatprep.subr.mxu0 0.0
      %1175 = vmatpush2.msra.mxu0 0.0
      %1176 = vmatprep.subr.mxu0 0.0
      %1177 = vmatpush2.msra.mxu0 0.0
      %1178 = vmatprep.subr.mxu0 0.0
      %1179 = vmatpush2.msra.mxu0 0.0
      %1180 = vmatprep.subr.mxu0 0.0
      %1181 = vmatpush2.msra.mxu0 0.0
      %1182 = vmatprep.subr.mxu0 0.0
      %1183 = vmatpush2.msra.mxu0 0.0
      %1184 = vmatprep.subr.mxu0 0.0
      %1185 = vmatpush2.msra.mxu0 0.0
      %1186 = vmatprep.subr.mxu0 0.0
      %1187 = vmatpush2.msra.mxu0 0.0
      %1188 = vmatprep.subr.mxu0 0.0
      %1189 = vmatpush2.msra.mxu0 0.0
      %1190 = vmatprep.subr.mxu0 0.0
      %1191 = vmatpush2.msra.mxu0 0.0
      %1192 = vmatprep.mubr.f32.mxu0 0.0
      %1193 = vmatmul.mubr.f32.gmra.mxu0 %v932
      %v1194 = vpop.f32.mrf.mxu0
      %v1195 = vadd.f32 0.0, %v1194
      %v1196 = vpop.f32.mrf.mxu0
      %1197 = vmatprep.mubr.f32.mxu0 0.0
      %1198 = vmatmul.mubr.f32.gmra.mxu0 %v935
      %v1199 = vpop.f32.mrf.mxu0
      %v1200 = vadd.f32 0.0, %v1199
      %v1201 = vpop.f32.mrf.mxu0
      %1202 = vmatprep.mubr.f32.mxu0 0.0
      %1203 = vmatmul.mubr.f32.gmra.mxu0 %v938
      %v1204 = vpop.f32.mrf.mxu0
      %v1205 = vadd.f32 0.0, %v1204
      %v1206 = vpop.f32.mrf.mxu0
      %1207 = vmatprep.mubr.f32.mxu0 0.0
      %1208 = vmatmul.mubr.f32.gmra.mxu0 %v941
      %v1209 = vpop.f32.mrf.mxu0
      %v1210 = vadd.f32 0.0, %v1209
      %v1211 = vpop.f32.mrf.mxu0
      %1212 = vmatprep.mubr.f32.mxu0 0.0
      %1213 = vmatmul.mubr.f32.gmra.mxu0 %v944
      %v1214 = vpop.f32.mrf.mxu0
      %v1215 = vadd.f32 0.0, %v1214
      %v1216 = vpop.f32.mrf.mxu0
      %1217 = vmatprep.mubr.f32.mxu0 0.0
      %1218 = vmatmul.mubr.f32.gmra.mxu0 %v947
      %v1219 = vpop.f32.mrf.mxu0
      %v1220 = vadd.f32 0.0, %v1219
      %v1221 = vpop.f32.mrf.mxu0
      %1222 = vmatprep.mubr.f32.mxu0 0.0
      %1223 = vmatmul.mubr.f32.gmra.mxu0 %v950
      %v1224 = vpop.f32.mrf.mxu0
      %v1225 = vadd.f32 0.0, %v1224
      %v1226 = vpop.f32.mrf.mxu0
      %1227 = vmatprep.mubr.f32.mxu0 0.0
      %1228 = vmatmul.mubr.f32.gmra.mxu0 %v953
      %v1229 = vpop.f32.mrf.mxu0
      %v1230 = vadd.f32 0.0, %v1229
      %v1231 = vpop.f32.mrf.mxu0
      %1232 = vmatprep.mubr.f32.mxu0 0.0
      %1233 = vmatmul.mubr.f32.gmra.mxu0 %v956
      %v1234 = vpop.f32.mrf.mxu0
      %v1235 = vadd.f32 0.0, %v1234
      %v1236 = vpop.f32.mrf.mxu0
      %1237 = vmatprep.mubr.f32.mxu0 0.0
      %1238 = vmatmul.mubr.f32.gmra.mxu0 %v959
      %v1239 = vpop.f32.mrf.mxu0
      %v1240 = vadd.f32 0.0, %v1239
      %v1241 = vpop.f32.mrf.mxu0
      %1242 = vmatprep.mubr.f32.mxu0 0.0
      %1243 = vmatmul.mubr.f32.gmra.mxu0 %v962
      %v1244 = vpop.f32.mrf.mxu0
      %v1245 = vadd.f32 0.0, %v1244
      %v1246 = vpop.f32.mrf.mxu0
      %1247 = vmatprep.mubr.f32.mxu0 0.0
      %1248 = vmatmul.mubr.f32.gmra.mxu0 %v965
      %v1249 = vpop.f32.mrf.mxu0
      %v1250 = vadd.f32 0.0, %v1249
      %v1251 = vpop.f32.mrf.mxu0
      %1252 = vmatprep.mubr.f32.mxu0 0.0
      %1253 = vmatmul.mubr.f32.gmra.mxu0 %v968
      %v1254 = vpop.f32.mrf.mxu0
      %v1255 = vadd.f32 0.0, %v1254
      %v1256 = vpop.f32.mrf.mxu0
      %1257 = vmatprep.mubr.f32.mxu0 0.0
      %1258 = vmatmul.mubr.f32.gmra.mxu0 %v971
      %v1259 = vpop.f32.mrf.mxu0
      %v1260 = vadd.f32 0.0, %v1259
      %v1261 = vpop.f32.mrf.mxu0
      %1262 = vdwg.mxu0
      %v1263 = vmul.f32 %v1195, %v364
      %v1264 = vmul.f32 %v1200, %v365
      %v1265 = vmul.f32 %v1205, %v366
      %v1266 = vmul.f32 %v1210, %v367
      %v1267 = vmul.f32 %v1215, %v368
      %v1268 = vmul.f32 %v1220, %v369
      %v1269 = vmul.f32 %v1225, %v370
      %v1270 = vmul.f32 %v1230, %v371
      %v1271 = vmul.f32 %v1235, %v372
      %v1272 = vmul.f32 %v1240, %v373
      %v1273 = vmul.f32 %v1245, %v374
      %v1274 = vmul.f32 %v1250, %v375
      %v1275 = vmul.f32 %v1255, %v376
      %v1276 = vmul.f32 %v1260, %v377
      %v1277 = vmul.f32 %v715, 0.35355338
      %1278 = vmatprep.subr.mxu0 0.0
      %1279 = vmatpush1.xpose.msra.mxu0 0.0
      %1280 = vmatprep.subr.mxu0 0.0
      %1281 = vmatpush1.xpose.msra.mxu0 0.0
      %1282 = vmatprep.subr.mxu0 0.0
      %1283 = vmatpush1.xpose.msra.mxu0 %v1124
      %1284 = vmatprep.subr.mxu0 0.0
      %1285 = vmatpush1.xpose.msra.mxu0 %v1123
      %1286 = vmatprep.subr.mxu0 0.0
      %1287 = vmatpush1.xpose.msra.mxu0 %v1122
      %1288 = vmatprep.subr.mxu0 0.0
      %1289 = vmatpush1.xpose.msra.mxu0 %v1121
      %1290 = vmatprep.subr.mxu0 0.0
      %1291 = vmatpush1.xpose.msra.mxu0 %v1120
      %1292 = vmatprep.subr.mxu0 0.0
      %1293 = vmatpush1.xpose.msra.mxu0 %v1119
      %1294 = vmatprep.subr.mxu0 0.0
      %1295 = vmatpush1.xpose.msra.mxu0 %v1118
      %1296 = vmatprep.subr.mxu0 0.0
      %1297 = vmatpush1.xpose.msra.mxu0 %v1117
      %1298 = vmatprep.subr.mxu0 0.0
      %1299 = vmatpush1.xpose.msra.mxu0 %v1116
      %1300 = vmatprep.subr.mxu0 0.0
      %1301 = vmatpush1.xpose.msra.mxu0 %v1115
      %1302 = vmatprep.subr.mxu0 0.0
      %1303 = vmatpush1.xpose.msra.mxu0 %v1114
      %1304 = vmatprep.subr.mxu0 0.0
      %1305 = vmatpush1.xpose.msra.mxu0 %v1113
      %1306 = vmatprep.subr.mxu0 0.0
      %1307 = vmatpush1.xpose.msra.mxu0 %v1112
      %1308 = vmatprep.subr.mxu0 0.0
      %1309 = vmatpush1.xpose.msra.mxu0 %v1111
      %1310 = vmatprep.subr.mxu0 0.0
      %1311 = vmatpush2.xpose.msra.mxu0 0.0
      %1312 = vmatprep.subr.mxu0 0.0
      %1313 = vmatpush2.xpose.msra.mxu0 0.0
      %1314 = vmatprep.subr.mxu0 0.0
      %1315 = vmatpush2.xpose.msra.mxu0 0.0
      %1316 = vmatprep.subr.mxu0 0.0
      %1317 = vmatpush2.xpose.msra.mxu0 0.0
      %1318 = vmatprep.subr.mxu0 0.0
      %1319 = vmatpush2.xpose.msra.mxu0 0.0
      %1320 = vmatprep.subr.mxu0 0.0
      %1321 = vmatpush2.xpose.msra.mxu0 0.0
      %1322 = vmatprep.subr.mxu0 0.0
      %1323 = vmatpush2.xpose.msra.mxu0 0.0
      %1324 = vmatprep.subr.mxu0 0.0
      %1325 = vmatpush2.xpose.msra.mxu0 0.0
      %1326 = vmatprep.subr.mxu0 0.0
      %1327 = vmatpush2.xpose.msra.mxu0 0.0
      %1328 = vmatprep.subr.mxu0 0.0
      %1329 = vmatpush2.xpose.msra.mxu0 0.0
      %1330 = vmatprep.subr.mxu0 0.0
      %1331 = vmatpush2.xpose.msra.mxu0 0.0
      %1332 = vmatprep.subr.mxu0 0.0
      %1333 = vmatpush2.xpose.msra.mxu0 0.0
      %1334 = vmatprep.subr.mxu0 0.0
      %1335 = vmatpush2.xpose.msra.mxu0 0.0
      %1336 = vmatprep.subr.mxu0 0.0
      %1337 = vmatpush2.xpose.msra.mxu0 0.0
      %1338 = vmatprep.subr.mxu0 0.0
      %1339 = vmatpush2.xpose.msra.mxu0 0.0
      %1340 = vmatprep.subr.mxu0 0.0
      %1341 = vmatpush2.xpose.msra.mxu0 0.0
      %1342 = vmatprep.mubr.f32.mxu0 0.0
      %1343 = vmatmul.mubr.f32.gmra.mxu0 %v1277
      %v1344 = vpop.f32.mrf.mxu0
      %v1345 = vadd.f32 0.0, %v1344
      %v1346 = vpop.f32.mrf.mxu0
      %1347 = vdwg.mxu0
      %vm1348 = vcmp.ne.f32.partialorder %v349, 0.0
      %v1349 = vsel %vm1348, -1e+18, %v1345
      %vm1350 = vcmask 912384
      %v1351 = vsel %vm1350, %v1349, -inf
      %1352 = vmax.xlane.f32.xlu0 %v1351
      %v1353 = vpop.xlane.xlu0 %1352
      %v1354 = vsub.f32 %v1349, %v1353
      %v1355 = vmul.f32 %v1354, 1.442695
      %v1356 = vpow.pop %v1355
      %v1357 = vsel %vm1348, 0.0, %v1356
      %vm1358 = vcmask 916480
      %v1360 = vsel %vm1358, %v1357, 0
      %1362 = vmatprep.subr.mxu0 0.0
      %1363 = vmatpush1.msra.mxu0 0.0
      %1364 = vmatprep.subr.mxu0 0.0
      %1365 = vmatpush1.msra.mxu0 0.0
      %1366 = vmatprep.subr.mxu0 0.0
      %1367 = vmatpush1.msra.mxu0 %v391
      %1368 = vmatprep.subr.mxu0 0.0
      %1369 = vmatpush1.msra.mxu0 %v390
      %1370 = vmatprep.subr.mxu0 0.0
      %1371 = vmatpush1.msra.mxu0 %v389
      %1372 = vmatprep.subr.mxu0 0.0
      %1373 = vmatpush1.msra.mxu0 %v388
      %1374 = vmatprep.subr.mxu0 0.0
      %1375 = vmatpush1.msra.mxu0 %v387
      %1376 = vmatprep.subr.mxu0 0.0
      %1377 = vmatpush1.msra.mxu0 %v386
      %1378 = vmatprep.subr.mxu0 0.0
      %1379 = vmatpush1.msra.mxu0 %v385
      %1380 = vmatprep.subr.mxu0 0.0
      %1381 = vmatpush1.msra.mxu0 %v384
      %1382 = vmatprep.subr.mxu0 0.0
      %1383 = vmatpush1.msra.mxu0 %v383
      %1384 = vmatprep.subr.mxu0 0.0
      %1385 = vmatpush1.msra.mxu0 %v382
      %1386 = vmatprep.subr.mxu0 0.0
      %1387 = vmatpush1.msra.mxu0 %v381
      %1388 = vmatprep.subr.mxu0 0.0
      %1389 = vmatpush1.msra.mxu0 %v380
      %1390 = vmatprep.subr.mxu0 0.0
      %1391 = vmatpush1.msra.mxu0 %v379
      %1392 = vmatprep.subr.mxu0 0.0
      %1393 = vmatpush1.msra.mxu0 %v378
      %1394 = vmatprep.subr.mxu0 0.0
      %1395 = vmatpush2.msra.mxu0 0.0
      %1396 = vmatprep.subr.mxu0 0.0
      %1397 = vmatpush2.msra.mxu0 0.0
      %1398 = vmatprep.subr.mxu0 0.0
      %1399 = vmatpush2.msra.mxu0 0.0
      %1400 = vmatprep.subr.mxu0 0.0
      %1401 = vmatpush2.msra.mxu0 0.0
      %1402 = vmatprep.subr.mxu0 0.0
      %1403 = vmatpush2.msra.mxu0 0.0
      %1404 = vmatprep.subr.mxu0 0.0
      %1405 = vmatpush2.msra.mxu0 0.0
      %1406 = vmatprep.subr.mxu0 0.0
      %1407 = vmatpush2.msra.mxu0 0.0
      %1408 = vmatprep.subr.mxu0 0.0
      %1409 = vmatpush2.msra.mxu0 0.0
      %1410 = vmatprep.subr.mxu0 0.0
      %1411 = vmatpush2.msra.mxu0 0.0
      %1412 = vmatprep.subr.mxu0 0.0
      %1413 = vmatpush2.msra.mxu0 0.0
      %1414 = vmatprep.subr.mxu0 0.0
      %1415 = vmatpush2.msra.mxu0 0.0
      %1416 = vmatprep.subr.mxu0 0.0
      %1417 = vmatpush2.msra.mxu0 0.0
      %1418 = vmatprep.subr.mxu0 0.0
      %1419 = vmatpush2.msra.mxu0 0.0
      %1420 = vmatprep.subr.mxu0 0.0
      %1421 = vmatpush2.msra.mxu0 0.0
      %1422 = vmatprep.subr.mxu0 0.0
      %1423 = vmatpush2.msra.mxu0 0.0
      %1424 = vmatprep.subr.mxu0 0.0
      %1425 = vmatpush2.msra.mxu0 0.0
      %1426 = vmatprep.mubr.f32.mxu0 0.0
      %1427 = vmatmul.mubr.f32.gmra.mxu0 %v1360
      %v1428 = vpop.f32.mrf.mxu0
      %v1429 = vadd.f32 0.0, %v1428
      %v1430 = vpop.f32.mrf.mxu0
      %1431 = vdwg.mxu0
      %v1432 = vmax.f32 %v1429, 1e-30
      %v1433 = vrcp.pop %v1432
      %v1434 = vmul.f32 %v1357, %v1433
      %v1436 = vsel %vm1358, %v1434, 0
      %1438 = vmatprep.subr.mxu0 0.0
      %1439 = vmatpush1.msra.mxu0 0.0
      %1440 = vmatprep.subr.mxu0 0.0
      %1441 = vmatpush1.msra.mxu0 0.0
      %1442 = vmatprep.subr.mxu0 0.0
      %1443 = vmatpush1.msra.mxu0 %v1276
      %1444 = vmatprep.subr.mxu0 0.0
      %1445 = vmatpush1.msra.mxu0 %v1275
      %1446 = vmatprep.subr.mxu0 0.0
      %1447 = vmatpush1.msra.mxu0 %v1274
      %1448 = vmatprep.subr.mxu0 0.0
      %1449 = vmatpush1.msra.mxu0 %v1273
      %1450 = vmatprep.subr.mxu0 0.0
      %1451 = vmatpush1.msra.mxu0 %v1272
      %1452 = vmatprep.subr.mxu0 0.0
      %1453 = vmatpush1.msra.mxu0 %v1271
      %1454 = vmatprep.subr.mxu0 0.0
      %1455 = vmatpush1.msra.mxu0 %v1270
      %1456 = vmatprep.subr.mxu0 0.0
      %1457 = vmatpush1.msra.mxu0 %v1269
      %1458 = vmatprep.subr.mxu0 0.0
      %1459 = vmatpush1.msra.mxu0 %v1268
      %1460 = vmatprep.subr.mxu0 0.0
      %1461 = vmatpush1.msra.mxu0 %v1267
      %1462 = vmatprep.subr.mxu0 0.0
      %1463 = vmatpush1.msra.mxu0 %v1266
      %1464 = vmatprep.subr.mxu0 0.0
      %1465 = vmatpush1.msra.mxu0 %v1265
      %1466 = vmatprep.subr.mxu0 0.0
      %1467 = vmatpush1.msra.mxu0 %v1264
      %1468 = vmatprep.subr.mxu0 0.0
      %1469 = vmatpush1.msra.mxu0 %v1263
      %1470 = vmatprep.subr.mxu0 0.0
      %1471 = vmatpush2.msra.mxu0 0.0
      %1472 = vmatprep.subr.mxu0 0.0
      %1473 = vmatpush2.msra.mxu0 0.0
      %1474 = vmatprep.subr.mxu0 0.0
      %1475 = vmatpush2.msra.mxu0 0.0
      %1476 = vmatprep.subr.mxu0 0.0
      %1477 = vmatpush2.msra.mxu0 0.0
      %1478 = vmatprep.subr.mxu0 0.0
      %1479 = vmatpush2.msra.mxu0 0.0
      %1480 = vmatprep.subr.mxu0 0.0
      %1481 = vmatpush2.msra.mxu0 0.0
      %1482 = vmatprep.subr.mxu0 0.0
      %1483 = vmatpush2.msra.mxu0 0.0
      %1484 = vmatprep.subr.mxu0 0.0
      %1485 = vmatpush2.msra.mxu0 0.0
      %1486 = vmatprep.subr.mxu0 0.0
      %1487 = vmatpush2.msra.mxu0 0.0
      %1488 = vmatprep.subr.mxu0 0.0
      %1489 = vmatpush2.msra.mxu0 0.0
      %1490 = vmatprep.subr.mxu0 0.0
      %1491 = vmatpush2.msra.mxu0 0.0
      %1492 = vmatprep.subr.mxu0 0.0
      %1493 = vmatpush2.msra.mxu0 0.0
      %1494 = vmatprep.subr.mxu0 0.0
      %1495 = vmatpush2.msra.mxu0 0.0
      %1496 = vmatprep.subr.mxu0 0.0
      %1497 = vmatpush2.msra.mxu0 0.0
      %1498 = vmatprep.subr.mxu0 0.0
      %1499 = vmatpush2.msra.mxu0 0.0
      %1500 = vmatprep.subr.mxu0 0.0
      %1501 = vmatpush2.msra.mxu0 0.0
      %1502 = vmatprep.mubr.f32.mxu0 0.0
      %1503 = vmatmul.mubr.f32.gmra.mxu0 %v1436
      %v1504 = vpop.f32.mrf.mxu0
      %v1505 = vadd.f32 0.0, %v1504
      %v1506 = vpop.f32.mrf.mxu0
      %1507 = vdwg.mxu0
      %s1508 = scalar_lea.vmem %s332, 640
      %v1509 = vld [vmem:[%s1508] sm:$0xff]
      %v1510 = vld [vmem:[%s1508 + $0x8] sm:$0xff]
      %v1511 = vld [vmem:[%s1508 + $0x10] sm:$0xff]
      %v1512 = vld [vmem:[%s1508 + $0x18] sm:$0xff]
      %v1513 = vld [vmem:[%s1508 + $0x20] sm:$0xff]
      %v1514 = vld [vmem:[%s1508 + $0x28] sm:$0xff]
      %v1515 = vld [vmem:[%s1508 + $0x30] sm:$0xff]
      %v1516 = vld [vmem:[%s1508 + $0x38] sm:$0xff]
      %v1517 = vld [vmem:[%s1508 + $0x40] sm:$0xff]
      %v1518 = vld [vmem:[%s1508 + $0x48] sm:$0xff]
      %v1519 = vld [vmem:[%s1508 + $0x50] sm:$0xff]
      %v1520 = vld [vmem:[%s1508 + $0x58] sm:$0xff]
      %v1521 = vld [vmem:[%s1508 + $0x60] sm:$0xff]
      %v1522 = vld [vmem:[%s1508 + $0x68] sm:$0xff]
      %v1523 = vld [vmem:[%s1508 + $0x70] sm:$0xff]
      %v1524 = vld [vmem:[%s1508 + $0x78] sm:$0xff]
      %v1525 = vlaneseq
      %v1526 = vshrl.u32 %v1525, 7
      %v1527 = vsub.s32 1, %v1526
      %v1528 = vrot.slane %v393, %v1527
      %1529 = vmatprep.subr.mxu0 0.0
      %1530 = vmatpush1.msra.mxu0 %v1524
      %1531 = vmatprep.subr.mxu0 0.0
      %1532 = vmatpush1.msra.mxu0 %v1523
      %1533 = vmatprep.subr.mxu0 0.0
      %1534 = vmatpush1.msra.mxu0 %v1522
      %1535 = vmatprep.subr.mxu0 0.0
      %1536 = vmatpush1.msra.mxu0 %v1521
      %1537 = vmatprep.subr.mxu0 0.0
      %1538 = vmatpush1.msra.mxu0 %v1520
      %1539 = vmatprep.subr.mxu0 0.0
      %1540 = vmatpush1.msra.mxu0 %v1519
      %1541 = vmatprep.subr.mxu0 0.0
      %1542 = vmatpush1.msra.mxu0 %v1518
      %1543 = vmatprep.subr.mxu0 0.0
      %1544 = vmatpush1.msra.mxu0 %v1517
      %1545 = vmatprep.subr.mxu0 0.0
      %1546 = vmatpush1.msra.mxu0 %v1516
      %1547 = vmatprep.subr.mxu0 0.0
      %1548 = vmatpush1.msra.mxu0 %v1515
      %1549 = vmatprep.subr.mxu0 0.0
      %1550 = vmatpush1.msra.mxu0 %v1514
      %1551 = vmatprep.subr.mxu0 0.0
      %1552 = vmatpush1.msra.mxu0 %v1513
      %1553 = vmatprep.subr.mxu0 0.0
      %1554 = vmatpush1.msra.mxu0 %v1512
      %1555 = vmatprep.subr.mxu0 0.0
      %1556 = vmatpush1.msra.mxu0 %v1511
      %1557 = vmatprep.subr.mxu0 0.0
      %1558 = vmatpush1.msra.mxu0 %v1510
      %1559 = vmatprep.subr.mxu0 0.0
      %1560 = vmatpush1.msra.mxu0 %v1509
      %1561 = vmatprep.subr.mxu0 0.0
      %1562 = vmatpush2.msra.mxu0 0.0
      %1563 = vmatprep.subr.mxu0 0.0
      %1564 = vmatpush2.msra.mxu0 0.0
      %1565 = vmatprep.subr.mxu0 0.0
      %1566 = vmatpush2.msra.mxu0 0.0
      %1567 = vmatprep.subr.mxu0 0.0
      %1568 = vmatpush2.msra.mxu0 0.0
      %1569 = vmatprep.subr.mxu0 0.0
      %1570 = vmatpush2.msra.mxu0 0.0
      %1571 = vmatprep.subr.mxu0 0.0
      %1572 = vmatpush2.msra.mxu0 0.0
      %1573 = vmatprep.subr.mxu0 0.0
      %1574 = vmatpush2.msra.mxu0 0.0
      %1575 = vmatprep.subr.mxu0 0.0
      %1576 = vmatpush2.msra.mxu0 0.0
      %1577 = vmatprep.subr.mxu0 0.0
      %1578 = vmatpush2.msra.mxu0 0.0
      %1579 = vmatprep.subr.mxu0 0.0
      %1580 = vmatpush2.msra.mxu0 0.0
      %1581 = vmatprep.subr.mxu0 0.0
      %1582 = vmatpush2.msra.mxu0 0.0
      %1583 = vmatprep.subr.mxu0 0.0
      %1584 = vmatpush2.msra.mxu0 0.0
      %1585 = vmatprep.subr.mxu0 0.0
      %1586 = vmatpush2.msra.mxu0 0.0
      %1587 = vmatprep.subr.mxu0 0.0
      %1588 = vmatpush2.msra.mxu0 0.0
      %1589 = vmatprep.subr.mxu0 0.0
      %1590 = vmatpush2.msra.mxu0 0.0
      %1591 = vmatprep.subr.mxu0 0.0
      %1592 = vmatpush2.msra.mxu0 0.0
      %1593 = vmatprep.mubr.f32.mxu0 0.0
      %1594 = vmatmul.mubr.f32.gmra.mxu0 %v1505
      %v1595 = vpop.f32.mrf.mxu0
      %v1596 = vadd.f32 %v1528, %v1595
      %v1597 = vpop.f32.mrf.mxu0
      %1598 = vdwg.mxu0
      %v1599 = vadd.f32 %v1596, %v601
      %v1600 = vsel %vm394, %v1599, 0.0
      %1601 = vadd.xlane.f32.xlu0 %v1600
      %v1602 = vpop.xlane.xlu0 %1601
      %v1603 = vmul.f32 %v1602, 0.03125
      %v1604 = vmul.f32 %v1599, %v1599
      %v1605 = vsel %vm394, %v1604, 0.0
      %1606 = vadd.xlane.f32.xlu0 %v1605
      %v1607 = vpop.xlane.xlu0 %1606
      %v1608 = vmul.f32 %v1607, 0.03125
      %v1609 = vmul.f32 %v1603, %v1603
      %v1610 = vsub.f32 %v1608, %v1609
      %v1611 = vsub.f32 %v1599, %v1603
      %v1612 = vadd.f32 %v1610, 1e-06
      %v1613 = vrsqrt.pop %v1612
      %v1614 = vmul.f32 %v1611, %v1613
      %v1615 = vlaneseq
      %v1616 = vshrl.u32 %v1615, 7
      %v1617 = vsub.s32 2, %v1616
      %v1618 = vrot.slane %v393, %v1617
      %v1619 = vmul.f32 %v1614, %v1618
      %v1620 = vlaneseq
      %v1621 = vshrl.u32 %v1620, 7
      %v1622 = vsub.s32 3, %v1621
      %v1623 = vrot.slane %v393, %v1622
      %v1624 = vadd.f32 %v1619, %v1623
      %s1625 = scalar_lea.vmem %s332, 768
      %v1626 = vld [vmem:[%s1625] sm:$0xff]
      %v1627 = vld [vmem:[%s1625 + $0x8] sm:$0xff]
      %v1628 = vld [vmem:[%s1625 + $0x10] sm:$0xff]
      %v1629 = vld [vmem:[%s1625 + $0x18] sm:$0xff]
      %v1630 = vld [vmem:[%s1625 + $0x20] sm:$0xff]
      %v1631 = vld [vmem:[%s1625 + $0x28] sm:$0xff]
      %v1632 = vld [vmem:[%s1625 + $0x30] sm:$0xff]
      %v1633 = vld [vmem:[%s1625 + $0x38] sm:$0xff]
      %v1634 = vld [vmem:[%s1625 + $0x40] sm:$0xff]
      %v1635 = vld [vmem:[%s1625 + $0x48] sm:$0xff]
      %v1636 = vld [vmem:[%s1625 + $0x50] sm:$0xff]
      %v1637 = vld [vmem:[%s1625 + $0x58] sm:$0xff]
      %v1638 = vld [vmem:[%s1625 + $0x60] sm:$0xff]
      %v1639 = vld [vmem:[%s1625 + $0x68] sm:$0xff]
      %v1640 = vld [vmem:[%s1625 + $0x70] sm:$0xff]
      %v1641 = vld [vmem:[%s1625 + $0x78] sm:$0xff]
      %v1642 = vlaneseq
      %v1643 = vshrl.u32 %v1642, 7
      %v1644 = vsub.s32 4, %v1643
      %v1645 = vrot.slane %v393, %v1644
      %1646 = vmatprep.subr.mxu0 0.0
      %1647 = vmatpush1.msra.mxu0 %v1641
      %1648 = vmatprep.subr.mxu0 0.0
      %1649 = vmatpush1.msra.mxu0 %v1640
      %1650 = vmatprep.subr.mxu0 0.0
      %1651 = vmatpush1.msra.mxu0 %v1639
      %1652 = vmatprep.subr.mxu0 0.0
      %1653 = vmatpush1.msra.mxu0 %v1638
      %1654 = vmatprep.subr.mxu0 0.0
      %1655 = vmatpush1.msra.mxu0 %v1637
      %1656 = vmatprep.subr.mxu0 0.0
      %1657 = vmatpush1.msra.mxu0 %v1636
      %1658 = vmatprep.subr.mxu0 0.0
      %1659 = vmatpush1.msra.mxu0 %v1635
      %1660 = vmatprep.subr.mxu0 0.0
      %1661 = vmatpush1.msra.mxu0 %v1634
      %1662 = vmatprep.subr.mxu0 0.0
      %1663 = vmatpush1.msra.mxu0 %v1633
      %1664 = vmatprep.subr.mxu0 0.0
      %1665 = vmatpush1.msra.mxu0 %v1632
      %1666 = vmatprep.subr.mxu0 0.0
      %1667 = vmatpush1.msra.mxu0 %v1631
      %1668 = vmatprep.subr.mxu0 0.0
      %1669 = vmatpush1.msra.mxu0 %v1630
      %1670 = vmatprep.subr.mxu0 0.0
      %1671 = vmatpush1.msra.mxu0 %v1629
      %1672 = vmatprep.subr.mxu0 0.0
      %1673 = vmatpush1.msra.mxu0 %v1628
      %1674 = vmatprep.subr.mxu0 0.0
      %1675 = vmatpush1.msra.mxu0 %v1627
      %1676 = vmatprep.subr.mxu0 0.0
      %1677 = vmatpush1.msra.mxu0 %v1626
      %1678 = vmatprep.subr.mxu0 0.0
      %1679 = vmatpush2.msra.mxu0 0.0
      %1680 = vmatprep.subr.mxu0 0.0
      %1681 = vmatpush2.msra.mxu0 0.0
      %1682 = vmatprep.subr.mxu0 0.0
      %1683 = vmatpush2.msra.mxu0 0.0
      %1684 = vmatprep.subr.mxu0 0.0
      %1685 = vmatpush2.msra.mxu0 0.0
      %1686 = vmatprep.subr.mxu0 0.0
      %1687 = vmatpush2.msra.mxu0 0.0
      %1688 = vmatprep.subr.mxu0 0.0
      %1689 = vmatpush2.msra.mxu0 0.0
      %1690 = vmatprep.subr.mxu0 0.0
      %1691 = vmatpush2.msra.mxu0 0.0
      %1692 = vmatprep.subr.mxu0 0.0
      %1693 = vmatpush2.msra.mxu0 0.0
      %1694 = vmatprep.subr.mxu0 0.0
      %1695 = vmatpush2.msra.mxu0 0.0
      %1696 = vmatprep.subr.mxu0 0.0
      %1697 = vmatpush2.msra.mxu0 0.0
      %1698 = vmatprep.subr.mxu0 0.0
      %1699 = vmatpush2.msra.mxu0 0.0
      %1700 = vmatprep.subr.mxu0 0.0
      %1701 = vmatpush2.msra.mxu0 0.0
      %1702 = vmatprep.subr.mxu0 0.0
      %1703 = vmatpush2.msra.mxu0 0.0
      %1704 = vmatprep.subr.mxu0 0.0
      %1705 = vmatpush2.msra.mxu0 0.0
      %1706 = vmatprep.subr.mxu0 0.0
      %1707 = vmatpush2.msra.mxu0 0.0
      %1708 = vmatprep.subr.mxu0 0.0
      %1709 = vmatpush2.msra.mxu0 0.0
      %1710 = vmatprep.mubr.f32.mxu0 0.0
      %1711 = vmatmul.mubr.f32.gmra.mxu0 %v1624
      %v1712 = vpop.f32.mrf.mxu0
      %v1713 = vadd.f32 %v1645, %v1712
      %v1714 = vpop.f32.mrf.mxu0
      %1715 = vdwg.mxu0
      %v1716 = vmul.f32 %v1713, 0.5
      %v1717 = vmul.f32 %v1713, %v1713
      %v1718 = vmul.f32 %v1713, %v1717
      %v1719 = vmul.f32 %v1718, 0.044715
      %v1720 = vadd.f32 %v1713, %v1719
      %v1721 = vmul.f32 %v1720, 0.7978846
      %v1722 = vtanh.pop %v1721
      %v1723 = vadd.f32 %v1722, 1.0
      %v1724 = vmul.f32 %v1716, %v1723
      %s1725 = scalar_lea.vmem %s332, 896
      %v1726 = vld [vmem:[%s1725] sm:$0xff]
      %v1727 = vld [vmem:[%s1725 + $0x8] sm:$0xff]
      %v1728 = vld [vmem:[%s1725 + $0x10] sm:$0xff]
      %v1729 = vld [vmem:[%s1725 + $0x18] sm:$0xff]
      %v1730 = vld [vmem:[%s1725 + $0x20] sm:$0xff]
      %v1731 = vld [vmem:[%s1725 + $0x28] sm:$0xff]
      %v1732 = vld [vmem:[%s1725 + $0x30] sm:$0xff]
      %v1733 = vld [vmem:[%s1725 + $0x38] sm:$0xff]
      %v1734 = vld [vmem:[%s1725 + $0x40] sm:$0xff]
      %v1735 = vld [vmem:[%s1725 + $0x48] sm:$0xff]
      %v1736 = vld [vmem:[%s1725 + $0x50] sm:$0xff]
      %v1737 = vld [vmem:[%s1725 + $0x58] sm:$0xff]
      %v1738 = vld [vmem:[%s1725 + $0x60] sm:$0xff]
      %v1739 = vld [vmem:[%s1725 + $0x68] sm:$0xff]
      %v1740 = vld [vmem:[%s1725 + $0x70] sm:$0xff]
      %v1741 = vld [vmem:[%s1725 + $0x78] sm:$0xff]
      %1742 = vmatprep.subr.mxu0 0.0
      %1743 = vmatpush1.msra.mxu0 %v1741
      %1744 = vmatprep.subr.mxu0 0.0
      %1745 = vmatpush1.msra.mxu0 %v1740
      %1746 = vmatprep.subr.mxu0 0.0
      %1747 = vmatpush1.msra.mxu0 %v1739
      %1748 = vmatprep.subr.mxu0 0.0
      %1749 = vmatpush1.msra.mxu0 %v1738
      %1750 = vmatprep.subr.mxu0 0.0
      %1751 = vmatpush1.msra.mxu0 %v1737
      %1752 = vmatprep.subr.mxu0 0.0
      %1753 = vmatpush1.msra.mxu0 %v1736
      %1754 = vmatprep.subr.mxu0 0.0
      %1755 = vmatpush1.msra.mxu0 %v1735
      %1756 = vmatprep.subr.mxu0 0.0
      %1757 = vmatpush1.msra.mxu0 %v1734
      %1758 = vmatprep.subr.mxu0 0.0
      %1759 = vmatpush1.msra.mxu0 %v1733
      %1760 = vmatprep.subr.mxu0 0.0
      %1761 = vmatpush1.msra.mxu0 %v1732
      %1762 = vmatprep.subr.mxu0 0.0
      %1763 = vmatpush1.msra.mxu0 %v1731
      %1764 = vmatprep.subr.mxu0 0.0
      %1765 = vmatpush1.msra.mxu0 %v1730
      %1766 = vmatprep.subr.mxu0 0.0
      %1767 = vmatpush1.msra.mxu0 %v1729
      %1768 = vmatprep.subr.mxu0 0.0
      %1769 = vmatpush1.msra.mxu0 %v1728
      %1770 = vmatprep.subr.mxu0 0.0
      %1771 = vmatpush1.msra.mxu0 %v1727
      %1772 = vmatprep.subr.mxu0 0.0
      %1773 = vmatpush1.msra.mxu0 %v1726
      %1774 = vmatprep.subr.mxu0 0.0
      %1775 = vmatpush2.msra.mxu0 0.0
      %1776 = vmatprep.subr.mxu0 0.0
      %1777 = vmatpush2.msra.mxu0 0.0
      %1778 = vmatprep.subr.mxu0 0.0
      %1779 = vmatpush2.msra.mxu0 0.0
      %1780 = vmatprep.subr.mxu0 0.0
      %1781 = vmatpush2.msra.mxu0 0.0
      %1782 = vmatprep.subr.mxu0 0.0
      %1783 = vmatpush2.msra.mxu0 0.0
      %1784 = vmatprep.subr.mxu0 0.0
      %1785 = vmatpush2.msra.mxu0 0.0
      %1786 = vmatprep.subr.mxu0 0.0
      %1787 = vmatpush2.msra.mxu0 0.0
      %1788 = vmatprep.subr.mxu0 0.0
      %1789 = vmatpush2.msra.mxu0 0.0
      %1790 = vmatprep.subr.mxu0 0.0
      %1791 = vmatpush2.msra.mxu0 0.0
      %1792 = vmatprep.subr.mxu0 0.0
      %1793 = vmatpush2.msra.mxu0 0.0
      %1794 = vmatprep.subr.mxu0 0.0
      %1795 = vmatpush2.msra.mxu0 0.0
      %1796 = vmatprep.subr.mxu0 0.0
      %1797 = vmatpush2.msra.mxu0 0.0
      %1798 = vmatprep.subr.mxu0 0.0
      %1799 = vmatpush2.msra.mxu0 0.0
      %1800 = vmatprep.subr.mxu0 0.0
      %1801 = vmatpush2.msra.mxu0 0.0
      %1802 = vmatprep.subr.mxu0 0.0
      %1803 = vmatpush2.msra.mxu0 0.0
      %1804 = vmatprep.subr.mxu0 0.0
      %1805 = vmatpush2.msra.mxu0 0.0
      %1806 = vmatprep.mubr.f32.mxu0 0.0
      %1807 = vmatmul.mubr.f32.gmra.mxu0 %v1724
      %v1808 = vpop.f32.mrf.mxu0
      %v1809 = vadd.f32 0.0, %v1808
      %v1810 = vpop.f32.mrf.mxu0
      %1811 = vdwg.mxu0
      %v1812 = vadd.f32 %v1599, %v1809
      %v1813 = vlaneseq
      %v1814 = vshrl.u32 %v1813, 7
      %v1815 = vsub.s32 5, %v1814
      %v1816 = vrot.slane %v393, %v1815
      %v1817 = vadd.f32 %v1812, %v1816
      %1818 = vst [vmem:[#allocation2] sm:$0xf] %v1817
      %p1819 = scmp.eq.s32.totalorder %s20, 1
      // Predicated region
      $region61: #{_lambda_.3} parent=55 // pred_check
        %p1820 = pneg %p1819
      $region62: #{_lambda_.3} parent=55 // pred_check_branch
        %1822 = sbr.rel (%p1820) target = $region64
      $region63: #{_lambda_.3} parent=55 // pred_region
        %v1823 = vld [vmem:[%s8] sm:$0x1]
        %v1824 = vld [vmem:[%s8 + $0x1] sm:$0x1]
        %v1825 = vsel %vm394, %v1817, 0.0
        %1826 = vadd.xlane.f32.xlu0 %v1825
        %v1827 = vpop.xlane.xlu0 %1826
        %v1828 = vmul.f32 %v1827, 0.03125
        %v1829 = vmul.f32 %v1817, %v1817
        %v1830 = vsel %vm394, %v1829, 0.0
        %1831 = vadd.xlane.f32.xlu0 %v1830
        %v1832 = vpop.xlane.xlu0 %1831
        %v1833 = vmul.f32 %v1832, 0.03125
        %v1834 = vmul.f32 %v1828, %v1828
        %v1835 = vsub.f32 %v1833, %v1834
        %v1836 = vsub.f32 %v1817, %v1828
        %v1837 = vadd.f32 %v1835, 1e-06
        %v1838 = vrsqrt.pop %v1837
        %v1839 = vmul.f32 %v1836, %v1838
        %v1840 = vlaneseq
        %v1841 = vshrl.u32 %v1840, 7
        %v1842 = vsub.s32 0, %v1841
        %v1843 = vrot.slane %v1823, %v1842
        %v1844 = vmul.f32 %v1839, %v1843
        %v1845 = vlaneseq
        %v1846 = vshrl.u32 %v1845, 7
        %v1847 = vsub.s32 0, %v1846
        %v1848 = vrot.slane %v1824, %v1847
        %v1849 = vadd.f32 %v1844, %v1848
        %1850 = vst [vmem:[%s9] sm:$0xf] %v1849
      $region64: #{_lambda_.3} parent=55 // pred_fallthru
        _
      // Predicated region
      $region65: #{_lambda_.3} parent=55 // pred_check
        %p1851 = pneg %p232
      $region66: #{_lambda_.3} parent=55 // pred_check_branch
        %1853 = sbr.rel (%p1851) target = $region68
      $region67: #{_lambda_.3} parent=55 // pred_region
        _
      $region68: #{_lambda_.3} parent=55 // pred_fallthru
        _
      // Predicated region
      $region69: #{_lambda_.3} parent=55 // pred_check
        %p1854 = pneg %p232
      $region70: #{_lambda_.3} parent=55 // pred_check_branch
        %1856 = sbr.rel (%p1854) target = $region72
      $region71: #{_lambda_.3} parent=55 // pred_region
        _
      $region72: #{_lambda_.3} parent=55 // pred_fallthru
        _
    $region56: #{_lambda_.3} parent=5 // pred_fallthru
      _
    %p1857 = scmp.le.s32.totalorder 2, %s15
    // Predicated region
    $region73: #{_lambda_.3} parent=5 // pred_check
      %p1858 = pneg %p1857
    $region74: #{_lambda_.3} parent=5 // pred_check_branch
      %1860 = sbr.rel (%p1858) target = $region76
    $region75: #{_lambda_.3} parent=5 // pred_region
      %s1861 = ssub.s32 %s15, 2
    $region76: #{_lambda_.3} parent=5 // pred_fallthru
      _
  $region6: #{_lambda_.3} parent=0 // loop_footer
    %s19 = sadd.s32 1, %s15
  $region7: #{_lambda_.3} parent=0 // loop_footer_branch
    %14 = sbr.rel target = $region3
  $region8: #{_lambda_.3} parent=0 // loop_exit
    _

</llo_original>
